<compile_context>
chip_gen: v7x
topology: tpu7x:2x2x1
jax: 0.10.0
libtpu: 0.0.40
codegen_flags: <defaults>
</compile_context>

<pallas_src>
import functools
import math

import numpy as np
import jax
import jax.numpy as jnp
from jax import lax
from jax.experimental import pallas as pl
from jax.experimental.pallas import tpu as pltpu

CIN_PAD = 8           # pad the 3 raw input channels up to one sublane tile
ROW_PAD = 8           # pad 3-channel intermediates / outputs to full sublane tiles
MAX_STEP_LANES = 512  # cap on packed lane width per step (bounds O(S^2) constants)


# ---------------------------------------------------------------------------
# the kernel: S packed samples per grid step
# ---------------------------------------------------------------------------
def _ts2img_kernel(n2,
                   x_ref,
                   w1_ref, b1_ref, w2_ref, b2_ref,
                   rc_ref,
                   wf_ref, bf_ref, bns_ref, bnt_ref,
                   wc1_ref, bc1_ref, wc2_ref, bc2_ref,
                   wpa_ref, bpa_ref, wa1_ref, ba1_ref, wa2_ref, ba2_ref,
                   wr_ref, br_ref, wo_ref, bo_ref,
                   mi_ref, ml_ref, mh_ref,
                   o_ref):
    f32 = jnp.float32
    x = x_ref[...]                                       # [8, S*L]
    ml = ml_ref[...]                                     # [4, S*L]  tap masks (L segs)
    mh = mh_ref[...]                                     # [2, S*Lh] tap masks (Lh segs)

    def conv3(h, w_ref, b_ref, m_neg, m_pos, dil):
        """3-tap (dilated) conv along the packed time axis as 3 accumulated dots."""
        n = h.shape[-1]
        acc = jnp.dot(w_ref[1], h, preferred_element_type=f32) + b_ref[...]
        t = pltpu.roll(h, dil, axis=1) * m_neg           # tap at offset -dil
        acc = acc + jnp.dot(w_ref[0], t, preferred_element_type=f32)
        t = pltpu.roll(h, n - dil, axis=1) * m_pos       # tap at offset +dil
        return acc + jnp.dot(w_ref[2], t, preferred_element_type=f32)

    # multi-scale temporal convs (dilation 1 and 2) + ReLU
    y0 = jnp.maximum(conv3(x, w1_ref, b1_ref, ml[0:1], ml[1:2], 1), 0.0)
    y1 = jnp.maximum(conv3(x, w2_ref, b2_ref, ml[2:3], ml[3:4], 2), 0.0)
    u = jnp.concatenate([y0, y1], axis=0)                # [2H, S*L]

    # one fused right-matmul: [DFT-real | DFT-imag | even-pick | odd-pick]
    g = jnp.dot(u, rc_ref[...], preferred_element_type=f32)   # [2H, 4*S*Lh]
    fr, fi = g[:, :n2], g[:, n2:2 * n2]
    even, odd = g[:, 2 * n2:3 * n2], g[:, 3 * n2:4 * n2]
    fft_abs = jnp.sqrt(fr * fr + fi * fi)                # |rfft|[..., :L//2]
    # haar avg/diff + stride-2 downsample are folded into the fusion weights,
    # which are expressed in the [even | odd | |rfft|] basis.
    v = jnp.concatenate([even, odd, fft_abs], axis=0)    # [6H, S*Lh]

    # feature fusion: conv1d(k=3) + ReLU + BatchNorm1d (inference statistics)
    h = jnp.maximum(conv3(v, wf_ref, bf_ref, mh[0:1], mh[1:2], 1), 0.0)
    h = h * bns_ref[...] + bnt_ref[...]

    # conv2d blocks on the H==1 image (only the middle kernel row is live)
    h = jnp.maximum(conv3(h, wc1_ref, bc1_ref, mh[0:1], mh[1:2], 1), 0.0)
    h = jnp.maximum(conv3(h, wc2_ref, bc2_ref, mh[0:1], mh[1:2], 1), 0.0)  # [8, S*Lh]

    # proj_for_attention (1x1 conv) + channel attention gate (sigmoid via EUP recip)
    z = jnp.dot(wpa_ref[...], h, preferred_element_type=f32) + bpa_ref[...]
    a = jnp.maximum(
        jnp.dot(wa1_ref[...], z, preferred_element_type=f32) + ba1_ref[...], 0.0)
    a = jnp.dot(wa2_ref[...], a, preferred_element_type=f32) + ba2_ref[...]
    z = z * pl.reciprocal(1.0 + jnp.exp(-a), approx=True)

    # final_proj: conv2d_2 (3x3) + residual, then 1x1 projection to Cout (padded to 8)
    z = conv3(z, wr_ref, br_ref, mh[0:1], mh[1:2], 1) + z
    row = jnp.dot(wo_ref[...], z, preferred_element_type=f32) + bo_ref[...]

    # bilinear width resample; source height is 1 so height is a pure broadcast
    o_ref[...] = jnp.dot(row, mi_ref[...], preferred_element_type=f32)


# ---------------------------------------------------------------------------
# wrapper-side constant / weight packing
# ---------------------------------------------------------------------------
def _pack_conv3_weight(w, cin_pad=None, cout_pad=None):
    """torch [O, I, 3] -> [3, O', I'] (tap-leading, optional zero padding)."""
    w = jnp.asarray(w, jnp.float32)
    o, i, _ = w.shape
    po = max(0, (cout_pad or o) - o)
    pi = max(0, (cin_pad or i) - i)
    w = jnp.pad(w, ((0, po), (0, pi), (0, 0)))
    return jnp.transpose(w, (2, 0, 1))


def _width_interp_block(src, dst):
    """PyTorch bilinear (align_corners=False) width-resample matrix [src, dst]."""
    j = np.arange(dst, dtype=np.float64)
    s = np.maximum((j + 0.5) * (src / dst) - 0.5, 0.0)
    x0 = np.floor(s).astype(np.int64)
    lam = s - x0
    x1 = np.minimum(x0 + 1, src - 1)
    m = np.zeros((src, dst), np.float64)
    np.add.at(m, (x0, np.arange(dst)), 1.0 - lam)
    np.add.at(m, (x1, np.arange(dst)), lam)
    return m


def _blockdiag(blk, s):
    return np.kron(np.eye(s, dtype=np.float64), blk).astype(np.float32)


def _seg_mask(s, l_seg, off):
    """[1, s*l_seg] validity mask (1.0/0.0) for a tap at offset `off` per segment."""
    j = np.arange(s * l_seg) % l_seg
    valid = (j >= -off) if off < 0 else (j < l_seg - off)
    return valid.astype(np.float32)[None, :]


def _const(arr):
    nd = arr.ndim
    return pl.BlockSpec(arr.shape, lambda i, _nd=nd: (0,) * _nd)


def multiscale_ts_to_image(x_enc, params, image_size, periodicity):
    """Pallas-backed forward. x_enc: [B, L, D] -> [B, output_channels, IS, IS]."""
    (W1, b1, W2, b2, Wf, bf, bn_g, bn_b, bn_m, bn_v,
     Wc1, bc1, Wc2, bc2, Wpa, bpa, Wa1, ba1, Wa2, ba2,
     Wr, br, Wo, bo) = params
    B, L, D = x_enc.shape
    H = W1.shape[0]
    Cout = Wo.shape[0]
    Cmid = Wc2.shape[0]
    IS = image_size
    Lh = L // 2
    BD = B * D
    f32 = jnp.float32
    assert L % 2 == 0 and Cout <= ROW_PAD and Cmid <= ROW_PAD

    # ---- feature construction (value + sin/cos), then the module's raw .view ----
    t = jnp.arange(L, dtype=f32)
    ang = t / periodicity * (2.0 * np.pi)
    pe = jnp.stack([jnp.sin(ang), jnp.cos(ang)], axis=-1)               # [L, 2]
    pe = jnp.broadcast_to(pe[None, :, None, :], (B, L, D, 2))
    cat = jnp.concatenate([x_enc[..., None].astype(f32), pe], axis=-1)  # [B,L,D,3]
    feat = cat.reshape(BD, 3, L)               # torch .view(B*D, 3, L) semantics

    # ---- samples-per-step S: lane-aligned, capped lane width, >=2 grid steps ----
    def _align(n):
        return 128 // math.gcd(128, n)
    S = math.lcm(_align(L), _align(Lh), _align(IS))
    while S * 2 * L <= MAX_STEP_LANES and BD > 2 * S:
        S *= 2
    BD_pad = ((BD + S - 1) // S) * S           # zero-pad samples; no fallback path
    nblk = BD_pad // S
    N1, N2, NIS = S * L, S * Lh, S * IS

    if BD_pad > BD:
        feat = jnp.pad(feat, ((0, BD_pad - BD), (0, 0), (0, 0)))
    xp = jnp.transpose(feat, (1, 0, 2)).reshape(3, BD_pad * L)
    xp = jnp.pad(xp, ((0, CIN_PAD - 3), (0, 0)))                        # [8, BD_pad*L]

    # ---- conv weights: tap-leading [3, Cout, Cin] ----
    w1p = _pack_conv3_weight(W1, cin_pad=CIN_PAD)
    w2p = _pack_conv3_weight(W2, cin_pad=CIN_PAD)
    wc1p = _pack_conv3_weight(Wc1[:, :, 1, :])             # conv2d middle kernel row
    wc2p = _pack_conv3_weight(Wc2[:, :, 1, :], cout_pad=ROW_PAD)
    wrp = _pack_conv3_weight(Wr[:, :, 1, :])

    # feature_fusion weights remapped onto the compact [even | odd | |rfft|] basis:
    # u[:, ::2] == even, haar avg = (even+odd)/2, haar diff = (even-odd)/2, each
    # wavelet band duplicated twice and |rfft| duplicated 4x in the original layout.
    H2 = 2 * H
    pmap = np.zeros((18 * H, 6 * H), np.float32)
    pmap[np.arange(H2), np.arange(H2)] = 1.0               # downsampled u -> even
    for q in range(16 * H):
        row, c_outer, inner = H2 + q, q // 4, q % 4
        if c_outer < H2:
            pmap[row, 2 * H2 + c_outer] += 1.0             # |rfft| block
        else:
            a = c_outer - H2
            pmap[row, a] += 0.5                            # avg/diff -> even basis
            pmap[row, H2 + a] += 0.5 if inner < 2 else -0.5  # avg/diff -> odd basis
    pmap = jnp.asarray(pmap)
    Wf32 = jnp.asarray(Wf, f32)
    wfp = jnp.stack([Wf32[:, :, k] @ pmap for k in range(3)], axis=0)   # [3, H, 6H]

    b1c = jnp.asarray(b1, f32).reshape(H, 1)
    b2c = jnp.asarray(b2, f32).reshape(H, 1)
    bfc = jnp.asarray(bf, f32).reshape(H, 1)
    bc1c = jnp.asarray(bc1, f32).reshape(-1, 1)
    bc2c = jnp.pad(jnp.asarray(bc2, f32), (0, ROW_PAD - Cmid)).reshape(ROW_PAD, 1)
    bpac = jnp.asarray(bpa, f32).reshape(H, 1)
    ba1c = jnp.asarray(ba1, f32).reshape(-1, 1)
    ba2c = jnp.asarray(ba2, f32).reshape(H, 1)
    brc = jnp.asarray(br, f32).reshape(H, 1)
    boc = jnp.pad(jnp.asarray(bo, f32), (0, ROW_PAD - Cout)).reshape(ROW_PAD, 1)

    wpa_m = jnp.pad(jnp.asarray(Wpa, f32)[:, :, 0, 0], ((0, 0), (0, ROW_PAD - Cmid)))
    wa1_m = jnp.asarray(Wa1, f32)[:, :, 0, 0]
    wa2_m = jnp.asarray(Wa2, f32)[:, :, 0, 0]
    wo_m = jnp.pad(jnp.asarray(Wo, f32)[:, :, 0, 0], ((0, ROW_PAD - Cout), (0, 0)))

    # TODO(synk): BatchNorm1d uses inference-mode running statistics; training-mode
    # batch statistics would require a cross-sample reduction.
    inv = jnp.asarray(bn_g, f32) / jnp.sqrt(jnp.asarray(bn_v, f32) + 1e-5)
    bns = inv.reshape(H, 1)
    bnt = (jnp.asarray(bn_b, f32) - jnp.asarray(bn_m, f32) * inv).reshape(H, 1)

    # ---- fused block-diagonal right constant: [DFT-re | DFT-im | even | odd] ----
    ll = np.arange(L, dtype=np.float64)[:, None]
    ff = np.arange(Lh, dtype=np.float64)[None, :]
    fre_blk = np.cos(2.0 * np.pi * ll * ff / L)
    fim_blk = -np.sin(2.0 * np.pi * ll * ff / L)
    kk = np.arange(Lh)
    ev_blk = np.zeros((L, Lh)); ev_blk[2 * kk, kk] = 1.0
    od_blk = np.zeros((L, Lh)); od_blk[2 * kk + 1, kk] = 1.0
    rc = jnp.asarray(np.concatenate(
        [_blockdiag(b, S) for b in (fre_blk, fim_blk, ev_blk, od_blk)], axis=1))
    mi = jnp.asarray(_blockdiag(_width_interp_block(Lh, IS), S))

    # precomputed 3-tap edge masks (one row per (offset, segment-length) pair)
    maskL = jnp.asarray(np.concatenate(
        [_seg_mask(S, L, o) for o in (-1, 1, -2, 2)], axis=0))          # [4, S*L]
    maskH = jnp.asarray(np.concatenate(
        [_seg_mask(S, Lh, o) for o in (-1, 1)], axis=0))                # [2, S*Lh]

    consts = (w1p, b1c, w2p, b2c,
              rc,
              wfp, bfc, bns, bnt,
              wc1p, bc1c, wc2p, bc2c,
              wpa_m, bpac, wa1_m, ba1c, wa2_m, ba2c,
              wrp, brc, wo_m, boc,
              mi, maskL, maskH)

    in_specs = [pl.BlockSpec((CIN_PAD, N1), lambda i: (0, i))]
    in_specs += [_const(c) for c in consts]

    kernel = functools.partial(_ts2img_kernel, N2)
    row_out = pl.pallas_call(
        kernel,
        out_shape=jax.ShapeDtypeStruct((ROW_PAD, BD_pad * IS), f32),
        grid_spec=pltpu.PrefetchScalarGridSpec(
            num_scalar_prefetch=0,
            grid=(nblk,),
            in_specs=in_specs,
            out_specs=pl.BlockSpec((ROW_PAD, NIS), lambda i: (0, i)),
        ),
        compiler_params=pltpu.CompilerParams(
            dimension_semantics=("parallel",)),
    )(xp, *consts)

    rows = row_out.reshape(ROW_PAD, BD_pad, IS)[:Cout, :BD]             # [Cout, BD, IS]
    rows = rows.transpose(1, 0, 2).reshape(B, D, Cout, IS).mean(axis=1)
    return jnp.broadcast_to(rows[:, :, None, :], (B, Cout, IS, IS))


# ---------------------------------------------------------------------------
# pure-JAX reference (mirrors the PyTorch forward, inference-mode BN)
# ---------------------------------------------------------------------------
def reference(x_enc, params, image_size, periodicity):
    (W1, b1, W2, b2, Wf, bf, bn_g, bn_b, bn_m, bn_v,
     Wc1, bc1, Wc2, bc2, Wpa, bpa, Wa1, ba1, Wa2, ba2,
     Wr, br, Wo, bo) = params
    B, L, D = x_enc.shape
    H = W1.shape[0]
    Cout = Wo.shape[0]
    IS = image_size
    Lh = L // 2
    BD = B * D
    hp = lax.Precision.HIGHEST

    t = jnp.arange(L, dtype=jnp.float32)
    ang = t / periodicity * (2.0 * np.pi)
    pe = jnp.stack([jnp.sin(ang), jnp.cos(ang)], axis=-1)
    pe = jnp.broadcast_to(pe[None, :, None, :], (B, L, D, 2))
    cat = jnp.concatenate([x_enc[..., None].astype(jnp.float32), pe], axis=-1)
    x = cat.reshape(BD, 3, L)

    def conv1d(v, W, b, pad, dil):
        y = lax.conv_general_dilated(
            v, W, window_strides=(1,), padding=[(pad, pad)], rhs_dilation=(dil,),
            dimension_numbers=("NCH", "OIH", "NCH"), precision=hp)
        return y + b[None, :, None]

    def conv2d(v, W, b, pad):
        y = lax.conv_general_dilated(
            v, W, window_strides=(1, 1), padding=[(pad, pad), (pad, pad)],
            dimension_numbers=("NCHW", "OIHW", "NCHW"), precision=hp)
        return y + b[None, :, None, None]

    y0 = jax.nn.relu(conv1d(x, W1, b1, 1, 1))
    y1 = jax.nn.relu(conv1d(x, W2, b2, 2, 2))
    u = jnp.concatenate([y0, y1], axis=1)                        # [BD, 2H, L]

    # freq_processing: |rfft|[:L//2] plus J=1 haar DWT of the H==1 image, which
    # reduces to pairwise average / half-difference, each appearing twice.
    fft_abs = jnp.abs(jnp.fft.rfft(u, axis=-1))[..., :Lh]
    even, odd = u[..., 0::2], u[..., 1::2]
    avg, dif = 0.5 * (even + odd), 0.5 * (even - odd)
    wav = jnp.stack([avg, avg, dif, dif], axis=2)                # [BD, 2H, 4, Lh]
    fft4 = jnp.broadcast_to(fft_abs[:, :, None, :], (BD, 2 * H, 4, Lh))
    freq = jnp.concatenate([fft4, wav], axis=1).reshape(BD, 16 * H, Lh)

    v = jnp.concatenate([u[..., ::2], freq], axis=1)             # [BD, 18H, Lh]
    h = jax.nn.relu(conv1d(v, Wf, bf, 1, 1))
    h = (h - bn_m[None, :, None]) * (bn_g[None, :, None] /
        jnp.sqrt(bn_v[None, :, None] + 1e-5)) + bn_b[None, :, None]

    h = h[:, :, None, :]                                         # [BD, H, 1, Lh]
    h = jax.nn.relu(conv2d(h, Wc1, bc1, 1))
    h = jax.nn.relu(conv2d(h, Wc2, bc2, 1))                      # [BD, 3, 1, Lh]
    z = conv2d(h, Wpa, bpa, 0)                                   # [BD, H, 1, Lh]
    a = jax.nn.relu(conv2d(z, Wa1, ba1, 0))
    a = conv2d(a, Wa2, ba2, 0)
    z = z * jax.nn.sigmoid(a)
    z = conv2d(z, Wr, br, 1) + z
    out = conv2d(z, Wo, bo, 0)                                   # [BD, Cout, 1, Lh]

    j = jnp.arange(IS, dtype=jnp.float32)
    src = jnp.maximum((j + 0.5) * (Lh / IS) - 0.5, 0.0)
    x0 = jnp.floor(src).astype(jnp.int32)
    lam = src - x0.astype(jnp.float32)
    x1 = jnp.minimum(x0 + 1, Lh - 1)
    rowv = out[:, :, 0, :]
    row = rowv[..., x0] * (1.0 - lam) + rowv[..., x1] * lam      # [BD, Cout, IS]
    img = jnp.broadcast_to(row[:, :, None, :], (BD, Cout, IS, IS))
    return img.reshape(B, D, Cout, IS, IS).mean(axis=1)


if __name__ == "__main__":
    # hyper-params implied by the module: input_dim must be 3 (value + sin + cos)
    # and output_channels must be 3 (proj_for_attention is Conv2d(3, hidden, 1)).
    B, L, D = 2, 16, 16
    hidden, image_size, periodicity = 16, 16, 8
    cout = 3

    key = jax.random.PRNGKey(0)
    ks = iter(jax.random.split(key, 32))

    def nrm(k, shape, fan_in):
        return jax.random.normal(k, shape, jnp.float32) / np.sqrt(fan_in)

    x_enc = jax.random.normal(next(ks), (B, L, D), jnp.float32)
    W1 = nrm(next(ks), (hidden, 3, 3), 9);                 b1 = nrm(next(ks), (hidden,), 3)
    W2 = nrm(next(ks), (hidden, 3, 3), 9);                 b2 = nrm(next(ks), (hidden,), 3)
    Wf = nrm(next(ks), (hidden, 18 * hidden, 3), 54 * hidden)
    bf = nrm(next(ks), (hidden,), 8)
    bn_g = 1.0 + 0.1 * jax.random.normal(next(ks), (hidden,), jnp.float32)
    bn_b = 0.1 * jax.random.normal(next(ks), (hidden,), jnp.float32)
    bn_m = 0.1 * jax.random.normal(next(ks), (hidden,), jnp.float32)
    bn_v = 1.0 + 0.2 * jax.random.uniform(next(ks), (hidden,), jnp.float32)
    Wc1 = nrm(next(ks), (hidden // 2, hidden, 3, 3), 9 * hidden)
    bc1 = nrm(next(ks), (hidden // 2,), 4)
    Wc2 = nrm(next(ks), (cout, hidden // 2, 3, 3), 9 * hidden // 2)
    bc2 = nrm(next(ks), (cout,), 4)
    Wpa = nrm(next(ks), (hidden, cout, 1, 1), cout);       bpa = nrm(next(ks), (hidden,), 4)
    Wa1 = nrm(next(ks), (hidden // 8, hidden, 1, 1), hidden); ba1 = nrm(next(ks), (hidden // 8,), 4)
    Wa2 = nrm(next(ks), (hidden, hidden // 8, 1, 1), hidden // 8); ba2 = nrm(next(ks), (hidden,), 4)
    Wr = nrm(next(ks), (hidden, hidden, 3, 3), 9 * hidden); br = nrm(next(ks), (hidden,), 4)
    Wo = nrm(next(ks), (cout, hidden, 1, 1), hidden);      bo = nrm(next(ks), (cout,), 4)
    params = (W1, b1, W2, b2, Wf, bf, bn_g, bn_b, bn_m, bn_v,
              Wc1, bc1, Wc2, bc2, Wpa, bpa, Wa1, ba1, Wa2, ba2, Wr, br, Wo, bo)

    out = jax.block_until_ready(
        multiscale_ts_to_image(x_enc, params, image_size, periodicity))
    ref = jax.block_until_ready(reference(x_enc, params, image_size, periodicity))

    assert out.shape == (B, cout, image_size, image_size), out.shape
    max_err = float(jnp.max(jnp.abs(out - ref)))
    assert bool(jnp.allclose(out, ref, atol=5e-3, rtol=5e-3)), max_err
    print("KERNEL_OK")
</pallas_src>

<mosaic_0001>
module attributes {stable_mosaic.version = 11 : i64} {
  func.func @_ts2img_kernel(%arg0: i32, %arg1: memref<8x256xf32, #tpu.memory_space<vmem>>, %arg2: memref<3x16x8xf32, #tpu.memory_space<vmem>>, %arg3: memref<16x1xf32, #tpu.memory_space<vmem>>, %arg4: memref<3x16x8xf32, #tpu.memory_space<vmem>>, %arg5: memref<16x1xf32, #tpu.memory_space<vmem>>, %arg6: memref<256x512xf32, #tpu.memory_space<vmem>>, %arg7: memref<3x16x96xf32, #tpu.memory_space<vmem>>, %arg8: memref<16x1xf32, #tpu.memory_space<vmem>>, %arg9: memref<16x1xf32, #tpu.memory_space<vmem>>, %arg10: memref<16x1xf32, #tpu.memory_space<vmem>>, %arg11: memref<3x8x16xf32, #tpu.memory_space<vmem>>, %arg12: memref<8x1xf32, #tpu.memory_space<vmem>>, %arg13: memref<3x8x8xf32, #tpu.memory_space<vmem>>, %arg14: memref<8x1xf32, #tpu.memory_space<vmem>>, %arg15: memref<16x8xf32, #tpu.memory_space<vmem>>, %arg16: memref<16x1xf32, #tpu.memory_space<vmem>>, %arg17: memref<2x16xf32, #tpu.memory_space<vmem>>, %arg18: memref<2x1xf32, #tpu.memory_space<vmem>>, %arg19: memref<16x2xf32, #tpu.memory_space<vmem>>, %arg20: memref<16x1xf32, #tpu.memory_space<vmem>>, %arg21: memref<3x16x16xf32, #tpu.memory_space<vmem>>, %arg22: memref<16x1xf32, #tpu.memory_space<vmem>>, %arg23: memref<8x16xf32, #tpu.memory_space<vmem>>, %arg24: memref<8x1xf32, #tpu.memory_space<vmem>>, %arg25: memref<128x256xf32, #tpu.memory_space<vmem>>, %arg26: memref<4x256xf32, #tpu.memory_space<vmem>>, %arg27: memref<2x128xf32, #tpu.memory_space<vmem>>, %arg28: memref<8x256xf32, #tpu.memory_space<vmem>>) attributes {dimension_semantics = [#tpu.dimension_semantics<parallel>], iteration_bounds = array<i64: 2>, scalar_prefetch = 0 : i64, scratch_operands = 0 : i64, tpu.core_type = #tpu.core_type<tc>, window_params = [{transform_indices = @transform_0, window_bounds = array<i64: 8, 256>}, {pipeline_mode = #tpu.pipeline_mode<synchronous>, transform_indices = @transform_1, window_bounds = array<i64: 3, 16, 8>}, {pipeline_mode = #tpu.pipeline_mode<synchronous>, transform_indices = @transform_2, window_bounds = array<i64: 16, 1>}, {pipeline_mode = #tpu.pipeline_mode<synchronous>, transform_indices = @transform_3, window_bounds = array<i64: 3, 16, 8>}, {pipeline_mode = #tpu.pipeline_mode<synchronous>, transform_indices = @transform_4, window_bounds = array<i64: 16, 1>}, {pipeline_mode = #tpu.pipeline_mode<synchronous>, transform_indices = @transform_5, window_bounds = array<i64: 256, 512>}, {pipeline_mode = #tpu.pipeline_mode<synchronous>, transform_indices = @transform_6, window_bounds = array<i64: 3, 16, 96>}, {pipeline_mode = #tpu.pipeline_mode<synchronous>, transform_indices = @transform_7, window_bounds = array<i64: 16, 1>}, {pipeline_mode = #tpu.pipeline_mode<synchronous>, transform_indices = @transform_8, window_bounds = array<i64: 16, 1>}, {pipeline_mode = #tpu.pipeline_mode<synchronous>, transform_indices = @transform_9, window_bounds = array<i64: 16, 1>}, {pipeline_mode = #tpu.pipeline_mode<synchronous>, transform_indices = @transform_10, window_bounds = array<i64: 3, 8, 16>}, {pipeline_mode = #tpu.pipeline_mode<synchronous>, transform_indices = @transform_11, window_bounds = array<i64: 8, 1>}, {pipeline_mode = #tpu.pipeline_mode<synchronous>, transform_indices = @transform_12, window_bounds = array<i64: 3, 8, 8>}, {pipeline_mode = #tpu.pipeline_mode<synchronous>, transform_indices = @transform_13, window_bounds = array<i64: 8, 1>}, {pipeline_mode = #tpu.pipeline_mode<synchronous>, transform_indices = @transform_14, window_bounds = array<i64: 16, 8>}, {pipeline_mode = #tpu.pipeline_mode<synchronous>, transform_indices = @transform_15, window_bounds = array<i64: 16, 1>}, {pipeline_mode = #tpu.pipeline_mode<synchronous>, transform_indices = @transform_16, window_bounds = array<i64: 2, 16>}, {pipeline_mode = #tpu.pipeline_mode<synchronous>, transform_indices = @transform_17, window_bounds = array<i64: 2, 1>}, {pipeline_mode = #tpu.pipeline_mode<synchronous>, transform_indices = @transform_18, window_bounds = array<i64: 16, 2>}, {pipeline_mode = #tpu.pipeline_mode<synchronous>, transform_indices = @transform_19, window_bounds = array<i64: 16, 1>}, {pipeline_mode = #tpu.pipeline_mode<synchronous>, transform_indices = @transform_20, window_bounds = array<i64: 3, 16, 16>}, {pipeline_mode = #tpu.pipeline_mode<synchronous>, transform_indices = @transform_21, window_bounds = array<i64: 16, 1>}, {pipeline_mode = #tpu.pipeline_mode<synchronous>, transform_indices = @transform_22, window_bounds = array<i64: 8, 16>}, {pipeline_mode = #tpu.pipeline_mode<synchronous>, transform_indices = @transform_23, window_bounds = array<i64: 8, 1>}, {pipeline_mode = #tpu.pipeline_mode<synchronous>, transform_indices = @transform_24, window_bounds = array<i64: 128, 256>}, {pipeline_mode = #tpu.pipeline_mode<synchronous>, transform_indices = @transform_25, window_bounds = array<i64: 4, 256>}, {pipeline_mode = #tpu.pipeline_mode<synchronous>, transform_indices = @transform_26, window_bounds = array<i64: 2, 128>}, {transform_indices = @transform_27, window_bounds = array<i64: 8, 256>}]} {
    %c0 = arith.constant 0 : index
    %c0_0 = arith.constant 0 : index
    %0 = vector.load %arg1[%c0, %c0_0] : memref<8x256xf32, #tpu.memory_space<vmem>>, vector<8x256xf32>
    %c0_1 = arith.constant 0 : index
    %c0_2 = arith.constant 0 : index
    %1 = vector.load %arg26[%c0_1, %c0_2] : memref<4x256xf32, #tpu.memory_space<vmem>>, vector<4x256xf32>
    %c0_3 = arith.constant 0 : index
    %c0_4 = arith.constant 0 : index
    %2 = vector.load %arg27[%c0_3, %c0_4] : memref<2x128xf32, #tpu.memory_space<vmem>>, vector<2x128xf32>
    %3 = vector.extract_strided_slice %1 {offsets = [0, 0], sizes = [1, 256], strides = [1, 1]} : vector<4x256xf32> to vector<1x256xf32>
    %4 = vector.extract_strided_slice %1 {offsets = [1, 0], sizes = [1, 256], strides = [1, 1]} : vector<4x256xf32> to vector<1x256xf32>
    %c1 = arith.constant 1 : index
    %c0_5 = arith.constant 0 : index
    %c0_6 = arith.constant 0 : index
    %5 = vector.load %arg2[%c1, %c0_5, %c0_6] : memref<3x16x8xf32, #tpu.memory_space<vmem>>, vector<1x16x8xf32>
    %6 = vector.shape_cast %5 : vector<1x16x8xf32> to vector<16x8xf32>
    %cst = arith.constant dense<0.000000e+00> : vector<16x256xf32>
    %7 = tpu.matmul %6, %0, %cst {dimension_numbers = #tpu.dot_dimension_numbers<[1], [0], [0], [1], [0, 0, 1, 1], [], []>} : vector<16x8xf32>, vector<8x256xf32>, vector<16x256xf32> -> vector<16x256xf32>
    %c0_7 = arith.constant 0 : index
    %c0_8 = arith.constant 0 : index
    %8 = vector.load %arg3[%c0_7, %c0_8] : memref<16x1xf32, #tpu.memory_space<vmem>>, vector<16x1xf32>
    %9 = vector.broadcast %8 : vector<16x1xf32> to vector<16x256xf32>
    %10 = arith.addf %7, %9 : vector<16x256xf32>
    %c1_i32 = arith.constant 1 : i32
    %11 = tpu.dynamic_rotate %0 by %c1_i32 dim 1 : vector<8x256xf32>, i32 -> vector<8x256xf32>
    %12 = vector.broadcast %3 : vector<1x256xf32> to vector<8x256xf32>
    %13 = arith.mulf %11, %12 : vector<8x256xf32>
    %c0_9 = arith.constant 0 : index
    %c0_10 = arith.constant 0 : index
    %c0_11 = arith.constant 0 : index
    %14 = vector.load %arg2[%c0_9, %c0_10, %c0_11] : memref<3x16x8xf32, #tpu.memory_space<vmem>>, vector<1x16x8xf32>
    %15 = vector.shape_cast %14 : vector<1x16x8xf32> to vector<16x8xf32>
    %cst_12 = arith.constant dense<0.000000e+00> : vector<16x256xf32>
    %16 = tpu.matmul %15, %13, %cst_12 {dimension_numbers = #tpu.dot_dimension_numbers<[1], [0], [0], [1], [0, 0, 1, 1], [], []>} : vector<16x8xf32>, vector<8x256xf32>, vector<16x256xf32> -> vector<16x256xf32>
    %17 = arith.addf %10, %16 : vector<16x256xf32>
    %c255_i32 = arith.constant 255 : i32
    %18 = tpu.dynamic_rotate %0 by %c255_i32 dim 1 : vector<8x256xf32>, i32 -> vector<8x256xf32>
    %19 = vector.broadcast %4 : vector<1x256xf32> to vector<8x256xf32>
    %20 = arith.mulf %18, %19 : vector<8x256xf32>
    %c2 = arith.constant 2 : index
    %c0_13 = arith.constant 0 : index
    %c0_14 = arith.constant 0 : index
    %21 = vector.load %arg2[%c2, %c0_13, %c0_14] : memref<3x16x8xf32, #tpu.memory_space<vmem>>, vector<1x16x8xf32>
    %22 = vector.shape_cast %21 : vector<1x16x8xf32> to vector<16x8xf32>
    %cst_15 = arith.constant dense<0.000000e+00> : vector<16x256xf32>
    %23 = tpu.matmul %22, %20, %cst_15 {dimension_numbers = #tpu.dot_dimension_numbers<[1], [0], [0], [1], [0, 0, 1, 1], [], []>} : vector<16x8xf32>, vector<8x256xf32>, vector<16x256xf32> -> vector<16x256xf32>
    %24 = arith.addf %17, %23 : vector<16x256xf32>
    %cst_16 = arith.constant 0.000000e+00 : f32
    %25 = vector.broadcast %cst_16 : f32 to vector<16x256xf32>
    %26 = arith.maximumf %24, %25 : vector<16x256xf32>
    %27 = vector.extract_strided_slice %1 {offsets = [2, 0], sizes = [1, 256], strides = [1, 1]} : vector<4x256xf32> to vector<1x256xf32>
    %28 = vector.extract_strided_slice %1 {offsets = [3, 0], sizes = [1, 256], strides = [1, 1]} : vector<4x256xf32> to vector<1x256xf32>
    %c1_17 = arith.constant 1 : index
    %c0_18 = arith.constant 0 : index
    %c0_19 = arith.constant 0 : index
    %29 = vector.load %arg4[%c1_17, %c0_18, %c0_19] : memref<3x16x8xf32, #tpu.memory_space<vmem>>, vector<1x16x8xf32>
    %30 = vector.shape_cast %29 : vector<1x16x8xf32> to vector<16x8xf32>
    %cst_20 = arith.constant dense<0.000000e+00> : vector<16x256xf32>
    %31 = tpu.matmul %30, %0, %cst_20 {dimension_numbers = #tpu.dot_dimension_numbers<[1], [0], [0], [1], [0, 0, 1, 1], [], []>} : vector<16x8xf32>, vector<8x256xf32>, vector<16x256xf32> -> vector<16x256xf32>
    %c0_21 = arith.constant 0 : index
    %c0_22 = arith.constant 0 : index
    %32 = vector.load %arg5[%c0_21, %c0_22] : memref<16x1xf32, #tpu.memory_space<vmem>>, vector<16x1xf32>
    %33 = vector.broadcast %32 : vector<16x1xf32> to vector<16x256xf32>
    %34 = arith.addf %31, %33 : vector<16x256xf32>
    %c2_i32 = arith.constant 2 : i32
    %35 = tpu.dynamic_rotate %0 by %c2_i32 dim 1 : vector<8x256xf32>, i32 -> vector<8x256xf32>
    %36 = vector.broadcast %27 : vector<1x256xf32> to vector<8x256xf32>
    %37 = arith.mulf %35, %36 : vector<8x256xf32>
    %c0_23 = arith.constant 0 : index
    %c0_24 = arith.constant 0 : index
    %c0_25 = arith.constant 0 : index
    %38 = vector.load %arg4[%c0_23, %c0_24, %c0_25] : memref<3x16x8xf32, #tpu.memory_space<vmem>>, vector<1x16x8xf32>
    %39 = vector.shape_cast %38 : vector<1x16x8xf32> to vector<16x8xf32>
    %cst_26 = arith.constant dense<0.000000e+00> : vector<16x256xf32>
    %40 = tpu.matmul %39, %37, %cst_26 {dimension_numbers = #tpu.dot_dimension_numbers<[1], [0], [0], [1], [0, 0, 1, 1], [], []>} : vector<16x8xf32>, vector<8x256xf32>, vector<16x256xf32> -> vector<16x256xf32>
    %41 = arith.addf %34, %40 : vector<16x256xf32>
    %c254_i32 = arith.constant 254 : i32
    %42 = tpu.dynamic_rotate %0 by %c254_i32 dim 1 : vector<8x256xf32>, i32 -> vector<8x256xf32>
    %43 = vector.broadcast %28 : vector<1x256xf32> to vector<8x256xf32>
    %44 = arith.mulf %42, %43 : vector<8x256xf32>
    %c2_27 = arith.constant 2 : index
    %c0_28 = arith.constant 0 : index
    %c0_29 = arith.constant 0 : index
    %45 = vector.load %arg4[%c2_27, %c0_28, %c0_29] : memref<3x16x8xf32, #tpu.memory_space<vmem>>, vector<1x16x8xf32>
    %46 = vector.shape_cast %45 : vector<1x16x8xf32> to vector<16x8xf32>
    %cst_30 = arith.constant dense<0.000000e+00> : vector<16x256xf32>
    %47 = tpu.matmul %46, %44, %cst_30 {dimension_numbers = #tpu.dot_dimension_numbers<[1], [0], [0], [1], [0, 0, 1, 1], [], []>} : vector<16x8xf32>, vector<8x256xf32>, vector<16x256xf32> -> vector<16x256xf32>
    %48 = arith.addf %41, %47 : vector<16x256xf32>
    %cst_31 = arith.constant 0.000000e+00 : f32
    %49 = vector.broadcast %cst_31 : f32 to vector<16x256xf32>
    %50 = arith.maximumf %48, %49 : vector<16x256xf32>
    %51 = tpu.concatenate %26, %50 in 0 : vector<16x256xf32>, vector<16x256xf32> -> vector<32x256xf32>
    %c0_32 = arith.constant 0 : index
    %c0_33 = arith.constant 0 : index
    %52 = vector.load %arg6[%c0_32, %c0_33] : memref<256x512xf32, #tpu.memory_space<vmem>>, vector<256x512xf32>
    %cst_34 = arith.constant dense<0.000000e+00> : vector<32x512xf32>
    %53 = tpu.matmul %51, %52, %cst_34 {dimension_numbers = #tpu.dot_dimension_numbers<[1], [0], [0], [1], [0, 0, 1, 1], [], []>} : vector<32x256xf32>, vector<256x512xf32>, vector<32x512xf32> -> vector<32x512xf32>
    %54 = vector.extract_strided_slice %53 {offsets = [0, 0], sizes = [32, 128], strides = [1, 1]} : vector<32x512xf32> to vector<32x128xf32>
    %55 = vector.extract_strided_slice %53 {offsets = [0, 128], sizes = [32, 128], strides = [1, 1]} : vector<32x512xf32> to vector<32x128xf32>
    %56 = vector.extract_strided_slice %53 {offsets = [0, 256], sizes = [32, 128], strides = [1, 1]} : vector<32x512xf32> to vector<32x128xf32>
    %57 = vector.extract_strided_slice %53 {offsets = [0, 384], sizes = [32, 128], strides = [1, 1]} : vector<32x512xf32> to vector<32x128xf32>
    %58 = arith.mulf %54, %54 : vector<32x128xf32>
    %59 = arith.mulf %55, %55 : vector<32x128xf32>
    %60 = arith.addf %58, %59 : vector<32x128xf32>
    %61 = math.sqrt %60 : vector<32x128xf32>
    %62 = tpu.concatenate %56, %57, %61 in 0 : vector<32x128xf32>, vector<32x128xf32>, vector<32x128xf32> -> vector<96x128xf32>
    %63 = vector.extract_strided_slice %2 {offsets = [0, 0], sizes = [1, 128], strides = [1, 1]} : vector<2x128xf32> to vector<1x128xf32>
    %64 = vector.extract_strided_slice %2 {offsets = [1, 0], sizes = [1, 128], strides = [1, 1]} : vector<2x128xf32> to vector<1x128xf32>
    %c1_35 = arith.constant 1 : index
    %c0_36 = arith.constant 0 : index
    %c0_37 = arith.constant 0 : index
    %65 = vector.load %arg7[%c1_35, %c0_36, %c0_37] : memref<3x16x96xf32, #tpu.memory_space<vmem>>, vector<1x16x96xf32>
    %66 = vector.shape_cast %65 : vector<1x16x96xf32> to vector<16x96xf32>
    %cst_38 = arith.constant dense<0.000000e+00> : vector<16x128xf32>
    %67 = tpu.matmul %66, %62, %cst_38 {dimension_numbers = #tpu.dot_dimension_numbers<[1], [0], [0], [1], [0, 0, 1, 1], [], []>} : vector<16x96xf32>, vector<96x128xf32>, vector<16x128xf32> -> vector<16x128xf32>
    %c0_39 = arith.constant 0 : index
    %c0_40 = arith.constant 0 : index
    %68 = vector.load %arg8[%c0_39, %c0_40] : memref<16x1xf32, #tpu.memory_space<vmem>>, vector<16x1xf32>
    %69 = vector.broadcast %68 : vector<16x1xf32> to vector<16x128xf32>
    %70 = arith.addf %67, %69 : vector<16x128xf32>
    %c1_i32_41 = arith.constant 1 : i32
    %71 = tpu.dynamic_rotate %62 by %c1_i32_41 dim 1 : vector<96x128xf32>, i32 -> vector<96x128xf32>
    %72 = vector.broadcast %63 : vector<1x128xf32> to vector<96x128xf32>
    %73 = arith.mulf %71, %72 : vector<96x128xf32>
    %c0_42 = arith.constant 0 : index
    %c0_43 = arith.constant 0 : index
    %c0_44 = arith.constant 0 : index
    %74 = vector.load %arg7[%c0_42, %c0_43, %c0_44] : memref<3x16x96xf32, #tpu.memory_space<vmem>>, vector<1x16x96xf32>
    %75 = vector.shape_cast %74 : vector<1x16x96xf32> to vector<16x96xf32>
    %cst_45 = arith.constant dense<0.000000e+00> : vector<16x128xf32>
    %76 = tpu.matmul %75, %73, %cst_45 {dimension_numbers = #tpu.dot_dimension_numbers<[1], [0], [0], [1], [0, 0, 1, 1], [], []>} : vector<16x96xf32>, vector<96x128xf32>, vector<16x128xf32> -> vector<16x128xf32>
    %77 = arith.addf %70, %76 : vector<16x128xf32>
    %c127_i32 = arith.constant 127 : i32
    %78 = tpu.dynamic_rotate %62 by %c127_i32 dim 1 : vector<96x128xf32>, i32 -> vector<96x128xf32>
    %79 = vector.broadcast %64 : vector<1x128xf32> to vector<96x128xf32>
    %80 = arith.mulf %78, %79 : vector<96x128xf32>
    %c2_46 = arith.constant 2 : index
    %c0_47 = arith.constant 0 : index
    %c0_48 = arith.constant 0 : index
    %81 = vector.load %arg7[%c2_46, %c0_47, %c0_48] : memref<3x16x96xf32, #tpu.memory_space<vmem>>, vector<1x16x96xf32>
    %82 = vector.shape_cast %81 : vector<1x16x96xf32> to vector<16x96xf32>
    %cst_49 = arith.constant dense<0.000000e+00> : vector<16x128xf32>
    %83 = tpu.matmul %82, %80, %cst_49 {dimension_numbers = #tpu.dot_dimension_numbers<[1], [0], [0], [1], [0, 0, 1, 1], [], []>} : vector<16x96xf32>, vector<96x128xf32>, vector<16x128xf32> -> vector<16x128xf32>
    %84 = arith.addf %77, %83 : vector<16x128xf32>
    %cst_50 = arith.constant 0.000000e+00 : f32
    %85 = vector.broadcast %cst_50 : f32 to vector<16x128xf32>
    %86 = arith.maximumf %84, %85 : vector<16x128xf32>
    %c0_51 = arith.constant 0 : index
    %c0_52 = arith.constant 0 : index
    %87 = vector.load %arg9[%c0_51, %c0_52] : memref<16x1xf32, #tpu.memory_space<vmem>>, vector<16x1xf32>
    %88 = vector.broadcast %87 : vector<16x1xf32> to vector<16x128xf32>
    %89 = arith.mulf %86, %88 : vector<16x128xf32>
    %c0_53 = arith.constant 0 : index
    %c0_54 = arith.constant 0 : index
    %90 = vector.load %arg10[%c0_53, %c0_54] : memref<16x1xf32, #tpu.memory_space<vmem>>, vector<16x1xf32>
    %91 = vector.broadcast %90 : vector<16x1xf32> to vector<16x128xf32>
    %92 = arith.addf %89, %91 : vector<16x128xf32>
    %93 = vector.extract_strided_slice %2 {offsets = [0, 0], sizes = [1, 128], strides = [1, 1]} : vector<2x128xf32> to vector<1x128xf32>
    %94 = vector.extract_strided_slice %2 {offsets = [1, 0], sizes = [1, 128], strides = [1, 1]} : vector<2x128xf32> to vector<1x128xf32>
    %c1_55 = arith.constant 1 : index
    %c0_56 = arith.constant 0 : index
    %c0_57 = arith.constant 0 : index
    %95 = vector.load %arg11[%c1_55, %c0_56, %c0_57] : memref<3x8x16xf32, #tpu.memory_space<vmem>>, vector<1x8x16xf32>
    %96 = vector.shape_cast %95 : vector<1x8x16xf32> to vector<8x16xf32>
    %cst_58 = arith.constant dense<0.000000e+00> : vector<8x128xf32>
    %97 = tpu.matmul %96, %92, %cst_58 {dimension_numbers = #tpu.dot_dimension_numbers<[1], [0], [0], [1], [0, 0, 1, 1], [], []>} : vector<8x16xf32>, vector<16x128xf32>, vector<8x128xf32> -> vector<8x128xf32>
    %c0_59 = arith.constant 0 : index
    %c0_60 = arith.constant 0 : index
    %98 = vector.load %arg12[%c0_59, %c0_60] : memref<8x1xf32, #tpu.memory_space<vmem>>, vector<8x1xf32>
    %99 = vector.broadcast %98 : vector<8x1xf32> to vector<8x128xf32>
    %100 = arith.addf %97, %99 : vector<8x128xf32>
    %c1_i32_61 = arith.constant 1 : i32
    %101 = tpu.dynamic_rotate %92 by %c1_i32_61 dim 1 : vector<16x128xf32>, i32 -> vector<16x128xf32>
    %102 = vector.broadcast %93 : vector<1x128xf32> to vector<16x128xf32>
    %103 = arith.mulf %101, %102 : vector<16x128xf32>
    %c0_62 = arith.constant 0 : index
    %c0_63 = arith.constant 0 : index
    %c0_64 = arith.constant 0 : index
    %104 = vector.load %arg11[%c0_62, %c0_63, %c0_64] : memref<3x8x16xf32, #tpu.memory_space<vmem>>, vector<1x8x16xf32>
    %105 = vector.shape_cast %104 : vector<1x8x16xf32> to vector<8x16xf32>
    %cst_65 = arith.constant dense<0.000000e+00> : vector<8x128xf32>
    %106 = tpu.matmul %105, %103, %cst_65 {dimension_numbers = #tpu.dot_dimension_numbers<[1], [0], [0], [1], [0, 0, 1, 1], [], []>} : vector<8x16xf32>, vector<16x128xf32>, vector<8x128xf32> -> vector<8x128xf32>
    %107 = arith.addf %100, %106 : vector<8x128xf32>
    %c127_i32_66 = arith.constant 127 : i32
    %108 = tpu.dynamic_rotate %92 by %c127_i32_66 dim 1 : vector<16x128xf32>, i32 -> vector<16x128xf32>
    %109 = vector.broadcast %94 : vector<1x128xf32> to vector<16x128xf32>
    %110 = arith.mulf %108, %109 : vector<16x128xf32>
    %c2_67 = arith.constant 2 : index
    %c0_68 = arith.constant 0 : index
    %c0_69 = arith.constant 0 : index
    %111 = vector.load %arg11[%c2_67, %c0_68, %c0_69] : memref<3x8x16xf32, #tpu.memory_space<vmem>>, vector<1x8x16xf32>
    %112 = vector.shape_cast %111 : vector<1x8x16xf32> to vector<8x16xf32>
    %cst_70 = arith.constant dense<0.000000e+00> : vector<8x128xf32>
    %113 = tpu.matmul %112, %110, %cst_70 {dimension_numbers = #tpu.dot_dimension_numbers<[1], [0], [0], [1], [0, 0, 1, 1], [], []>} : vector<8x16xf32>, vector<16x128xf32>, vector<8x128xf32> -> vector<8x128xf32>
    %114 = arith.addf %107, %113 : vector<8x128xf32>
    %cst_71 = arith.constant 0.000000e+00 : f32
    %115 = vector.broadcast %cst_71 : f32 to vector<8x128xf32>
    %116 = arith.maximumf %114, %115 : vector<8x128xf32>
    %117 = vector.extract_strided_slice %2 {offsets = [0, 0], sizes = [1, 128], strides = [1, 1]} : vector<2x128xf32> to vector<1x128xf32>
    %118 = vector.extract_strided_slice %2 {offsets = [1, 0], sizes = [1, 128], strides = [1, 1]} : vector<2x128xf32> to vector<1x128xf32>
    %c1_72 = arith.constant 1 : index
    %c0_73 = arith.constant 0 : index
    %c0_74 = arith.constant 0 : index
    %119 = vector.load %arg13[%c1_72, %c0_73, %c0_74] : memref<3x8x8xf32, #tpu.memory_space<vmem>>, vector<1x8x8xf32>
    %120 = vector.shape_cast %119 : vector<1x8x8xf32> to vector<8x8xf32>
    %cst_75 = arith.constant dense<0.000000e+00> : vector<8x128xf32>
    %121 = tpu.matmul %120, %116, %cst_75 {dimension_numbers = #tpu.dot_dimension_numbers<[1], [0], [0], [1], [0, 0, 1, 1], [], []>} : vector<8x8xf32>, vector<8x128xf32>, vector<8x128xf32> -> vector<8x128xf32>
    %c0_76 = arith.constant 0 : index
    %c0_77 = arith.constant 0 : index
    %122 = vector.load %arg14[%c0_76, %c0_77] : memref<8x1xf32, #tpu.memory_space<vmem>>, vector<8x1xf32>
    %123 = vector.broadcast %122 : vector<8x1xf32> to vector<8x128xf32>
    %124 = arith.addf %121, %123 : vector<8x128xf32>
    %c1_i32_78 = arith.constant 1 : i32
    %125 = tpu.dynamic_rotate %116 by %c1_i32_78 dim 1 : vector<8x128xf32>, i32 -> vector<8x128xf32>
    %126 = vector.broadcast %117 : vector<1x128xf32> to vector<8x128xf32>
    %127 = arith.mulf %125, %126 : vector<8x128xf32>
    %c0_79 = arith.constant 0 : index
    %c0_80 = arith.constant 0 : index
    %c0_81 = arith.constant 0 : index
    %128 = vector.load %arg13[%c0_79, %c0_80, %c0_81] : memref<3x8x8xf32, #tpu.memory_space<vmem>>, vector<1x8x8xf32>
    %129 = vector.shape_cast %128 : vector<1x8x8xf32> to vector<8x8xf32>
    %cst_82 = arith.constant dense<0.000000e+00> : vector<8x128xf32>
    %130 = tpu.matmul %129, %127, %cst_82 {dimension_numbers = #tpu.dot_dimension_numbers<[1], [0], [0], [1], [0, 0, 1, 1], [], []>} : vector<8x8xf32>, vector<8x128xf32>, vector<8x128xf32> -> vector<8x128xf32>
    %131 = arith.addf %124, %130 : vector<8x128xf32>
    %c127_i32_83 = arith.constant 127 : i32
    %132 = tpu.dynamic_rotate %116 by %c127_i32_83 dim 1 : vector<8x128xf32>, i32 -> vector<8x128xf32>
    %133 = vector.broadcast %118 : vector<1x128xf32> to vector<8x128xf32>
    %134 = arith.mulf %132, %133 : vector<8x128xf32>
    %c2_84 = arith.constant 2 : index
    %c0_85 = arith.constant 0 : index
    %c0_86 = arith.constant 0 : index
    %135 = vector.load %arg13[%c2_84, %c0_85, %c0_86] : memref<3x8x8xf32, #tpu.memory_space<vmem>>, vector<1x8x8xf32>
    %136 = vector.shape_cast %135 : vector<1x8x8xf32> to vector<8x8xf32>
    %cst_87 = arith.constant dense<0.000000e+00> : vector<8x128xf32>
    %137 = tpu.matmul %136, %134, %cst_87 {dimension_numbers = #tpu.dot_dimension_numbers<[1], [0], [0], [1], [0, 0, 1, 1], [], []>} : vector<8x8xf32>, vector<8x128xf32>, vector<8x128xf32> -> vector<8x128xf32>
    %138 = arith.addf %131, %137 : vector<8x128xf32>
    %cst_88 = arith.constant 0.000000e+00 : f32
    %139 = vector.broadcast %cst_88 : f32 to vector<8x128xf32>
    %140 = arith.maximumf %138, %139 : vector<8x128xf32>
    %c0_89 = arith.constant 0 : index
    %c0_90 = arith.constant 0 : index
    %141 = vector.load %arg15[%c0_89, %c0_90] : memref<16x8xf32, #tpu.memory_space<vmem>>, vector<16x8xf32>
    %cst_91 = arith.constant dense<0.000000e+00> : vector<16x128xf32>
    %142 = tpu.matmul %141, %140, %cst_91 {dimension_numbers = #tpu.dot_dimension_numbers<[1], [0], [0], [1], [0, 0, 1, 1], [], []>} : vector<16x8xf32>, vector<8x128xf32>, vector<16x128xf32> -> vector<16x128xf32>
    %c0_92 = arith.constant 0 : index
    %c0_93 = arith.constant 0 : index
    %143 = vector.load %arg16[%c0_92, %c0_93] : memref<16x1xf32, #tpu.memory_space<vmem>>, vector<16x1xf32>
    %144 = vector.broadcast %143 : vector<16x1xf32> to vector<16x128xf32>
    %145 = arith.addf %142, %144 : vector<16x128xf32>
    %c0_94 = arith.constant 0 : index
    %c0_95 = arith.constant 0 : index
    %146 = vector.load %arg17[%c0_94, %c0_95] : memref<2x16xf32, #tpu.memory_space<vmem>>, vector<2x16xf32>
    %cst_96 = arith.constant dense<0.000000e+00> : vector<2x128xf32>
    %147 = tpu.matmul %146, %145, %cst_96 {dimension_numbers = #tpu.dot_dimension_numbers<[1], [0], [0], [1], [0, 0, 1, 1], [], []>} : vector<2x16xf32>, vector<16x128xf32>, vector<2x128xf32> -> vector<2x128xf32>
    %c0_97 = arith.constant 0 : index
    %c0_98 = arith.constant 0 : index
    %148 = vector.load %arg18[%c0_97, %c0_98] : memref<2x1xf32, #tpu.memory_space<vmem>>, vector<2x1xf32>
    %149 = vector.broadcast %148 : vector<2x1xf32> to vector<2x128xf32>
    %150 = arith.addf %147, %149 : vector<2x128xf32>
    %cst_99 = arith.constant 0.000000e+00 : f32
    %151 = vector.broadcast %cst_99 : f32 to vector<2x128xf32>
    %152 = arith.maximumf %150, %151 : vector<2x128xf32>
    %c0_100 = arith.constant 0 : index
    %c0_101 = arith.constant 0 : index
    %153 = vector.load %arg19[%c0_100, %c0_101] : memref<16x2xf32, #tpu.memory_space<vmem>>, vector<16x2xf32>
    %cst_102 = arith.constant dense<0.000000e+00> : vector<16x128xf32>
    %154 = tpu.matmul %153, %152, %cst_102 {dimension_numbers = #tpu.dot_dimension_numbers<[1], [0], [0], [1], [0, 0, 1, 1], [], []>} : vector<16x2xf32>, vector<2x128xf32>, vector<16x128xf32> -> vector<16x128xf32>
    %c0_103 = arith.constant 0 : index
    %c0_104 = arith.constant 0 : index
    %155 = vector.load %arg20[%c0_103, %c0_104] : memref<16x1xf32, #tpu.memory_space<vmem>>, vector<16x1xf32>
    %156 = vector.broadcast %155 : vector<16x1xf32> to vector<16x128xf32>
    %157 = arith.addf %154, %156 : vector<16x128xf32>
    %cst_105 = arith.constant 0.000000e+00 : f32
    %158 = vector.broadcast %cst_105 : f32 to vector<16x128xf32>
    %159 = arith.subf %158, %157 : vector<16x128xf32>
    %160 = math.exp %159 : vector<16x128xf32>
    %cst_106 = arith.constant 1.000000e+00 : f32
    %161 = vector.broadcast %cst_106 : f32 to vector<16x128xf32>
    %162 = arith.addf %161, %160 : vector<16x128xf32>
    %163 = tpu.reciprocal %162 {approx = true} : vector<16x128xf32> -> vector<16x128xf32>
    %164 = arith.mulf %145, %163 : vector<16x128xf32>
    %165 = vector.extract_strided_slice %2 {offsets = [0, 0], sizes = [1, 128], strides = [1, 1]} : vector<2x128xf32> to vector<1x128xf32>
    %166 = vector.extract_strided_slice %2 {offsets = [1, 0], sizes = [1, 128], strides = [1, 1]} : vector<2x128xf32> to vector<1x128xf32>
    %c1_107 = arith.constant 1 : index
    %c0_108 = arith.constant 0 : index
    %c0_109 = arith.constant 0 : index
    %167 = vector.load %arg21[%c1_107, %c0_108, %c0_109] : memref<3x16x16xf32, #tpu.memory_space<vmem>>, vector<1x16x16xf32>
    %168 = vector.shape_cast %167 : vector<1x16x16xf32> to vector<16x16xf32>
    %cst_110 = arith.constant dense<0.000000e+00> : vector<16x128xf32>
    %169 = tpu.matmul %168, %164, %cst_110 {dimension_numbers = #tpu.dot_dimension_numbers<[1], [0], [0], [1], [0, 0, 1, 1], [], []>} : vector<16x16xf32>, vector<16x128xf32>, vector<16x128xf32> -> vector<16x128xf32>
    %c0_111 = arith.constant 0 : index
    %c0_112 = arith.constant 0 : index
    %170 = vector.load %arg22[%c0_111, %c0_112] : memref<16x1xf32, #tpu.memory_space<vmem>>, vector<16x1xf32>
    %171 = vector.broadcast %170 : vector<16x1xf32> to vector<16x128xf32>
    %172 = arith.addf %169, %171 : vector<16x128xf32>
    %c1_i32_113 = arith.constant 1 : i32
    %173 = tpu.dynamic_rotate %164 by %c1_i32_113 dim 1 : vector<16x128xf32>, i32 -> vector<16x128xf32>
    %174 = vector.broadcast %165 : vector<1x128xf32> to vector<16x128xf32>
    %175 = arith.mulf %173, %174 : vector<16x128xf32>
    %c0_114 = arith.constant 0 : index
    %c0_115 = arith.constant 0 : index
    %c0_116 = arith.constant 0 : index
    %176 = vector.load %arg21[%c0_114, %c0_115, %c0_116] : memref<3x16x16xf32, #tpu.memory_space<vmem>>, vector<1x16x16xf32>
    %177 = vector.shape_cast %176 : vector<1x16x16xf32> to vector<16x16xf32>
    %cst_117 = arith.constant dense<0.000000e+00> : vector<16x128xf32>
    %178 = tpu.matmul %177, %175, %cst_117 {dimension_numbers = #tpu.dot_dimension_numbers<[1], [0], [0], [1], [0, 0, 1, 1], [], []>} : vector<16x16xf32>, vector<16x128xf32>, vector<16x128xf32> -> vector<16x128xf32>
    %179 = arith.addf %172, %178 : vector<16x128xf32>
    %c127_i32_118 = arith.constant 127 : i32
    %180 = tpu.dynamic_rotate %164 by %c127_i32_118 dim 1 : vector<16x128xf32>, i32 -> vector<16x128xf32>
    %181 = vector.broadcast %166 : vector<1x128xf32> to vector<16x128xf32>
    %182 = arith.mulf %180, %181 : vector<16x128xf32>
    %c2_119 = arith.constant 2 : index
    %c0_120 = arith.constant 0 : index
    %c0_121 = arith.constant 0 : index
    %183 = vector.load %arg21[%c2_119, %c0_120, %c0_121] : memref<3x16x16xf32, #tpu.memory_space<vmem>>, vector<1x16x16xf32>
    %184 = vector.shape_cast %183 : vector<1x16x16xf32> to vector<16x16xf32>
    %cst_122 = arith.constant dense<0.000000e+00> : vector<16x128xf32>
    %185 = tpu.matmul %184, %182, %cst_122 {dimension_numbers = #tpu.dot_dimension_numbers<[1], [0], [0], [1], [0, 0, 1, 1], [], []>} : vector<16x16xf32>, vector<16x128xf32>, vector<16x128xf32> -> vector<16x128xf32>
    %186 = arith.addf %179, %185 : vector<16x128xf32>
    %187 = arith.addf %186, %164 : vector<16x128xf32>
    %c0_123 = arith.constant 0 : index
    %c0_124 = arith.constant 0 : index
    %188 = vector.load %arg23[%c0_123, %c0_124] : memref<8x16xf32, #tpu.memory_space<vmem>>, vector<8x16xf32>
    %cst_125 = arith.constant dense<0.000000e+00> : vector<8x128xf32>
    %189 = tpu.matmul %188, %187, %cst_125 {dimension_numbers = #tpu.dot_dimension_numbers<[1], [0], [0], [1], [0, 0, 1, 1], [], []>} : vector<8x16xf32>, vector<16x128xf32>, vector<8x128xf32> -> vector<8x128xf32>
    %c0_126 = arith.constant 0 : index
    %c0_127 = arith.constant 0 : index
    %190 = vector.load %arg24[%c0_126, %c0_127] : memref<8x1xf32, #tpu.memory_space<vmem>>, vector<8x1xf32>
    %191 = vector.broadcast %190 : vector<8x1xf32> to vector<8x128xf32>
    %192 = arith.addf %189, %191 : vector<8x128xf32>
    %c0_128 = arith.constant 0 : index
    %c0_129 = arith.constant 0 : index
    %193 = vector.load %arg25[%c0_128, %c0_129] : memref<128x256xf32, #tpu.memory_space<vmem>>, vector<128x256xf32>
    %cst_130 = arith.constant dense<0.000000e+00> : vector<8x256xf32>
    %194 = tpu.matmul %192, %193, %cst_130 {dimension_numbers = #tpu.dot_dimension_numbers<[1], [0], [0], [1], [0, 0, 1, 1], [], []>} : vector<8x128xf32>, vector<128x256xf32>, vector<8x256xf32> -> vector<8x256xf32>
    %c0_131 = arith.constant 0 : index
    %c0_132 = arith.constant 0 : index
    %195 = vector.load %arg28[%c0_131, %c0_132] : memref<8x256xf32, #tpu.memory_space<vmem>>, vector<8x256xf32>
    tpu.vector_store %arg28[%c0_131, %c0_132], %194 {strides = array<i32>} : memref<8x256xf32, #tpu.memory_space<vmem>>, vector<8x256xf32>,
    return
  }
  func.func @transform_0(%arg0: i32) -> (i32, i32) {
    %c0_i32 = arith.constant 0 : i32
    %c0_i32_0 = arith.constant 0 : i32
    return %c0_i32, %arg0 : i32, i32
  }
  func.func @transform_1(%arg0: i32) -> (i32, i32, i32) {
    %c0_i32 = arith.constant 0 : i32
    %c0_i32_0 = arith.constant 0 : i32
    %c0_i32_1 = arith.constant 0 : i32
    %c0_i32_2 = arith.constant 0 : i32
    return %c0_i32, %c0_i32_0, %c0_i32_1 : i32, i32, i32
  }
  func.func @transform_2(%arg0: i32) -> (i32, i32) {
    %c0_i32 = arith.constant 0 : i32
    %c0_i32_0 = arith.constant 0 : i32
    %c0_i32_1 = arith.constant 0 : i32
    return %c0_i32, %c0_i32_0 : i32, i32
  }
  func.func @transform_3(%arg0: i32) -> (i32, i32, i32) {
    %c0_i32 = arith.constant 0 : i32
    %c0_i32_0 = arith.constant 0 : i32
    %c0_i32_1 = arith.constant 0 : i32
    %c0_i32_2 = arith.constant 0 : i32
    return %c0_i32, %c0_i32_0, %c0_i32_1 : i32, i32, i32
  }
  func.func @transform_4(%arg0: i32) -> (i32, i32) {
    %c0_i32 = arith.constant 0 : i32
    %c0_i32_0 = arith.constant 0 : i32
    %c0_i32_1 = arith.constant 0 : i32
    return %c0_i32, %c0_i32_0 : i32, i32
  }
  func.func @transform_5(%arg0: i32) -> (i32, i32) {
    %c0_i32 = arith.constant 0 : i32
    %c0_i32_0 = arith.constant 0 : i32
    %c0_i32_1 = arith.constant 0 : i32
    return %c0_i32, %c0_i32_0 : i32, i32
  }
  func.func @transform_6(%arg0: i32) -> (i32, i32, i32) {
    %c0_i32 = arith.constant 0 : i32
    %c0_i32_0 = arith.constant 0 : i32
    %c0_i32_1 = arith.constant 0 : i32
    %c0_i32_2 = arith.constant 0 : i32
    return %c0_i32, %c0_i32_0, %c0_i32_1 : i32, i32, i32
  }
  func.func @transform_7(%arg0: i32) -> (i32, i32) {
    %c0_i32 = arith.constant 0 : i32
    %c0_i32_0 = arith.constant 0 : i32
    %c0_i32_1 = arith.constant 0 : i32
    return %c0_i32, %c0_i32_0 : i32, i32
  }
  func.func @transform_8(%arg0: i32) -> (i32, i32) {
    %c0_i32 = arith.constant 0 : i32
    %c0_i32_0 = arith.constant 0 : i32
    %c0_i32_1 = arith.constant 0 : i32
    return %c0_i32, %c0_i32_0 : i32, i32
  }
  func.func @transform_9(%arg0: i32) -> (i32, i32) {
    %c0_i32 = arith.constant 0 : i32
    %c0_i32_0 = arith.constant 0 : i32
    %c0_i32_1 = arith.constant 0 : i32
    return %c0_i32, %c0_i32_0 : i32, i32
  }
  func.func @transform_10(%arg0: i32) -> (i32, i32, i32) {
    %c0_i32 = arith.constant 0 : i32
    %c0_i32_0 = arith.constant 0 : i32
    %c0_i32_1 = arith.constant 0 : i32
    %c0_i32_2 = arith.constant 0 : i32
    return %c0_i32, %c0_i32_0, %c0_i32_1 : i32, i32, i32
  }
  func.func @transform_11(%arg0: i32) -> (i32, i32) {
    %c0_i32 = arith.constant 0 : i32
    %c0_i32_0 = arith.constant 0 : i32
    %c0_i32_1 = arith.constant 0 : i32
    return %c0_i32, %c0_i32_0 : i32, i32
  }
  func.func @transform_12(%arg0: i32) -> (i32, i32, i32) {
    %c0_i32 = arith.constant 0 : i32
    %c0_i32_0 = arith.constant 0 : i32
    %c0_i32_1 = arith.constant 0 : i32
    %c0_i32_2 = arith.constant 0 : i32
    return %c0_i32, %c0_i32_0, %c0_i32_1 : i32, i32, i32
  }
  func.func @transform_13(%arg0: i32) -> (i32, i32) {
    %c0_i32 = arith.constant 0 : i32
    %c0_i32_0 = arith.constant 0 : i32
    %c0_i32_1 = arith.constant 0 : i32
    return %c0_i32, %c0_i32_0 : i32, i32
  }
  func.func @transform_14(%arg0: i32) -> (i32, i32) {
    %c0_i32 = arith.constant 0 : i32
    %c0_i32_0 = arith.constant 0 : i32
    %c0_i32_1 = arith.constant 0 : i32
    return %c0_i32, %c0_i32_0 : i32, i32
  }
  func.func @transform_15(%arg0: i32) -> (i32, i32) {
    %c0_i32 = arith.constant 0 : i32
    %c0_i32_0 = arith.constant 0 : i32
    %c0_i32_1 = arith.constant 0 : i32
    return %c0_i32, %c0_i32_0 : i32, i32
  }
  func.func @transform_16(%arg0: i32) -> (i32, i32) {
    %c0_i32 = arith.constant 0 : i32
    %c0_i32_0 = arith.constant 0 : i32
    %c0_i32_1 = arith.constant 0 : i32
    return %c0_i32, %c0_i32_0 : i32, i32
  }
  func.func @transform_17(%arg0: i32) -> (i32, i32) {
    %c0_i32 = arith.constant 0 : i32
    %c0_i32_0 = arith.constant 0 : i32
    %c0_i32_1 = arith.constant 0 : i32
    return %c0_i32, %c0_i32_0 : i32, i32
  }
  func.func @transform_18(%arg0: i32) -> (i32, i32) {
    %c0_i32 = arith.constant 0 : i32
    %c0_i32_0 = arith.constant 0 : i32
    %c0_i32_1 = arith.constant 0 : i32
    return %c0_i32, %c0_i32_0 : i32, i32
  }
  func.func @transform_19(%arg0: i32) -> (i32, i32) {
    %c0_i32 = arith.constant 0 : i32
    %c0_i32_0 = arith.constant 0 : i32
    %c0_i32_1 = arith.constant 0 : i32
    return %c0_i32, %c0_i32_0 : i32, i32
  }
  func.func @transform_20(%arg0: i32) -> (i32, i32, i32) {
    %c0_i32 = arith.constant 0 : i32
    %c0_i32_0 = arith.constant 0 : i32
    %c0_i32_1 = arith.constant 0 : i32
    %c0_i32_2 = arith.constant 0 : i32
    return %c0_i32, %c0_i32_0, %c0_i32_1 : i32, i32, i32
  }
  func.func @transform_21(%arg0: i32) -> (i32, i32) {
    %c0_i32 = arith.constant 0 : i32
    %c0_i32_0 = arith.constant 0 : i32
    %c0_i32_1 = arith.constant 0 : i32
    return %c0_i32, %c0_i32_0 : i32, i32
  }
  func.func @transform_22(%arg0: i32) -> (i32, i32) {
    %c0_i32 = arith.constant 0 : i32
    %c0_i32_0 = arith.constant 0 : i32
    %c0_i32_1 = arith.constant 0 : i32
    return %c0_i32, %c0_i32_0 : i32, i32
  }
  func.func @transform_23(%arg0: i32) -> (i32, i32) {
    %c0_i32 = arith.constant 0 : i32
    %c0_i32_0 = arith.constant 0 : i32
    %c0_i32_1 = arith.constant 0 : i32
    return %c0_i32, %c0_i32_0 : i32, i32
  }
  func.func @transform_24(%arg0: i32) -> (i32, i32) {
    %c0_i32 = arith.constant 0 : i32
    %c0_i32_0 = arith.constant 0 : i32
    %c0_i32_1 = arith.constant 0 : i32
    return %c0_i32, %c0_i32_0 : i32, i32
  }
  func.func @transform_25(%arg0: i32) -> (i32, i32) {
    %c0_i32 = arith.constant 0 : i32
    %c0_i32_0 = arith.constant 0 : i32
    %c0_i32_1 = arith.constant 0 : i32
    return %c0_i32, %c0_i32_0 : i32, i32
  }
  func.func @transform_26(%arg0: i32) -> (i32, i32) {
    %c0_i32 = arith.constant 0 : i32
    %c0_i32_0 = arith.constant 0 : i32
    %c0_i32_1 = arith.constant 0 : i32
    return %c0_i32, %c0_i32_0 : i32, i32
  }
  func.func @transform_27(%arg0: i32) -> (i32, i32) {
    %c0_i32 = arith.constant 0 : i32
    %c0_i32_0 = arith.constant 0 : i32
    return %c0_i32, %arg0 : i32, i32
  }
}

</mosaic_0001>

<llo_original>
// kernel: tpu_custom_call.1
$region0: #{tpu_custom_call.1}
  #allocation0 [shape = 'u32[]', space=smem, size = 0x4, offset = 0x4, fixed_abs, tag = 'smem constant byte address 0x4 - core index']
  #allocation1 [shape = 'u32[144,128]{1,0:T(1,128)}', space=vmem, size = 0x12000, scoped, tag = 'internal scratch']
  %s0 = inlined_call_operand.vmem [shape: f32[8,512], index: 0, kind: input, shape index: {}]
  %s1 = inlined_call_operand.vmem [shape: f32[3,16,8], index: 1, kind: input, shape index: {}]
  %s2 = inlined_call_operand.vmem [shape: f32[16,1], index: 2, kind: input, shape index: {}]
  %s3 = inlined_call_operand.vmem [shape: f32[3,16,8], index: 3, kind: input, shape index: {}]
  %s4 = inlined_call_operand.vmem [shape: f32[16,1], index: 4, kind: input, shape index: {}]
  %s5 = inlined_call_operand.hbm [shape: f32[256,512], index: 5, kind: input, shape index: {}]
  %s6 = inlined_call_operand.vmem [shape: f32[3,16,96], index: 6, kind: input, shape index: {}]
  %s7 = inlined_call_operand.vmem [shape: f32[16,1], index: 7, kind: input, shape index: {}]
  %s8 = inlined_call_operand.vmem [shape: f32[16,1], index: 8, kind: input, shape index: {}]
  %s9 = inlined_call_operand.vmem [shape: f32[16,1], index: 9, kind: input, shape index: {}]
  %s10 = inlined_call_operand.vmem [shape: f32[3,8,16], index: 10, kind: input, shape index: {}]
  %s11 = inlined_call_operand.vmem [shape: f32[8,1], index: 11, kind: input, shape index: {}]
  %s12 = inlined_call_operand.vmem [shape: f32[3,8,8], index: 12, kind: input, shape index: {}]
  %s13 = inlined_call_operand.vmem [shape: f32[8,1], index: 13, kind: input, shape index: {}]
  %s14 = inlined_call_operand.vmem [shape: f32[16,8], index: 14, kind: input, shape index: {}]
  %s15 = inlined_call_operand.vmem [shape: f32[16,1], index: 15, kind: input, shape index: {}]
  %s16 = inlined_call_operand.vmem [shape: f32[2,16], index: 16, kind: input, shape index: {}]
  %s17 = inlined_call_operand.vmem [shape: f32[2,1], index: 17, kind: input, shape index: {}]
  %s18 = inlined_call_operand.vmem [shape: f32[16,2], index: 18, kind: input, shape index: {}]
  %s19 = inlined_call_operand.vmem [shape: f32[16,1], index: 19, kind: input, shape index: {}]
  %s20 = inlined_call_operand.vmem [shape: f32[3,16,16], index: 20, kind: input, shape index: {}]
  %s21 = inlined_call_operand.vmem [shape: f32[16,1], index: 21, kind: input, shape index: {}]
  %s22 = inlined_call_operand.vmem [shape: f32[8,16], index: 22, kind: input, shape index: {}]
  %s23 = inlined_call_operand.vmem [shape: f32[8,1], index: 23, kind: input, shape index: {}]
  %s24 = inlined_call_operand.vmem [shape: f32[128,256], index: 24, kind: input, shape index: {}]
  %s25 = inlined_call_operand.hbm [shape: f32[4,256], index: 25, kind: input, shape index: {}]
  %s26 = inlined_call_operand.vmem [shape: f32[2,128], index: 26, kind: input, shape index: {}]
  %s27 = inlined_call_operand.hbm [shape: f32[8,512], index: 27, kind: output, shape index: {}]
  %s28 = sld [smem:[#allocation0]]
  $region149: #{tpu_custom_call.1} parent=0
    _
  %s30 = ssub.s32 1, %s28
  %s31 = scalar_select 0, %s30, %s28
  $region1: #{tpu_custom_call.1} parent=0
    #allocation2 [shape = 'u8[524288]{0}', space=vmem, size = 0x80000, scoped, tag = 'input window, operand 5, single buffered']
    #allocation3 [shape = 's32[2]{0}', space=sflag, size = 0x8, scoped, tag = 'scoped memory for tpu_custom_call.1']
    #allocation4 [shape = 's32[2]{0}', space=sflag, size = 0x8, scoped, tag = 'scoped memory for tpu_custom_call.1']
    #allocation5 [shape = 'u8[4096]{0}', space=vmem, size = 0x1000, scoped, tag = 'input window, operand 25, single buffered']
    #allocation6 [shape = 's32[1]{0}', space=sflag, size = 0x4, scoped, tag = 'scoped memory for tpu_custom_call.1']
    #allocation7 [shape = 'u8[16384]{0}', space=vmem, size = 0x4000, scoped, tag = 'output window, operand 0']
    %32 = vsyncpa [#allocation3], 0
    %33 = vsyncpa [#allocation6], 0
    %34 = vsyncpa [#allocation4], 0
    %s35 = scalar_lea.sflag [#allocation4], 1
    %36 = vsyncpa %s35, 0
    loop: start=0, step=1, limit=4
    $region2: #{tpu_custom_call.1} parent=1 // loop_pre_header
      _
    $region3: #{tpu_custom_call.1} parent=1 // loop_header
      %s38 = sphi 0, %s42
      %p39 = scmp.ge.s32.totalorder %s38, 4
      %s48 = sphi 0, %s50
      %s51 = sphi 0, %s48
      %s52 = sphi 0, %s51
      %s68 = sphi 0, %s52
      %s72 = sphi 0, %s72
      %s74 = sphi 0, %s72
      %s75 = sphi 0, %s74
      %s89 = sphi 0, %s75
      %s93 = sphi 0, %s93
      %s95 = sphi 0, %s93
      %s96 = sphi 0, %s95
      %s110 = sphi 0, %s96
      %s114 = sphi 0, %s114
      %s116 = sphi 0, %s114
      %s117 = sphi 0, %s116
      %s131 = sphi 0, %s117
      %s135 = sphi 0, %s135
      %s137 = sphi 0, %s135
      %s138 = sphi 0, %s137
      %s152 = sphi 0, %s138
      %s156 = sphi 0, %s156
      %s158 = sphi 0, %s156
      %s159 = sphi 0, %s158
      %s173 = sphi 0, %s159
      %s177 = sphi 0, %s177
      %s179 = sphi 0, %s177
      %s180 = sphi 0, %s179
      %s194 = sphi 0, %s180
      %s198 = sphi 0, %s198
      %s200 = sphi 0, %s198
      %s201 = sphi 0, %s200
      %s215 = sphi 0, %s201
      %s219 = sphi 0, %s219
      %s221 = sphi 0, %s219
      %s222 = sphi 0, %s221
      %s236 = sphi 0, %s222
      %s240 = sphi 0, %s240
      %s242 = sphi 0, %s240
      %s243 = sphi 0, %s242
      %s257 = sphi 0, %s243
      %s261 = sphi 0, %s261
      %s263 = sphi 0, %s261
      %s264 = sphi 0, %s263
      %s278 = sphi 0, %s264
      %s282 = sphi 0, %s282
      %s284 = sphi 0, %s282
      %s285 = sphi 0, %s284
      %s299 = sphi 0, %s285
      %s303 = sphi 0, %s303
      %s305 = sphi 0, %s303
      %s306 = sphi 0, %s305
      %s320 = sphi 0, %s306
      %s324 = sphi 0, %s324
      %s326 = sphi 0, %s324
      %s327 = sphi 0, %s326
      %s341 = sphi 0, %s327
      %s345 = sphi 0, %s345
      %s347 = sphi 0, %s345
      %s348 = sphi 0, %s347
      %s362 = sphi 0, %s348
      %s366 = sphi 0, %s366
      %s368 = sphi 0, %s366
      %s369 = sphi 0, %s368
      %s383 = sphi 0, %s369
      %s387 = sphi 0, %s387
      %s389 = sphi 0, %s387
      %s390 = sphi 0, %s389
      %s404 = sphi 0, %s390
      %s408 = sphi 0, %s408
      %s410 = sphi 0, %s408
      %s411 = sphi 0, %s410
      %s425 = sphi 0, %s411
      %s429 = sphi 0, %s429
      %s431 = sphi 0, %s429
      %s432 = sphi 0, %s431
      %s446 = sphi 0, %s432
      %s450 = sphi 0, %s450
      %s452 = sphi 0, %s450
      %s453 = sphi 0, %s452
      %s467 = sphi 0, %s453
      %s471 = sphi 0, %s471
      %s473 = sphi 0, %s471
      %s474 = sphi 0, %s473
      %s488 = sphi 0, %s474
      %s492 = sphi 0, %s492
      %s494 = sphi 0, %s492
      %s495 = sphi 0, %s494
      %s509 = sphi 0, %s495
      %s513 = sphi 0, %s513
      %s515 = sphi 0, %s513
      %s516 = sphi 0, %s515
      %s530 = sphi 0, %s516
      %s534 = sphi 0, %s534
      %s536 = sphi 0, %s534
      %s537 = sphi 0, %s536
      %s551 = sphi 0, %s537
      %s555 = sphi 0, %s555
      %s557 = sphi 0, %s555
      %s558 = sphi 0, %s557
      %s572 = sphi 0, %s558
      %s576 = sphi 0, %s576
      %s578 = sphi 0, %s576
      %s579 = sphi 0, %s578
      %s593 = sphi 0, %s579
      %s597 = sphi 0, %s597
      %s599 = sphi 0, %s597
      %s600 = sphi 0, %s599
      %s614 = sphi 0, %s600
      %s620 = sphi 0, %s622
      %s623 = sphi 0, %s620
      %s624 = sphi 0, %s623
      %s640 = sphi 0, %s624
    $region4: #{tpu_custom_call.1} parent=1 // loop_header_branch
      %41 = sbr.rel (%p39) target = $region8
    $region5: #{tpu_custom_call.1} parent=1 // loop_body
      %s43 = ssub.s32 %s38, 1
      %s44 = ssub.s32 %s38, 2
      %s45 = sadd.s32 %s38, 1
      %s46 = ssub.s32 %s38, %s45
      %p47 = scmp.eq.s32.totalorder %s46, 0
      %s49 = sadd.s32 %s48, 1
      %s50 = scalar_select %p47, %s48, %s49
      %p53 = pneg %p47
      %p54 = scmp.eq.s32.totalorder %s38, 1
      %p55 = por %p53, %p54
      %p56 = scmp.ne.s32.totalorder %s48, %s51
      %p57 = scmp.eq.s32.totalorder %s38, 0
      %p58 = por %p56, %p57
      %p59 = scmp.ne.s32.totalorder %s48, %s51
      %p60 = scmp.eq.s32.totalorder %s43, 1
      %p61 = por %p59, %p60
      %p62 = scmp.ne.s32.totalorder %s51, %s52
      %p63 = scmp.eq.s32.totalorder %s43, 0
      %p64 = por %p62, %p63
      %p65 = scmp.ne.s32.totalorder %s51, %s52
      %p66 = scmp.eq.s32.totalorder %s44, 1
      %p67 = por %p65, %p66
      %p69 = scmp.ne.s32.totalorder %s52, %s68
      %p70 = scmp.eq.s32.totalorder %s44, 0
      %p71 = por %p69, %p70
      %s73 = sadd.s32 %s72, 1
      %p76 = scmp.eq.s32.totalorder %s38, 1
      %p77 = scmp.ne.s32.totalorder %s72, %s74
      %p78 = scmp.eq.s32.totalorder %s38, 0
      %p79 = por %p77, %p78
      %p80 = scmp.ne.s32.totalorder %s72, %s74
      %p81 = scmp.eq.s32.totalorder %s43, 1
      %p82 = por %p80, %p81
      %p83 = scmp.ne.s32.totalorder %s74, %s75
      %p84 = scmp.eq.s32.totalorder %s43, 0
      %p85 = por %p83, %p84
      %p86 = scmp.ne.s32.totalorder %s74, %s75
      %p87 = scmp.eq.s32.totalorder %s44, 1
      %p88 = por %p86, %p87
      %p90 = scmp.ne.s32.totalorder %s75, %s89
      %p91 = scmp.eq.s32.totalorder %s44, 0
      %p92 = por %p90, %p91
      %s94 = sadd.s32 %s93, 1
      %p97 = scmp.eq.s32.totalorder %s38, 1
      %p98 = scmp.ne.s32.totalorder %s93, %s95
      %p99 = scmp.eq.s32.totalorder %s38, 0
      %p100 = por %p98, %p99
      %p101 = scmp.ne.s32.totalorder %s93, %s95
      %p102 = scmp.eq.s32.totalorder %s43, 1
      %p103 = por %p101, %p102
      %p104 = scmp.ne.s32.totalorder %s95, %s96
      %p105 = scmp.eq.s32.totalorder %s43, 0
      %p106 = por %p104, %p105
      %p107 = scmp.ne.s32.totalorder %s95, %s96
      %p108 = scmp.eq.s32.totalorder %s44, 1
      %p109 = por %p107, %p108
      %p111 = scmp.ne.s32.totalorder %s96, %s110
      %p112 = scmp.eq.s32.totalorder %s44, 0
      %p113 = por %p111, %p112
      %s115 = sadd.s32 %s114, 1
      %p118 = scmp.eq.s32.totalorder %s38, 1
      %p119 = scmp.ne.s32.totalorder %s114, %s116
      %p120 = scmp.eq.s32.totalorder %s38, 0
      %p121 = por %p119, %p120
      %p122 = scmp.ne.s32.totalorder %s114, %s116
      %p123 = scmp.eq.s32.totalorder %s43, 1
      %p124 = por %p122, %p123
      %p125 = scmp.ne.s32.totalorder %s116, %s117
      %p126 = scmp.eq.s32.totalorder %s43, 0
      %p127 = por %p125, %p126
      %p128 = scmp.ne.s32.totalorder %s116, %s117
      %p129 = scmp.eq.s32.totalorder %s44, 1
      %p130 = por %p128, %p129
      %p132 = scmp.ne.s32.totalorder %s117, %s131
      %p133 = scmp.eq.s32.totalorder %s44, 0
      %p134 = por %p132, %p133
      %s136 = sadd.s32 %s135, 1
      %p139 = scmp.eq.s32.totalorder %s38, 1
      %p140 = scmp.ne.s32.totalorder %s135, %s137
      %p141 = scmp.eq.s32.totalorder %s38, 0
      %p142 = por %p140, %p141
      %p143 = scmp.ne.s32.totalorder %s135, %s137
      %p144 = scmp.eq.s32.totalorder %s43, 1
      %p145 = por %p143, %p144
      %p146 = scmp.ne.s32.totalorder %s137, %s138
      %p147 = scmp.eq.s32.totalorder %s43, 0
      %p148 = por %p146, %p147
      %p149 = scmp.ne.s32.totalorder %s137, %s138
      %p150 = scmp.eq.s32.totalorder %s44, 1
      %p151 = por %p149, %p150
      %p153 = scmp.ne.s32.totalorder %s138, %s152
      %p154 = scmp.eq.s32.totalorder %s44, 0
      %p155 = por %p153, %p154
      %s157 = sadd.s32 %s156, 1
      %p160 = scmp.eq.s32.totalorder %s38, 1
      %p161 = scmp.ne.s32.totalorder %s156, %s158
      %p162 = scmp.eq.s32.totalorder %s38, 0
      %p163 = por %p161, %p162
      %p164 = scmp.ne.s32.totalorder %s156, %s158
      %p165 = scmp.eq.s32.totalorder %s43, 1
      %p166 = por %p164, %p165
      %p167 = scmp.ne.s32.totalorder %s158, %s159
      %p168 = scmp.eq.s32.totalorder %s43, 0
      %p169 = por %p167, %p168
      %p170 = scmp.ne.s32.totalorder %s158, %s159
      %p171 = scmp.eq.s32.totalorder %s44, 1
      %p172 = por %p170, %p171
      %p174 = scmp.ne.s32.totalorder %s159, %s173
      %p175 = scmp.eq.s32.totalorder %s44, 0
      %p176 = por %p174, %p175
      %s178 = sadd.s32 %s177, 1
      %p181 = scmp.eq.s32.totalorder %s38, 1
      %p182 = scmp.ne.s32.totalorder %s177, %s179
      %p183 = scmp.eq.s32.totalorder %s38, 0
      %p184 = por %p182, %p183
      %p185 = scmp.ne.s32.totalorder %s177, %s179
      %p186 = scmp.eq.s32.totalorder %s43, 1
      %p187 = por %p185, %p186
      %p188 = scmp.ne.s32.totalorder %s179, %s180
      %p189 = scmp.eq.s32.totalorder %s43, 0
      %p190 = por %p188, %p189
      %p191 = scmp.ne.s32.totalorder %s179, %s180
      %p192 = scmp.eq.s32.totalorder %s44, 1
      %p193 = por %p191, %p192
      %p195 = scmp.ne.s32.totalorder %s180, %s194
      %p196 = scmp.eq.s32.totalorder %s44, 0
      %p197 = por %p195, %p196
      %s199 = sadd.s32 %s198, 1
      %p202 = scmp.eq.s32.totalorder %s38, 1
      %p203 = scmp.ne.s32.totalorder %s198, %s200
      %p204 = scmp.eq.s32.totalorder %s38, 0
      %p205 = por %p203, %p204
      %p206 = scmp.ne.s32.totalorder %s198, %s200
      %p207 = scmp.eq.s32.totalorder %s43, 1
      %p208 = por %p206, %p207
      %p209 = scmp.ne.s32.totalorder %s200, %s201
      %p210 = scmp.eq.s32.totalorder %s43, 0
      %p211 = por %p209, %p210
      %p212 = scmp.ne.s32.totalorder %s200, %s201
      %p213 = scmp.eq.s32.totalorder %s44, 1
      %p214 = por %p212, %p213
      %p216 = scmp.ne.s32.totalorder %s201, %s215
      %p217 = scmp.eq.s32.totalorder %s44, 0
      %p218 = por %p216, %p217
      %s220 = sadd.s32 %s219, 1
      %p223 = scmp.eq.s32.totalorder %s38, 1
      %p224 = scmp.ne.s32.totalorder %s219, %s221
      %p225 = scmp.eq.s32.totalorder %s38, 0
      %p226 = por %p224, %p225
      %p227 = scmp.ne.s32.totalorder %s219, %s221
      %p228 = scmp.eq.s32.totalorder %s43, 1
      %p229 = por %p227, %p228
      %p230 = scmp.ne.s32.totalorder %s221, %s222
      %p231 = scmp.eq.s32.totalorder %s43, 0
      %p232 = por %p230, %p231
      %p233 = scmp.ne.s32.totalorder %s221, %s222
      %p234 = scmp.eq.s32.totalorder %s44, 1
      %p235 = por %p233, %p234
      %p237 = scmp.ne.s32.totalorder %s222, %s236
      %p238 = scmp.eq.s32.totalorder %s44, 0
      %p239 = por %p237, %p238
      %s241 = sadd.s32 %s240, 1
      %p244 = scmp.eq.s32.totalorder %s38, 1
      %p245 = scmp.ne.s32.totalorder %s240, %s242
      %p246 = scmp.eq.s32.totalorder %s38, 0
      %p247 = por %p245, %p246
      %p248 = scmp.ne.s32.totalorder %s240, %s242
      %p249 = scmp.eq.s32.totalorder %s43, 1
      %p250 = por %p248, %p249
      %p251 = scmp.ne.s32.totalorder %s242, %s243
      %p252 = scmp.eq.s32.totalorder %s43, 0
      %p253 = por %p251, %p252
      %p254 = scmp.ne.s32.totalorder %s242, %s243
      %p255 = scmp.eq.s32.totalorder %s44, 1
      %p256 = por %p254, %p255
      %p258 = scmp.ne.s32.totalorder %s243, %s257
      %p259 = scmp.eq.s32.totalorder %s44, 0
      %p260 = por %p258, %p259
      %s262 = sadd.s32 %s261, 1
      %p265 = scmp.eq.s32.totalorder %s38, 1
      %p266 = scmp.ne.s32.totalorder %s261, %s263
      %p267 = scmp.eq.s32.totalorder %s38, 0
      %p268 = por %p266, %p267
      %p269 = scmp.ne.s32.totalorder %s261, %s263
      %p270 = scmp.eq.s32.totalorder %s43, 1
      %p271 = por %p269, %p270
      %p272 = scmp.ne.s32.totalorder %s263, %s264
      %p273 = scmp.eq.s32.totalorder %s43, 0
      %p274 = por %p272, %p273
      %p275 = scmp.ne.s32.totalorder %s263, %s264
      %p276 = scmp.eq.s32.totalorder %s44, 1
      %p277 = por %p275, %p276
      %p279 = scmp.ne.s32.totalorder %s264, %s278
      %p280 = scmp.eq.s32.totalorder %s44, 0
      %p281 = por %p279, %p280
      %s283 = sadd.s32 %s282, 1
      %p286 = scmp.eq.s32.totalorder %s38, 1
      %p287 = scmp.ne.s32.totalorder %s282, %s284
      %p288 = scmp.eq.s32.totalorder %s38, 0
      %p289 = por %p287, %p288
      %p290 = scmp.ne.s32.totalorder %s282, %s284
      %p291 = scmp.eq.s32.totalorder %s43, 1
      %p292 = por %p290, %p291
      %p293 = scmp.ne.s32.totalorder %s284, %s285
      %p294 = scmp.eq.s32.totalorder %s43, 0
      %p295 = por %p293, %p294
      %p296 = scmp.ne.s32.totalorder %s284, %s285
      %p297 = scmp.eq.s32.totalorder %s44, 1
      %p298 = por %p296, %p297
      %p300 = scmp.ne.s32.totalorder %s285, %s299
      %p301 = scmp.eq.s32.totalorder %s44, 0
      %p302 = por %p300, %p301
      %s304 = sadd.s32 %s303, 1
      %p307 = scmp.eq.s32.totalorder %s38, 1
      %p308 = scmp.ne.s32.totalorder %s303, %s305
      %p309 = scmp.eq.s32.totalorder %s38, 0
      %p310 = por %p308, %p309
      %p311 = scmp.ne.s32.totalorder %s303, %s305
      %p312 = scmp.eq.s32.totalorder %s43, 1
      %p313 = por %p311, %p312
      %p314 = scmp.ne.s32.totalorder %s305, %s306
      %p315 = scmp.eq.s32.totalorder %s43, 0
      %p316 = por %p314, %p315
      %p317 = scmp.ne.s32.totalorder %s305, %s306
      %p318 = scmp.eq.s32.totalorder %s44, 1
      %p319 = por %p317, %p318
      %p321 = scmp.ne.s32.totalorder %s306, %s320
      %p322 = scmp.eq.s32.totalorder %s44, 0
      %p323 = por %p321, %p322
      %s325 = sadd.s32 %s324, 1
      %p328 = scmp.eq.s32.totalorder %s38, 1
      %p329 = scmp.ne.s32.totalorder %s324, %s326
      %p330 = scmp.eq.s32.totalorder %s38, 0
      %p331 = por %p329, %p330
      %p332 = scmp.ne.s32.totalorder %s324, %s326
      %p333 = scmp.eq.s32.totalorder %s43, 1
      %p334 = por %p332, %p333
      %p335 = scmp.ne.s32.totalorder %s326, %s327
      %p336 = scmp.eq.s32.totalorder %s43, 0
      %p337 = por %p335, %p336
      %p338 = scmp.ne.s32.totalorder %s326, %s327
      %p339 = scmp.eq.s32.totalorder %s44, 1
      %p340 = por %p338, %p339
      %p342 = scmp.ne.s32.totalorder %s327, %s341
      %p343 = scmp.eq.s32.totalorder %s44, 0
      %p344 = por %p342, %p343
      %s346 = sadd.s32 %s345, 1
      %p349 = scmp.eq.s32.totalorder %s38, 1
      %p350 = scmp.ne.s32.totalorder %s345, %s347
      %p351 = scmp.eq.s32.totalorder %s38, 0
      %p352 = por %p350, %p351
      %p353 = scmp.ne.s32.totalorder %s345, %s347
      %p354 = scmp.eq.s32.totalorder %s43, 1
      %p355 = por %p353, %p354
      %p356 = scmp.ne.s32.totalorder %s347, %s348
      %p357 = scmp.eq.s32.totalorder %s43, 0
      %p358 = por %p356, %p357
      %p359 = scmp.ne.s32.totalorder %s347, %s348
      %p360 = scmp.eq.s32.totalorder %s44, 1
      %p361 = por %p359, %p360
      %p363 = scmp.ne.s32.totalorder %s348, %s362
      %p364 = scmp.eq.s32.totalorder %s44, 0
      %p365 = por %p363, %p364
      %s367 = sadd.s32 %s366, 1
      %p370 = scmp.eq.s32.totalorder %s38, 1
      %p371 = scmp.ne.s32.totalorder %s366, %s368
      %p372 = scmp.eq.s32.totalorder %s38, 0
      %p373 = por %p371, %p372
      %p374 = scmp.ne.s32.totalorder %s366, %s368
      %p375 = scmp.eq.s32.totalorder %s43, 1
      %p376 = por %p374, %p375
      %p377 = scmp.ne.s32.totalorder %s368, %s369
      %p378 = scmp.eq.s32.totalorder %s43, 0
      %p379 = por %p377, %p378
      %p380 = scmp.ne.s32.totalorder %s368, %s369
      %p381 = scmp.eq.s32.totalorder %s44, 1
      %p382 = por %p380, %p381
      %p384 = scmp.ne.s32.totalorder %s369, %s383
      %p385 = scmp.eq.s32.totalorder %s44, 0
      %p386 = por %p384, %p385
      %s388 = sadd.s32 %s387, 1
      %p391 = scmp.eq.s32.totalorder %s38, 1
      %p392 = scmp.ne.s32.totalorder %s387, %s389
      %p393 = scmp.eq.s32.totalorder %s38, 0
      %p394 = por %p392, %p393
      %p395 = scmp.ne.s32.totalorder %s387, %s389
      %p396 = scmp.eq.s32.totalorder %s43, 1
      %p397 = por %p395, %p396
      %p398 = scmp.ne.s32.totalorder %s389, %s390
      %p399 = scmp.eq.s32.totalorder %s43, 0
      %p400 = por %p398, %p399
      %p401 = scmp.ne.s32.totalorder %s389, %s390
      %p402 = scmp.eq.s32.totalorder %s44, 1
      %p403 = por %p401, %p402
      %p405 = scmp.ne.s32.totalorder %s390, %s404
      %p406 = scmp.eq.s32.totalorder %s44, 0
      %p407 = por %p405, %p406
      %s409 = sadd.s32 %s408, 1
      %p412 = scmp.eq.s32.totalorder %s38, 1
      %p413 = scmp.ne.s32.totalorder %s408, %s410
      %p414 = scmp.eq.s32.totalorder %s38, 0
      %p415 = por %p413, %p414
      %p416 = scmp.ne.s32.totalorder %s408, %s410
      %p417 = scmp.eq.s32.totalorder %s43, 1
      %p418 = por %p416, %p417
      %p419 = scmp.ne.s32.totalorder %s410, %s411
      %p420 = scmp.eq.s32.totalorder %s43, 0
      %p421 = por %p419, %p420
      %p422 = scmp.ne.s32.totalorder %s410, %s411
      %p423 = scmp.eq.s32.totalorder %s44, 1
      %p424 = por %p422, %p423
      %p426 = scmp.ne.s32.totalorder %s411, %s425
      %p427 = scmp.eq.s32.totalorder %s44, 0
      %p428 = por %p426, %p427
      %s430 = sadd.s32 %s429, 1
      %p433 = scmp.eq.s32.totalorder %s38, 1
      %p434 = scmp.ne.s32.totalorder %s429, %s431
      %p435 = scmp.eq.s32.totalorder %s38, 0
      %p436 = por %p434, %p435
      %p437 = scmp.ne.s32.totalorder %s429, %s431
      %p438 = scmp.eq.s32.totalorder %s43, 1
      %p439 = por %p437, %p438
      %p440 = scmp.ne.s32.totalorder %s431, %s432
      %p441 = scmp.eq.s32.totalorder %s43, 0
      %p442 = por %p440, %p441
      %p443 = scmp.ne.s32.totalorder %s431, %s432
      %p444 = scmp.eq.s32.totalorder %s44, 1
      %p445 = por %p443, %p444
      %p447 = scmp.ne.s32.totalorder %s432, %s446
      %p448 = scmp.eq.s32.totalorder %s44, 0
      %p449 = por %p447, %p448
      %s451 = sadd.s32 %s450, 1
      %p454 = scmp.eq.s32.totalorder %s38, 1
      %p455 = scmp.ne.s32.totalorder %s450, %s452
      %p456 = scmp.eq.s32.totalorder %s38, 0
      %p457 = por %p455, %p456
      %p458 = scmp.ne.s32.totalorder %s450, %s452
      %p459 = scmp.eq.s32.totalorder %s43, 1
      %p460 = por %p458, %p459
      %p461 = scmp.ne.s32.totalorder %s452, %s453
      %p462 = scmp.eq.s32.totalorder %s43, 0
      %p463 = por %p461, %p462
      %p464 = scmp.ne.s32.totalorder %s452, %s453
      %p465 = scmp.eq.s32.totalorder %s44, 1
      %p466 = por %p464, %p465
      %p468 = scmp.ne.s32.totalorder %s453, %s467
      %p469 = scmp.eq.s32.totalorder %s44, 0
      %p470 = por %p468, %p469
      %s472 = sadd.s32 %s471, 1
      %p475 = scmp.eq.s32.totalorder %s38, 1
      %p476 = scmp.ne.s32.totalorder %s471, %s473
      %p477 = scmp.eq.s32.totalorder %s38, 0
      %p478 = por %p476, %p477
      %p479 = scmp.ne.s32.totalorder %s471, %s473
      %p480 = scmp.eq.s32.totalorder %s43, 1
      %p481 = por %p479, %p480
      %p482 = scmp.ne.s32.totalorder %s473, %s474
      %p483 = scmp.eq.s32.totalorder %s43, 0
      %p484 = por %p482, %p483
      %p485 = scmp.ne.s32.totalorder %s473, %s474
      %p486 = scmp.eq.s32.totalorder %s44, 1
      %p487 = por %p485, %p486
      %p489 = scmp.ne.s32.totalorder %s474, %s488
      %p490 = scmp.eq.s32.totalorder %s44, 0
      %p491 = por %p489, %p490
      %s493 = sadd.s32 %s492, 1
      %p496 = scmp.eq.s32.totalorder %s38, 1
      %p497 = scmp.ne.s32.totalorder %s492, %s494
      %p498 = scmp.eq.s32.totalorder %s38, 0
      %p499 = por %p497, %p498
      %p500 = scmp.ne.s32.totalorder %s492, %s494
      %p501 = scmp.eq.s32.totalorder %s43, 1
      %p502 = por %p500, %p501
      %p503 = scmp.ne.s32.totalorder %s494, %s495
      %p504 = scmp.eq.s32.totalorder %s43, 0
      %p505 = por %p503, %p504
      %p506 = scmp.ne.s32.totalorder %s494, %s495
      %p507 = scmp.eq.s32.totalorder %s44, 1
      %p508 = por %p506, %p507
      %p510 = scmp.ne.s32.totalorder %s495, %s509
      %p511 = scmp.eq.s32.totalorder %s44, 0
      %p512 = por %p510, %p511
      %s514 = sadd.s32 %s513, 1
      %p517 = scmp.eq.s32.totalorder %s38, 1
      %p518 = scmp.ne.s32.totalorder %s513, %s515
      %p519 = scmp.eq.s32.totalorder %s38, 0
      %p520 = por %p518, %p519
      %p521 = scmp.ne.s32.totalorder %s513, %s515
      %p522 = scmp.eq.s32.totalorder %s43, 1
      %p523 = por %p521, %p522
      %p524 = scmp.ne.s32.totalorder %s515, %s516
      %p525 = scmp.eq.s32.totalorder %s43, 0
      %p526 = por %p524, %p525
      %p527 = scmp.ne.s32.totalorder %s515, %s516
      %p528 = scmp.eq.s32.totalorder %s44, 1
      %p529 = por %p527, %p528
      %p531 = scmp.ne.s32.totalorder %s516, %s530
      %p532 = scmp.eq.s32.totalorder %s44, 0
      %p533 = por %p531, %p532
      %s535 = sadd.s32 %s534, 1
      %p538 = scmp.eq.s32.totalorder %s38, 1
      %p539 = scmp.ne.s32.totalorder %s534, %s536
      %p540 = scmp.eq.s32.totalorder %s38, 0
      %p541 = por %p539, %p540
      %p542 = scmp.ne.s32.totalorder %s534, %s536
      %p543 = scmp.eq.s32.totalorder %s43, 1
      %p544 = por %p542, %p543
      %p545 = scmp.ne.s32.totalorder %s536, %s537
      %p546 = scmp.eq.s32.totalorder %s43, 0
      %p547 = por %p545, %p546
      %p548 = scmp.ne.s32.totalorder %s536, %s537
      %p549 = scmp.eq.s32.totalorder %s44, 1
      %p550 = por %p548, %p549
      %p552 = scmp.ne.s32.totalorder %s537, %s551
      %p553 = scmp.eq.s32.totalorder %s44, 0
      %p554 = por %p552, %p553
      %s556 = sadd.s32 %s555, 1
      %p559 = scmp.eq.s32.totalorder %s38, 1
      %p560 = scmp.ne.s32.totalorder %s555, %s557
      %p561 = scmp.eq.s32.totalorder %s38, 0
      %p562 = por %p560, %p561
      %p563 = scmp.ne.s32.totalorder %s555, %s557
      %p564 = scmp.eq.s32.totalorder %s43, 1
      %p565 = por %p563, %p564
      %p566 = scmp.ne.s32.totalorder %s557, %s558
      %p567 = scmp.eq.s32.totalorder %s43, 0
      %p568 = por %p566, %p567
      %p569 = scmp.ne.s32.totalorder %s557, %s558
      %p570 = scmp.eq.s32.totalorder %s44, 1
      %p571 = por %p569, %p570
      %p573 = scmp.ne.s32.totalorder %s558, %s572
      %p574 = scmp.eq.s32.totalorder %s44, 0
      %p575 = por %p573, %p574
      %s577 = sadd.s32 %s576, 1
      %p580 = scmp.eq.s32.totalorder %s38, 1
      %p581 = scmp.ne.s32.totalorder %s576, %s578
      %p582 = scmp.eq.s32.totalorder %s38, 0
      %p583 = por %p581, %p582
      %p584 = scmp.ne.s32.totalorder %s576, %s578
      %p585 = scmp.eq.s32.totalorder %s43, 1
      %p586 = por %p584, %p585
      %p587 = scmp.ne.s32.totalorder %s578, %s579
      %p588 = scmp.eq.s32.totalorder %s43, 0
      %p589 = por %p587, %p588
      %p590 = scmp.ne.s32.totalorder %s578, %s579
      %p591 = scmp.eq.s32.totalorder %s44, 1
      %p592 = por %p590, %p591
      %p594 = scmp.ne.s32.totalorder %s579, %s593
      %p595 = scmp.eq.s32.totalorder %s44, 0
      %p596 = por %p594, %p595
      %s598 = sadd.s32 %s597, 1
      %p601 = scmp.eq.s32.totalorder %s38, 1
      %p602 = scmp.ne.s32.totalorder %s597, %s599
      %p603 = scmp.eq.s32.totalorder %s38, 0
      %p604 = por %p602, %p603
      %p605 = scmp.ne.s32.totalorder %s597, %s599
      %p606 = scmp.eq.s32.totalorder %s43, 1
      %p607 = por %p605, %p606
      %p608 = scmp.ne.s32.totalorder %s599, %s600
      %p609 = scmp.eq.s32.totalorder %s43, 0
      %p610 = por %p608, %p609
      %p611 = scmp.ne.s32.totalorder %s599, %s600
      %p612 = scmp.eq.s32.totalorder %s44, 1
      %p613 = por %p611, %p612
      %p615 = scmp.ne.s32.totalorder %s600, %s614
      %p616 = scmp.eq.s32.totalorder %s44, 0
      %p617 = por %p615, %p616
      %s618 = ssub.s32 %s38, %s45
      %p619 = scmp.eq.s32.totalorder %s618, 0
      %s621 = sadd.s32 %s620, 1
      %s622 = scalar_select %p619, %s620, %s621
      %p625 = pneg %p619
      %p626 = scmp.eq.s32.totalorder %s38, 1
      %p627 = por %p625, %p626
      %p628 = scmp.ne.s32.totalorder %s620, %s623
      %p629 = scmp.eq.s32.totalorder %s38, 0
      %p630 = por %p628, %p629
      %p631 = scmp.ne.s32.totalorder %s620, %s623
      %p632 = scmp.eq.s32.totalorder %s43, 1
      %p633 = por %p631, %p632
      %p634 = scmp.ne.s32.totalorder %s623, %s624
      %p635 = scmp.eq.s32.totalorder %s43, 0
      %p636 = por %p634, %p635
      %p637 = scmp.ne.s32.totalorder %s623, %s624
      %p638 = scmp.eq.s32.totalorder %s44, 1
      %p639 = por %p637, %p638
      %p641 = scmp.ne.s32.totalorder %s624, %s640
      %p642 = scmp.eq.s32.totalorder %s44, 0
      %p643 = por %p641, %p642
      %p644 = scmp.le.s32.totalorder 1, %s38
      %p645 = scmp.lt.s32.totalorder %s38, 3
      %p646 = pnand %p644, %p645
      %p647 = pneg %p646
      // Predicated region
      $region9: #{tpu_custom_call.1} parent=5 // pred_check
        _
      $region10: #{tpu_custom_call.1} parent=5 // pred_check_branch
        %649 = sbr.rel (%p646) target = $region12
      $region11: #{tpu_custom_call.1} parent=5 // pred_region
        %s650 = ssub.s32 %s38, 1
        // Predicated region
        $region13: #{tpu_custom_call.1} parent=11 // pred_check
          %p651 = pneg %p85
        $region14: #{tpu_custom_call.1} parent=11 // pred_check_branch
          %653 = sbr.rel (%p651) target = $region16
        $region15: #{tpu_custom_call.1} parent=11 // pred_region
          _
        $region16: #{tpu_custom_call.1} parent=11 // pred_fallthru
          _
        // Predicated region
        $region17: #{tpu_custom_call.1} parent=11 // pred_check
          %p654 = pneg %p106
        $region18: #{tpu_custom_call.1} parent=11 // pred_check_branch
          %656 = sbr.rel (%p654) target = $region20
        $region19: #{tpu_custom_call.1} parent=11 // pred_region
          _
        $region20: #{tpu_custom_call.1} parent=11 // pred_fallthru
          _
        // Predicated region
        $region21: #{tpu_custom_call.1} parent=11 // pred_check
          %p657 = pneg %p127
        $region22: #{tpu_custom_call.1} parent=11 // pred_check_branch
          %659 = sbr.rel (%p657) target = $region24
        $region23: #{tpu_custom_call.1} parent=11 // pred_region
          _
        $region24: #{tpu_custom_call.1} parent=11 // pred_fallthru
          _
        // Predicated region
        $region25: #{tpu_custom_call.1} parent=11 // pred_check
          %p660 = pneg %p148
        $region26: #{tpu_custom_call.1} parent=11 // pred_check_branch
          %662 = sbr.rel (%p660) target = $region28
        $region27: #{tpu_custom_call.1} parent=11 // pred_region
          _
        $region28: #{tpu_custom_call.1} parent=11 // pred_fallthru
          _
        // Predicated region
        $region29: #{tpu_custom_call.1} parent=11 // pred_check
          %p663 = pneg %p169
        $region30: #{tpu_custom_call.1} parent=11 // pred_check_branch
          %665 = sbr.rel (%p663) target = $region32
        $region31: #{tpu_custom_call.1} parent=11 // pred_region
          %s667 = ssub.s32 16384, 16384
          %668 = vsyncadd [#allocation3], %s667
          %s669 = sshll.u32 [#allocation2], 4
          %s670 = int_to_ptr.vmem [resolvable:$true] %s669
          %675 = dma.hbm_to_vmem [thread:$0]  %s5, 16384, %s670, [#allocation3], 512, 512, 32
        $region32: #{tpu_custom_call.1} parent=11 // pred_fallthru
          _
        // Predicated region
        $region33: #{tpu_custom_call.1} parent=11 // pred_check
          %p676 = pneg %p190
        $region34: #{tpu_custom_call.1} parent=11 // pred_check_branch
          %678 = sbr.rel (%p676) target = $region36
        $region35: #{tpu_custom_call.1} parent=11 // pred_region
          _
        $region36: #{tpu_custom_call.1} parent=11 // pred_fallthru
          _
        // Predicated region
        $region37: #{tpu_custom_call.1} parent=11 // pred_check
          %p679 = pneg %p211
        $region38: #{tpu_custom_call.1} parent=11 // pred_check_branch
          %681 = sbr.rel (%p679) target = $region40
        $region39: #{tpu_custom_call.1} parent=11 // pred_region
          _
        $region40: #{tpu_custom_call.1} parent=11 // pred_fallthru
          _
        // Predicated region
        $region41: #{tpu_custom_call.1} parent=11 // pred_check
          %p682 = pneg %p232
        $region42: #{tpu_custom_call.1} parent=11 // pred_check_branch
          %684 = sbr.rel (%p682) target = $region44
        $region43: #{tpu_custom_call.1} parent=11 // pred_region
          _
        $region44: #{tpu_custom_call.1} parent=11 // pred_fallthru
          _
        // Predicated region
        $region45: #{tpu_custom_call.1} parent=11 // pred_check
          %p685 = pneg %p253
        $region46: #{tpu_custom_call.1} parent=11 // pred_check_branch
          %687 = sbr.rel (%p685) target = $region48
        $region47: #{tpu_custom_call.1} parent=11 // pred_region
          _
        $region48: #{tpu_custom_call.1} parent=11 // pred_fallthru
          _
        // Predicated region
        $region49: #{tpu_custom_call.1} parent=11 // pred_check
          %p688 = pneg %p274
        $region50: #{tpu_custom_call.1} parent=11 // pred_check_branch
          %690 = sbr.rel (%p688) target = $region52
        $region51: #{tpu_custom_call.1} parent=11 // pred_region
          _
        $region52: #{tpu_custom_call.1} parent=11 // pred_fallthru
          _
        // Predicated region
        $region53: #{tpu_custom_call.1} parent=11 // pred_check
          %p691 = pneg %p295
        $region54: #{tpu_custom_call.1} parent=11 // pred_check_branch
          %693 = sbr.rel (%p691) target = $region56
        $region55: #{tpu_custom_call.1} parent=11 // pred_region
          _
        $region56: #{tpu_custom_call.1} parent=11 // pred_fallthru
          _
        // Predicated region
        $region57: #{tpu_custom_call.1} parent=11 // pred_check
          %p694 = pneg %p316
        $region58: #{tpu_custom_call.1} parent=11 // pred_check_branch
          %696 = sbr.rel (%p694) target = $region60
        $region59: #{tpu_custom_call.1} parent=11 // pred_region
          _
        $region60: #{tpu_custom_call.1} parent=11 // pred_fallthru
          _
        // Predicated region
        $region61: #{tpu_custom_call.1} parent=11 // pred_check
          %p697 = pneg %p337
        $region62: #{tpu_custom_call.1} parent=11 // pred_check_branch
          %699 = sbr.rel (%p697) target = $region64
        $region63: #{tpu_custom_call.1} parent=11 // pred_region
          _
        $region64: #{tpu_custom_call.1} parent=11 // pred_fallthru
          _
        // Predicated region
        $region65: #{tpu_custom_call.1} parent=11 // pred_check
          %p700 = pneg %p358
        $region66: #{tpu_custom_call.1} parent=11 // pred_check_branch
          %702 = sbr.rel (%p700) target = $region68
        $region67: #{tpu_custom_call.1} parent=11 // pred_region
          _
        $region68: #{tpu_custom_call.1} parent=11 // pred_fallthru
          _
        // Predicated region
        $region69: #{tpu_custom_call.1} parent=11 // pred_check
          %p703 = pneg %p379
        $region70: #{tpu_custom_call.1} parent=11 // pred_check_branch
          %705 = sbr.rel (%p703) target = $region72
        $region71: #{tpu_custom_call.1} parent=11 // pred_region
          _
        $region72: #{tpu_custom_call.1} parent=11 // pred_fallthru
          _
        // Predicated region
        $region73: #{tpu_custom_call.1} parent=11 // pred_check
          %p706 = pneg %p400
        $region74: #{tpu_custom_call.1} parent=11 // pred_check_branch
          %708 = sbr.rel (%p706) target = $region76
        $region75: #{tpu_custom_call.1} parent=11 // pred_region
          _
        $region76: #{tpu_custom_call.1} parent=11 // pred_fallthru
          _
        // Predicated region
        $region77: #{tpu_custom_call.1} parent=11 // pred_check
          %p709 = pneg %p421
        $region78: #{tpu_custom_call.1} parent=11 // pred_check_branch
          %711 = sbr.rel (%p709) target = $region80
        $region79: #{tpu_custom_call.1} parent=11 // pred_region
          _
        $region80: #{tpu_custom_call.1} parent=11 // pred_fallthru
          _
        // Predicated region
        $region81: #{tpu_custom_call.1} parent=11 // pred_check
          %p712 = pneg %p442
        $region82: #{tpu_custom_call.1} parent=11 // pred_check_branch
          %714 = sbr.rel (%p712) target = $region84
        $region83: #{tpu_custom_call.1} parent=11 // pred_region
          _
        $region84: #{tpu_custom_call.1} parent=11 // pred_fallthru
          _
        // Predicated region
        $region85: #{tpu_custom_call.1} parent=11 // pred_check
          %p715 = pneg %p463
        $region86: #{tpu_custom_call.1} parent=11 // pred_check_branch
          %717 = sbr.rel (%p715) target = $region88
        $region87: #{tpu_custom_call.1} parent=11 // pred_region
          _
        $region88: #{tpu_custom_call.1} parent=11 // pred_fallthru
          _
        // Predicated region
        $region89: #{tpu_custom_call.1} parent=11 // pred_check
          %p718 = pneg %p484
        $region90: #{tpu_custom_call.1} parent=11 // pred_check_branch
          %720 = sbr.rel (%p718) target = $region92
        $region91: #{tpu_custom_call.1} parent=11 // pred_region
          _
        $region92: #{tpu_custom_call.1} parent=11 // pred_fallthru
          _
        // Predicated region
        $region93: #{tpu_custom_call.1} parent=11 // pred_check
          %p721 = pneg %p505
        $region94: #{tpu_custom_call.1} parent=11 // pred_check_branch
          %723 = sbr.rel (%p721) target = $region96
        $region95: #{tpu_custom_call.1} parent=11 // pred_region
          _
        $region96: #{tpu_custom_call.1} parent=11 // pred_fallthru
          _
        // Predicated region
        $region97: #{tpu_custom_call.1} parent=11 // pred_check
          %p724 = pneg %p526
        $region98: #{tpu_custom_call.1} parent=11 // pred_check_branch
          %726 = sbr.rel (%p724) target = $region100
        $region99: #{tpu_custom_call.1} parent=11 // pred_region
          _
        $region100: #{tpu_custom_call.1} parent=11 // pred_fallthru
          _
        // Predicated region
        $region101: #{tpu_custom_call.1} parent=11 // pred_check
          %p727 = pneg %p547
        $region102: #{tpu_custom_call.1} parent=11 // pred_check_branch
          %729 = sbr.rel (%p727) target = $region104
        $region103: #{tpu_custom_call.1} parent=11 // pred_region
          _
        $region104: #{tpu_custom_call.1} parent=11 // pred_fallthru
          _
        // Predicated region
        $region105: #{tpu_custom_call.1} parent=11 // pred_check
          %p730 = pneg %p568
        $region106: #{tpu_custom_call.1} parent=11 // pred_check_branch
          %732 = sbr.rel (%p730) target = $region108
        $region107: #{tpu_custom_call.1} parent=11 // pred_region
          _
        $region108: #{tpu_custom_call.1} parent=11 // pred_fallthru
          _
        // Predicated region
        $region109: #{tpu_custom_call.1} parent=11 // pred_check
          %p733 = pneg %p589
        $region110: #{tpu_custom_call.1} parent=11 // pred_check_branch
          %735 = sbr.rel (%p733) target = $region112
        $region111: #{tpu_custom_call.1} parent=11 // pred_region
          %s737 = ssub.s32 128, 128
          %738 = vsyncadd [#allocation6], %s737
          %s740 = sshll.u32 [#allocation5], 4
          %s741 = int_to_ptr.vmem [resolvable:$true] %s740
          %743 = dma.hbm_to_vmem [thread:$0]  %s25, 128, %s741, [#allocation6]
        $region112: #{tpu_custom_call.1} parent=11 // pred_fallthru
          _
        // Predicated region
        $region113: #{tpu_custom_call.1} parent=11 // pred_check
          %p744 = pneg %p610
        $region114: #{tpu_custom_call.1} parent=11 // pred_check_branch
          %746 = sbr.rel (%p744) target = $region116
        $region115: #{tpu_custom_call.1} parent=11 // pred_region
          _
        $region116: #{tpu_custom_call.1} parent=11 // pred_fallthru
          _
      $region12: #{tpu_custom_call.1} parent=5 // pred_fallthru
        _
      %p747 = scmp.lt.s32.totalorder %s38, 2
      // Predicated region
      $region117: #{tpu_custom_call.1} parent=5 // pred_check
        %p748 = pneg %p747
      $region118: #{tpu_custom_call.1} parent=5 // pred_check_branch
        %750 = sbr.rel (%p748) target = $region120
      $region119: #{tpu_custom_call.1} parent=5 // pred_region
        // Predicated region
        $region121: #{tpu_custom_call.1} parent=119 // pred_check
          %p751 = pneg %p58
        $region122: #{tpu_custom_call.1} parent=119 // pred_check_branch
          %753 = sbr.rel (%p751) target = $region124
        $region123: #{tpu_custom_call.1} parent=119 // pred_region
          %s754 = smul.u32 2, %s38
          %p755 = scmp.lt.s32.totalorder %s754, 3
          %s756 = scalar_select %p755, %s754, 3
          %s757 = smul.addr %s756, 8
          %s758 = scalar_lea.vmem %s0, %s757
          %s759 = smul.u32 2, %s38
        $region124: #{tpu_custom_call.1} parent=119 // pred_fallthru
          _
      $region120: #{tpu_custom_call.1} parent=5 // pred_fallthru
        _
      %p760 = scmp.le.s32.totalorder 1, %s38
      %p761 = scmp.lt.s32.totalorder %s38, 3
      %p762 = pnand %p760, %p761
      %p763 = pneg %p762
      // Predicated region
      $region125: #{tpu_custom_call.1} parent=5 // pred_check
        _
      $region126: #{tpu_custom_call.1} parent=5 // pred_check_branch
        %765 = sbr.rel (%p762) target = $region128
      $region127: #{tpu_custom_call.1} parent=5 // pred_region
        %s766 = ssub.s32 %s38, 1
        // Predicated region
        $region129: #{tpu_custom_call.1} parent=127 // pred_check
          %p767 = pneg %p169
        $region130: #{tpu_custom_call.1} parent=127 // pred_check_branch
          %769 = sbr.rel (%p767) target = $region132
        $region131: #{tpu_custom_call.1} parent=127 // pred_region
          %770 = dma.done [#allocation3], 16384
        $region132: #{tpu_custom_call.1} parent=127 // pred_fallthru
          _
        // Predicated region
        $region133: #{tpu_custom_call.1} parent=127 // pred_check
          %p771 = pneg %p589
        $region134: #{tpu_custom_call.1} parent=127 // pred_check_branch
          %773 = sbr.rel (%p771) target = $region136
        $region135: #{tpu_custom_call.1} parent=127 // pred_region
          %774 = dma.done [#allocation6], 128
        $region136: #{tpu_custom_call.1} parent=127 // pred_fallthru
          _
        %s775 = smul.u32 2, %s43
        %p776 = scmp.lt.s32.totalorder %s775, 3
        %s777 = scalar_select %p776, %s775, 3
        %s778 = smul.addr %s777, 8
        %s779 = scalar_lea.vmem %s0, %s778
        %p780 = pneg %p64
        %p781 = pneg %p61
        %p782 = pneg %p85
        %p783 = pneg %p82
        %p784 = pneg %p106
        %p785 = pneg %p103
        %p786 = pneg %p127
        %p787 = pneg %p124
        %p788 = pneg %p148
        %p789 = pneg %p145
        %p790 = pneg %p169
        %p791 = pneg %p166
        %p792 = pneg %p190
        %p793 = pneg %p187
        %p794 = pneg %p211
        %p795 = pneg %p208
        %p796 = pneg %p232
        %p797 = pneg %p229
        %p798 = pneg %p253
        %p799 = pneg %p250
        %p800 = pneg %p274
        %p801 = pneg %p271
        %p802 = pneg %p295
        %p803 = pneg %p292
        %p804 = pneg %p316
        %p805 = pneg %p313
        %p806 = pneg %p337
        %p807 = pneg %p334
        %p808 = pneg %p358
        %p809 = pneg %p355
        %p810 = pneg %p379
        %p811 = pneg %p376
        %p812 = pneg %p400
        %p813 = pneg %p397
        %p814 = pneg %p421
        %p815 = pneg %p418
        %p816 = pneg %p442
        %p817 = pneg %p439
        %p818 = pneg %p463
        %p819 = pneg %p460
        %p820 = pneg %p484
        %p821 = pneg %p481
        %p822 = pneg %p505
        %p823 = pneg %p502
        %p824 = pneg %p526
        %p825 = pneg %p523
        %p826 = pneg %p547
        %p827 = pneg %p544
        %p828 = pneg %p568
        %p829 = pneg %p565
        %p830 = pneg %p589
        %p831 = pneg %p586
        %p832 = pneg %p610
        %p833 = pneg %p607
        %p834 = pneg %p636
        %p835 = pneg %p633
        %s836 = sand.u32 %s623, 1
        %s837 = scalar_lea.sflag [#allocation4], %s836
        %s838 = sand.u32 %s623, 1
        %s839 = smul.addr %s838, 16
        %s840 = scalar_lea.vmem [#allocation7], %s839
        %s841 = smul.u32 2, %s43
        %p842 = scmp.lt.s32.totalorder %s841, 3
        %s843 = scalar_select %p842, %s841, 3
        %s844 = smul.addr %s843, 8
        %s845 = scalar_lea.vmem %s0, %s844
        %s846 = smul.u32 2, %s43
        %s847 = smul.u32 2, %s43
        %v848 = vld [vmem:[%s845] sm:$0xff]
        %v849 = vld [vmem:[%s845 + $0x8] sm:$0xff]
        %v850 = vld [vmem:[#allocation5] sm:$0xff]
        %v851 = vld [vmem:[%s26] sm:$0x3]
        %s852 = scalar_lea.vmem %s1, 16
        %v853 = vld [vmem:[%s852] sm:$0xff]
        %v854 = vld [vmem:[%s852 + $0x8] sm:$0xff]
        %v855 = vld [vmem:[%s2] sm:$0xff]
        %v856 = vld [vmem:[%s2 + $0x8] sm:$0xff]
        %858 = vset.pattern.permute.xlu0 0
        %859 = vperm.xlu0 %858, %v855
        %v860 = vpop.permute.xlu0 %859
        %863 = vset.pattern.permute.xlu0 0
        %864 = vperm.xlu0 %863, %v856
        %v865 = vpop.permute.xlu0 %864
        %vm867 = vcmask 64512
        %v869 = vsel %vm867, %v853, 0
        %v872 = vsel %vm867, %v854, 0
        %874 = vmatprep.subr.mxu0 %v849
        %875 = vmatpush1.msra.mxu0 %v848
        %876 = vmatprep.subr.mxu0 0.0
        %877 = vmatpush1.msra.mxu0 0.0
        %878 = vmatprep.subr.mxu0 0.0
        %879 = vmatpush1.msra.mxu0 0.0
        %880 = vmatprep.subr.mxu0 0.0
        %881 = vmatpush1.msra.mxu0 0.0
        %882 = vmatprep.subr.mxu0 0.0
        %883 = vmatpush1.msra.mxu0 0.0
        %884 = vmatprep.subr.mxu0 0.0
        %885 = vmatpush1.msra.mxu0 0.0
        %886 = vmatprep.subr.mxu0 0.0
        %887 = vmatpush1.msra.mxu0 0.0
        %888 = vmatprep.subr.mxu0 0.0
        %889 = vmatpush1.msra.mxu0 0.0
        %890 = vmatprep.subr.mxu0 0.0
        %891 = vmatpush1.msra.mxu0 0.0
        %892 = vmatprep.subr.mxu0 0.0
        %893 = vmatpush1.msra.mxu0 0.0
        %894 = vmatprep.subr.mxu0 0.0
        %895 = vmatpush1.msra.mxu0 0.0
        %896 = vmatprep.subr.mxu0 0.0
        %897 = vmatpush1.msra.mxu0 0.0
        %898 = vmatprep.subr.mxu0 0.0
        %899 = vmatpush1.msra.mxu0 0.0
        %900 = vmatprep.subr.mxu0 0.0
        %901 = vmatpush1.msra.mxu0 0.0
        %902 = vmatprep.subr.mxu0 0.0
        %903 = vmatpush1.msra.mxu0 0.0
        %904 = vmatprep.subr.mxu0 0.0
        %905 = vmatpush1.msra.mxu0 0.0
        %906 = vmatprep.subr.mxu0 0.0
        %907 = vmatpush1.msra.mxu0 0.0
        %908 = vmatprep.subr.mxu0 0.0
        %909 = vmatpush1.msra.mxu0 0.0
        %910 = vmatprep.subr.mxu0 0.0
        %911 = vmatpush1.msra.mxu0 0.0
        %912 = vmatprep.subr.mxu0 0.0
        %913 = vmatpush1.msra.mxu0 0.0
        %914 = vmatprep.subr.mxu0 0.0
        %915 = vmatpush1.msra.mxu0 0.0
        %916 = vmatprep.subr.mxu0 0.0
        %917 = vmatpush1.msra.mxu0 0.0
        %918 = vmatprep.subr.mxu0 0.0
        %919 = vmatpush1.msra.mxu0 0.0
        %920 = vmatprep.subr.mxu0 0.0
        %921 = vmatpush1.msra.mxu0 0.0
        %922 = vmatprep.subr.mxu0 0.0
        %923 = vmatpush1.msra.mxu0 0.0
        %924 = vmatprep.subr.mxu0 0.0
        %925 = vmatpush1.msra.mxu0 0.0
        %926 = vmatprep.subr.mxu0 0.0
        %927 = vmatpush1.msra.mxu0 0.0
        %928 = vmatprep.subr.mxu0 0.0
        %929 = vmatpush1.msra.mxu0 0.0
        %930 = vmatprep.subr.mxu0 0.0
        %931 = vmatpush1.msra.mxu0 0.0
        %932 = vmatprep.subr.mxu0 0.0
        %933 = vmatpush1.msra.mxu0 0.0
        %934 = vmatprep.subr.mxu0 0.0
        %935 = vmatpush1.msra.mxu0 0.0
        %936 = vmatprep.subr.mxu0 0.0
        %937 = vmatpush1.msra.mxu0 0.0
        %938 = vmatprep.mubr.f32.mxu0 0.0
        %939 = vmatmul.mubr.f32.gmra.mrb[0].mxu0 %v869
        %v940 = vpop.f32.mrb[0].mxu0
        %v941 = vadd.f32 %v860, %v940
        %v942 = vpop.f32.mrb[0].mxu0
        %v943 = vadd.f32 %v860, %v942
        %944 = vmatprep.mubr.f32.mxu0 0.0
        %945 = vmatmul.mubr.f32.gmra.mrb[0].mxu0 %v872
        %v946 = vpop.f32.mrb[0].mxu0
        %v947 = vadd.f32 %v865, %v946
        %v948 = vpop.f32.mrb[0].mxu0
        %v949 = vadd.f32 %v865, %v948
        %950 = vdwg.mxu0
        %951 = vrot.lane.b32.xlu0 %v848, 1
        %v952 = vpop.permute.xlu0 %951
        %953 = vrot.lane.b32.xlu0 %v849, 1
        %v954 = vpop.permute.xlu0 %953
        %v955 = vlaneseq
        %v956 = vand.u32 %v955, 127
        %vm957 = vcmp.lt.s32.totalorder %v956, 1
        %v958 = vsel %vm957, %v952, %v954
        %v959 = vsel %vm957, %v954, %v952
        %v961 = vlaneseq
        %v962 = vshrl.u32 %v961, 7
        %v963 = vsub.s32 0, %v962
        %v964 = vrot.slane %v850, %v963
        %v965 = vlaneseq
        %v966 = vshrl.u32 %v965, 7
        %v967 = vsub.s32 4, %v966
        %v968 = vrot.slane %v850, %v967
        %v971 = vlaneseq
        %v972 = vshrl.u32 %v971, 7
        %v973 = vsub.s32 0, %v972
        %v974 = vrot.slane %v964, %v973
        %v975 = vlaneseq
        %v976 = vshrl.u32 %v975, 7
        %v977 = vsub.s32 0, %v976
        %v978 = vrot.slane %v968, %v977
        %v979 = vmul.f32 %v959, %v974
        %v980 = vmul.f32 %v958, %v978
        %v981 = vld [vmem:[%s1] sm:$0xff]
        %v982 = vld [vmem:[%s1 + $0x8] sm:$0xff]
        %v984 = vsel %vm867, %v981, 0
        %v987 = vsel %vm867, %v982, 0
        %989 = vmatprep.subr.mxu0 %v980
        %990 = vmatpush1.msra.mxu0 %v979
        %991 = vmatprep.subr.mxu0 0.0
        %992 = vmatpush1.msra.mxu0 0.0
        %993 = vmatprep.subr.mxu0 0.0
        %994 = vmatpush1.msra.mxu0 0.0
        %995 = vmatprep.subr.mxu0 0.0
        %996 = vmatpush1.msra.mxu0 0.0
        %997 = vmatprep.subr.mxu0 0.0
        %998 = vmatpush1.msra.mxu0 0.0
        %999 = vmatprep.subr.mxu0 0.0
        %1000 = vmatpush1.msra.mxu0 0.0
        %1001 = vmatprep.subr.mxu0 0.0
        %1002 = vmatpush1.msra.mxu0 0.0
        %1003 = vmatprep.subr.mxu0 0.0
        %1004 = vmatpush1.msra.mxu0 0.0
        %1005 = vmatprep.subr.mxu0 0.0
        %1006 = vmatpush1.msra.mxu0 0.0
        %1007 = vmatprep.subr.mxu0 0.0
        %1008 = vmatpush1.msra.mxu0 0.0
        %1009 = vmatprep.subr.mxu0 0.0
        %1010 = vmatpush1.msra.mxu0 0.0
        %1011 = vmatprep.subr.mxu0 0.0
        %1012 = vmatpush1.msra.mxu0 0.0
        %1013 = vmatprep.subr.mxu0 0.0
        %1014 = vmatpush1.msra.mxu0 0.0
        %1015 = vmatprep.subr.mxu0 0.0
        %1016 = vmatpush1.msra.mxu0 0.0
        %1017 = vmatprep.subr.mxu0 0.0
        %1018 = vmatpush1.msra.mxu0 0.0
        %1019 = vmatprep.subr.mxu0 0.0
        %1020 = vmatpush1.msra.mxu0 0.0
        %1021 = vmatprep.subr.mxu0 0.0
        %1022 = vmatpush1.msra.mxu0 0.0
        %1023 = vmatprep.subr.mxu0 0.0
        %1024 = vmatpush1.msra.mxu0 0.0
        %1025 = vmatprep.subr.mxu0 0.0
        %1026 = vmatpush1.msra.mxu0 0.0
        %1027 = vmatprep.subr.mxu0 0.0
        %1028 = vmatpush1.msra.mxu0 0.0
        %1029 = vmatprep.subr.mxu0 0.0
        %1030 = vmatpush1.msra.mxu0 0.0
        %1031 = vmatprep.subr.mxu0 0.0
        %1032 = vmatpush1.msra.mxu0 0.0
        %1033 = vmatprep.subr.mxu0 0.0
        %1034 = vmatpush1.msra.mxu0 0.0
        %1035 = vmatprep.subr.mxu0 0.0
        %1036 = vmatpush1.msra.mxu0 0.0
        %1037 = vmatprep.subr.mxu0 0.0
        %1038 = vmatpush1.msra.mxu0 0.0
        %1039 = vmatprep.subr.mxu0 0.0
        %1040 = vmatpush1.msra.mxu0 0.0
        %1041 = vmatprep.subr.mxu0 0.0
        %1042 = vmatpush1.msra.mxu0 0.0
        %1043 = vmatprep.subr.mxu0 0.0
        %1044 = vmatpush1.msra.mxu0 0.0
        %1045 = vmatprep.subr.mxu0 0.0
        %1046 = vmatpush1.msra.mxu0 0.0
        %1047 = vmatprep.subr.mxu0 0.0
        %1048 = vmatpush1.msra.mxu0 0.0
        %1049 = vmatprep.subr.mxu0 0.0
        %1050 = vmatpush1.msra.mxu0 0.0
        %1051 = vmatprep.subr.mxu0 0.0
        %1052 = vmatpush1.msra.mxu0 0.0
        %1053 = vmatprep.mubr.f32.mxu0 0.0
        %1054 = vmatmul.mubr.f32.gmra.mrb[0].mxu0 %v984
        %v1055 = vpop.f32.mrb[0].mxu0
        %v1056 = vadd.f32 0.0, %v1055
        %v1057 = vpop.f32.mrb[0].mxu0
        %v1058 = vadd.f32 0.0, %v1057
        %1059 = vmatprep.mubr.f32.mxu0 0.0
        %1060 = vmatmul.mubr.f32.gmra.mrb[0].mxu0 %v987
        %v1061 = vpop.f32.mrb[0].mxu0
        %v1062 = vadd.f32 0.0, %v1061
        %v1063 = vpop.f32.mrb[0].mxu0
        %v1064 = vadd.f32 0.0, %v1063
        %1065 = vdwg.mxu0
        %v1066 = vadd.f32 %v941, %v1056
        %v1067 = vadd.f32 %v943, %v1058
        %v1068 = vadd.f32 %v947, %v1062
        %v1069 = vadd.f32 %v949, %v1064
        %1070 = vrot.lane.b32.xlu0 %v848, 127
        %v1071 = vpop.permute.xlu0 %1070
        %1072 = vrot.lane.b32.xlu0 %v849, 127
        %v1073 = vpop.permute.xlu0 %1072
        %vm1074 = vcmp.lt.s32.totalorder %v956, 127
        %v1075 = vsel %vm1074, %v1071, %v1073
        %v1076 = vsel %vm1074, %v1073, %v1071
        %v1077 = vlaneseq
        %v1078 = vshrl.u32 %v1077, 7
        %v1079 = vsub.s32 1, %v1078
        %v1080 = vrot.slane %v850, %v1079
        %v1081 = vlaneseq
        %v1082 = vshrl.u32 %v1081, 7
        %v1083 = vsub.s32 5, %v1082
        %v1084 = vrot.slane %v850, %v1083
        %v1087 = vlaneseq
        %v1088 = vshrl.u32 %v1087, 7
        %v1089 = vsub.s32 1, %v1088
        %v1090 = vrot.slane %v1080, %v1089
        %v1091 = vlaneseq
        %v1092 = vshrl.u32 %v1091, 7
        %v1093 = vsub.s32 1, %v1092
        %v1094 = vrot.slane %v1084, %v1093
        %v1095 = vmul.f32 %v1075, %v1090
        %v1096 = vmul.f32 %v1076, %v1094
        %s1097 = scalar_lea.vmem %s1, 32
        %v1098 = vld [vmem:[%s1097] sm:$0xff]
        %v1099 = vld [vmem:[%s1097 + $0x8] sm:$0xff]
        %v1101 = vsel %vm867, %v1098, 0
        %v1104 = vsel %vm867, %v1099, 0
        %1106 = vmatprep.subr.mxu0 %v1096
        %1107 = vmatpush1.msra.mxu0 %v1095
        %1108 = vmatprep.subr.mxu0 0.0
        %1109 = vmatpush1.msra.mxu0 0.0
        %1110 = vmatprep.subr.mxu0 0.0
        %1111 = vmatpush1.msra.mxu0 0.0
        %1112 = vmatprep.subr.mxu0 0.0
        %1113 = vmatpush1.msra.mxu0 0.0
        %1114 = vmatprep.subr.mxu0 0.0
        %1115 = vmatpush1.msra.mxu0 0.0
        %1116 = vmatprep.subr.mxu0 0.0
        %1117 = vmatpush1.msra.mxu0 0.0
        %1118 = vmatprep.subr.mxu0 0.0
        %1119 = vmatpush1.msra.mxu0 0.0
        %1120 = vmatprep.subr.mxu0 0.0
        %1121 = vmatpush1.msra.mxu0 0.0
        %1122 = vmatprep.subr.mxu0 0.0
        %1123 = vmatpush1.msra.mxu0 0.0
        %1124 = vmatprep.subr.mxu0 0.0
        %1125 = vmatpush1.msra.mxu0 0.0
        %1126 = vmatprep.subr.mxu0 0.0
        %1127 = vmatpush1.msra.mxu0 0.0
        %1128 = vmatprep.subr.mxu0 0.0
        %1129 = vmatpush1.msra.mxu0 0.0
        %1130 = vmatprep.subr.mxu0 0.0
        %1131 = vmatpush1.msra.mxu0 0.0
        %1132 = vmatprep.subr.mxu0 0.0
        %1133 = vmatpush1.msra.mxu0 0.0
        %1134 = vmatprep.subr.mxu0 0.0
        %1135 = vmatpush1.msra.mxu0 0.0
        %1136 = vmatprep.subr.mxu0 0.0
        %1137 = vmatpush1.msra.mxu0 0.0
        %1138 = vmatprep.subr.mxu0 0.0
        %1139 = vmatpush1.msra.mxu0 0.0
        %1140 = vmatprep.subr.mxu0 0.0
        %1141 = vmatpush1.msra.mxu0 0.0
        %1142 = vmatprep.subr.mxu0 0.0
        %1143 = vmatpush1.msra.mxu0 0.0
        %1144 = vmatprep.subr.mxu0 0.0
        %1145 = vmatpush1.msra.mxu0 0.0
        %1146 = vmatprep.subr.mxu0 0.0
        %1147 = vmatpush1.msra.mxu0 0.0
        %1148 = vmatprep.subr.mxu0 0.0
        %1149 = vmatpush1.msra.mxu0 0.0
        %1150 = vmatprep.subr.mxu0 0.0
        %1151 = vmatpush1.msra.mxu0 0.0
        %1152 = vmatprep.subr.mxu0 0.0
        %1153 = vmatpush1.msra.mxu0 0.0
        %1154 = vmatprep.subr.mxu0 0.0
        %1155 = vmatpush1.msra.mxu0 0.0
        %1156 = vmatprep.subr.mxu0 0.0
        %1157 = vmatpush1.msra.mxu0 0.0
        %1158 = vmatprep.subr.mxu0 0.0
        %1159 = vmatpush1.msra.mxu0 0.0
        %1160 = vmatprep.subr.mxu0 0.0
        %1161 = vmatpush1.msra.mxu0 0.0
        %1162 = vmatprep.subr.mxu0 0.0
        %1163 = vmatpush1.msra.mxu0 0.0
        %1164 = vmatprep.subr.mxu0 0.0
        %1165 = vmatpush1.msra.mxu0 0.0
        %1166 = vmatprep.subr.mxu0 0.0
        %1167 = vmatpush1.msra.mxu0 0.0
        %1168 = vmatprep.subr.mxu0 0.0
        %1169 = vmatpush1.msra.mxu0 0.0
        %1170 = vmatprep.mubr.f32.mxu0 0.0
        %1171 = vmatmul.mubr.f32.gmra.mrb[0].mxu0 %v1101
        %v1172 = vpop.f32.mrb[0].mxu0
        %v1173 = vadd.f32 0.0, %v1172
        %v1174 = vpop.f32.mrb[0].mxu0
        %v1175 = vadd.f32 0.0, %v1174
        %1176 = vmatprep.mubr.f32.mxu0 0.0
        %1177 = vmatmul.mubr.f32.gmra.mrb[0].mxu0 %v1104
        %v1178 = vpop.f32.mrb[0].mxu0
        %v1179 = vadd.f32 0.0, %v1178
        %v1180 = vpop.f32.mrb[0].mxu0
        %v1181 = vadd.f32 0.0, %v1180
        %1182 = vdwg.mxu0
        %v1183 = vadd.f32 %v1066, %v1173
        %v1184 = vadd.f32 %v1067, %v1175
        %v1185 = vadd.f32 %v1068, %v1179
        %v1186 = vadd.f32 %v1069, %v1181
        %v1187 = vmax.f32 %v1183, 0.0
        %v1188 = vmax.f32 %v1184, 0.0
        %v1189 = vmax.f32 %v1185, 0.0
        %v1190 = vmax.f32 %v1186, 0.0
        %s1191 = scalar_lea.vmem %s3, 16
        %v1192 = vld [vmem:[%s1191] sm:$0xff]
        %v1193 = vld [vmem:[%s1191 + $0x8] sm:$0xff]
        %v1194 = vld [vmem:[%s4] sm:$0xff]
        %v1195 = vld [vmem:[%s4 + $0x8] sm:$0xff]
        %1197 = vset.pattern.permute.xlu0 0
        %1198 = vperm.xlu0 %1197, %v1194
        %v1199 = vpop.permute.xlu0 %1198
        %1202 = vset.pattern.permute.xlu0 0
        %1203 = vperm.xlu0 %1202, %v1195
        %v1204 = vpop.permute.xlu0 %1203
        %v1207 = vsel %vm867, %v1192, 0
        %v1210 = vsel %vm867, %v1193, 0
        %1212 = vmatprep.subr.mxu0 %v849
        %1213 = vmatpush1.msra.mxu0 %v848
        %1214 = vmatprep.subr.mxu0 0.0
        %1215 = vmatpush1.msra.mxu0 0.0
        %1216 = vmatprep.subr.mxu0 0.0
        %1217 = vmatpush1.msra.mxu0 0.0
        %1218 = vmatprep.subr.mxu0 0.0
        %1219 = vmatpush1.msra.mxu0 0.0
        %1220 = vmatprep.subr.mxu0 0.0
        %1221 = vmatpush1.msra.mxu0 0.0
        %1222 = vmatprep.subr.mxu0 0.0
        %1223 = vmatpush1.msra.mxu0 0.0
        %1224 = vmatprep.subr.mxu0 0.0
        %1225 = vmatpush1.msra.mxu0 0.0
        %1226 = vmatprep.subr.mxu0 0.0
        %1227 = vmatpush1.msra.mxu0 0.0
        %1228 = vmatprep.subr.mxu0 0.0
        %1229 = vmatpush1.msra.mxu0 0.0
        %1230 = vmatprep.subr.mxu0 0.0
        %1231 = vmatpush1.msra.mxu0 0.0
        %1232 = vmatprep.subr.mxu0 0.0
        %1233 = vmatpush1.msra.mxu0 0.0
        %1234 = vmatprep.subr.mxu0 0.0
        %1235 = vmatpush1.msra.mxu0 0.0
        %1236 = vmatprep.subr.mxu0 0.0
        %1237 = vmatpush1.msra.mxu0 0.0
        %1238 = vmatprep.subr.mxu0 0.0
        %1239 = vmatpush1.msra.mxu0 0.0
        %1240 = vmatprep.subr.mxu0 0.0
        %1241 = vmatpush1.msra.mxu0 0.0
        %1242 = vmatprep.subr.mxu0 0.0
        %1243 = vmatpush1.msra.mxu0 0.0
        %1244 = vmatprep.subr.mxu0 0.0
        %1245 = vmatpush1.msra.mxu0 0.0
        %1246 = vmatprep.subr.mxu0 0.0
        %1247 = vmatpush1.msra.mxu0 0.0
        %1248 = vmatprep.subr.mxu0 0.0
        %1249 = vmatpush1.msra.mxu0 0.0
        %1250 = vmatprep.subr.mxu0 0.0
        %1251 = vmatpush1.msra.mxu0 0.0
        %1252 = vmatprep.subr.mxu0 0.0
        %1253 = vmatpush1.msra.mxu0 0.0
        %1254 = vmatprep.subr.mxu0 0.0
        %1255 = vmatpush1.msra.mxu0 0.0
        %1256 = vmatprep.subr.mxu0 0.0
        %1257 = vmatpush1.msra.mxu0 0.0
        %1258 = vmatprep.subr.mxu0 0.0
        %1259 = vmatpush1.msra.mxu0 0.0
        %1260 = vmatprep.subr.mxu0 0.0
        %1261 = vmatpush1.msra.mxu0 0.0
        %1262 = vmatprep.subr.mxu0 0.0
        %1263 = vmatpush1.msra.mxu0 0.0
        %1264 = vmatprep.subr.mxu0 0.0
        %1265 = vmatpush1.msra.mxu0 0.0
        %1266 = vmatprep.subr.mxu0 0.0
        %1267 = vmatpush1.msra.mxu0 0.0
        %1268 = vmatprep.subr.mxu0 0.0
        %1269 = vmatpush1.msra.mxu0 0.0
        %1270 = vmatprep.subr.mxu0 0.0
        %1271 = vmatpush1.msra.mxu0 0.0
        %1272 = vmatprep.subr.mxu0 0.0
        %1273 = vmatpush1.msra.mxu0 0.0
        %1274 = vmatprep.subr.mxu0 0.0
        %1275 = vmatpush1.msra.mxu0 0.0
        %1276 = vmatprep.mubr.f32.mxu0 0.0
        %1277 = vmatmul.mubr.f32.gmra.mrb[0].mxu0 %v1207
        %v1278 = vpop.f32.mrb[0].mxu0
        %v1279 = vadd.f32 %v1199, %v1278
        %v1280 = vpop.f32.mrb[0].mxu0
        %v1281 = vadd.f32 %v1199, %v1280
        %1282 = vmatprep.mubr.f32.mxu0 0.0
        %1283 = vmatmul.mubr.f32.gmra.mrb[0].mxu0 %v1210
        %v1284 = vpop.f32.mrb[0].mxu0
        %v1285 = vadd.f32 %v1204, %v1284
        %v1286 = vpop.f32.mrb[0].mxu0
        %v1287 = vadd.f32 %v1204, %v1286
        %1288 = vdwg.mxu0
        %1289 = vrot.lane.b32.xlu0 %v848, 2
        %v1290 = vpop.permute.xlu0 %1289
        %1291 = vrot.lane.b32.xlu0 %v849, 2
        %v1292 = vpop.permute.xlu0 %1291
        %vm1293 = vcmp.lt.s32.totalorder %v956, 2
        %v1294 = vsel %vm1293, %v1290, %v1292
        %v1295 = vsel %vm1293, %v1292, %v1290
        %v1296 = vlaneseq
        %v1297 = vshrl.u32 %v1296, 7
        %v1298 = vsub.s32 2, %v1297
        %v1299 = vrot.slane %v850, %v1298
        %v1300 = vlaneseq
        %v1301 = vshrl.u32 %v1300, 7
        %v1302 = vsub.s32 6, %v1301
        %v1303 = vrot.slane %v850, %v1302
        %v1306 = vlaneseq
        %v1307 = vshrl.u32 %v1306, 7
        %v1308 = vsub.s32 2, %v1307
        %v1309 = vrot.slane %v1299, %v1308
        %v1310 = vlaneseq
        %v1311 = vshrl.u32 %v1310, 7
        %v1312 = vsub.s32 2, %v1311
        %v1313 = vrot.slane %v1303, %v1312
        %v1314 = vmul.f32 %v1295, %v1309
        %v1315 = vmul.f32 %v1294, %v1313
        %v1316 = vld [vmem:[%s3] sm:$0xff]
        %v1317 = vld [vmem:[%s3 + $0x8] sm:$0xff]
        %v1319 = vsel %vm867, %v1316, 0
        %v1322 = vsel %vm867, %v1317, 0
        %1324 = vmatprep.subr.mxu0 %v1315
        %1325 = vmatpush1.msra.mxu0 %v1314
        %1326 = vmatprep.subr.mxu0 0.0
        %1327 = vmatpush1.msra.mxu0 0.0
        %1328 = vmatprep.subr.mxu0 0.0
        %1329 = vmatpush1.msra.mxu0 0.0
        %1330 = vmatprep.subr.mxu0 0.0
        %1331 = vmatpush1.msra.mxu0 0.0
        %1332 = vmatprep.subr.mxu0 0.0
        %1333 = vmatpush1.msra.mxu0 0.0
        %1334 = vmatprep.subr.mxu0 0.0
        %1335 = vmatpush1.msra.mxu0 0.0
        %1336 = vmatprep.subr.mxu0 0.0
        %1337 = vmatpush1.msra.mxu0 0.0
        %1338 = vmatprep.subr.mxu0 0.0
        %1339 = vmatpush1.msra.mxu0 0.0
        %1340 = vmatprep.subr.mxu0 0.0
        %1341 = vmatpush1.msra.mxu0 0.0
        %1342 = vmatprep.subr.mxu0 0.0
        %1343 = vmatpush1.msra.mxu0 0.0
        %1344 = vmatprep.subr.mxu0 0.0
        %1345 = vmatpush1.msra.mxu0 0.0
        %1346 = vmatprep.subr.mxu0 0.0
        %1347 = vmatpush1.msra.mxu0 0.0
        %1348 = vmatprep.subr.mxu0 0.0
        %1349 = vmatpush1.msra.mxu0 0.0
        %1350 = vmatprep.subr.mxu0 0.0
        %1351 = vmatpush1.msra.mxu0 0.0
        %1352 = vmatprep.subr.mxu0 0.0
        %1353 = vmatpush1.msra.mxu0 0.0
        %1354 = vmatprep.subr.mxu0 0.0
        %1355 = vmatpush1.msra.mxu0 0.0
        %1356 = vmatprep.subr.mxu0 0.0
        %1357 = vmatpush1.msra.mxu0 0.0
        %1358 = vmatprep.subr.mxu0 0.0
        %1359 = vmatpush1.msra.mxu0 0.0
        %1360 = vmatprep.subr.mxu0 0.0
        %1361 = vmatpush1.msra.mxu0 0.0
        %1362 = vmatprep.subr.mxu0 0.0
        %1363 = vmatpush1.msra.mxu0 0.0
        %1364 = vmatprep.subr.mxu0 0.0
        %1365 = vmatpush1.msra.mxu0 0.0
        %1366 = vmatprep.subr.mxu0 0.0
        %1367 = vmatpush1.msra.mxu0 0.0
        %1368 = vmatprep.subr.mxu0 0.0
        %1369 = vmatpush1.msra.mxu0 0.0
        %1370 = vmatprep.subr.mxu0 0.0
        %1371 = vmatpush1.msra.mxu0 0.0
        %1372 = vmatprep.subr.mxu0 0.0
        %1373 = vmatpush1.msra.mxu0 0.0
        %1374 = vmatprep.subr.mxu0 0.0
        %1375 = vmatpush1.msra.mxu0 0.0
        %1376 = vmatprep.subr.mxu0 0.0
        %1377 = vmatpush1.msra.mxu0 0.0
        %1378 = vmatprep.subr.mxu0 0.0
        %1379 = vmatpush1.msra.mxu0 0.0
        %1380 = vmatprep.subr.mxu0 0.0
        %1381 = vmatpush1.msra.mxu0 0.0
        %1382 = vmatprep.subr.mxu0 0.0
        %1383 = vmatpush1.msra.mxu0 0.0
        %1384 = vmatprep.subr.mxu0 0.0
        %1385 = vmatpush1.msra.mxu0 0.0
        %1386 = vmatprep.subr.mxu0 0.0
        %1387 = vmatpush1.msra.mxu0 0.0
        %1388 = vmatprep.mubr.f32.mxu0 0.0
        %1389 = vmatmul.mubr.f32.gmra.mrb[0].mxu0 %v1319
        %v1390 = vpop.f32.mrb[0].mxu0
        %v1391 = vadd.f32 0.0, %v1390
        %v1392 = vpop.f32.mrb[0].mxu0
        %v1393 = vadd.f32 0.0, %v1392
        %1394 = vmatprep.mubr.f32.mxu0 0.0
        %1395 = vmatmul.mubr.f32.gmra.mrb[0].mxu0 %v1322
        %v1396 = vpop.f32.mrb[0].mxu0
        %v1397 = vadd.f32 0.0, %v1396
        %v1398 = vpop.f32.mrb[0].mxu0
        %v1399 = vadd.f32 0.0, %v1398
        %1400 = vdwg.mxu0
        %v1401 = vadd.f32 %v1279, %v1391
        %v1402 = vadd.f32 %v1281, %v1393
        %v1403 = vadd.f32 %v1285, %v1397
        %v1404 = vadd.f32 %v1287, %v1399
        %1405 = vrot.lane.b32.xlu0 %v848, 126
        %v1406 = vpop.permute.xlu0 %1405
        %1407 = vrot.lane.b32.xlu0 %v849, 126
        %v1408 = vpop.permute.xlu0 %1407
        %vm1409 = vcmp.lt.s32.totalorder %v956, 126
        %v1410 = vsel %vm1409, %v1406, %v1408
        %v1411 = vsel %vm1409, %v1408, %v1406
        %v1412 = vlaneseq
        %v1413 = vshrl.u32 %v1412, 7
        %v1414 = vsub.s32 3, %v1413
        %v1415 = vrot.slane %v850, %v1414
        %v1416 = vlaneseq
        %v1417 = vshrl.u32 %v1416, 7
        %v1418 = vsub.s32 7, %v1417
        %v1419 = vrot.slane %v850, %v1418
        %v1422 = vlaneseq
        %v1423 = vshrl.u32 %v1422, 7
        %v1424 = vsub.s32 3, %v1423
        %v1425 = vrot.slane %v1415, %v1424
        %v1426 = vlaneseq
        %v1427 = vshrl.u32 %v1426, 7
        %v1428 = vsub.s32 3, %v1427
        %v1429 = vrot.slane %v1419, %v1428
        %v1430 = vmul.f32 %v1410, %v1425
        %v1431 = vmul.f32 %v1411, %v1429
        %s1432 = scalar_lea.vmem %s3, 32
        %v1433 = vld [vmem:[%s1432] sm:$0xff]
        %v1434 = vld [vmem:[%s1432 + $0x8] sm:$0xff]
        %v1436 = vsel %vm867, %v1433, 0
        %v1439 = vsel %vm867, %v1434, 0
        %1441 = vmatprep.subr.mxu0 %v1431
        %1442 = vmatpush1.msra.mxu0 %v1430
        %1443 = vmatprep.subr.mxu0 0.0
        %1444 = vmatpush1.msra.mxu0 0.0
        %1445 = vmatprep.subr.mxu0 0.0
        %1446 = vmatpush1.msra.mxu0 0.0
        %1447 = vmatprep.subr.mxu0 0.0
        %1448 = vmatpush1.msra.mxu0 0.0
        %1449 = vmatprep.subr.mxu0 0.0
        %1450 = vmatpush1.msra.mxu0 0.0
        %1451 = vmatprep.subr.mxu0 0.0
        %1452 = vmatpush1.msra.mxu0 0.0
        %1453 = vmatprep.subr.mxu0 0.0
        %1454 = vmatpush1.msra.mxu0 0.0
        %1455 = vmatprep.subr.mxu0 0.0
        %1456 = vmatpush1.msra.mxu0 0.0
        %1457 = vmatprep.subr.mxu0 0.0
        %1458 = vmatpush1.msra.mxu0 0.0
        %1459 = vmatprep.subr.mxu0 0.0
        %1460 = vmatpush1.msra.mxu0 0.0
        %1461 = vmatprep.subr.mxu0 0.0
        %1462 = vmatpush1.msra.mxu0 0.0
        %1463 = vmatprep.subr.mxu0 0.0
        %1464 = vmatpush1.msra.mxu0 0.0
        %1465 = vmatprep.subr.mxu0 0.0
        %1466 = vmatpush1.msra.mxu0 0.0
        %1467 = vmatprep.subr.mxu0 0.0
        %1468 = vmatpush1.msra.mxu0 0.0
        %1469 = vmatprep.subr.mxu0 0.0
        %1470 = vmatpush1.msra.mxu0 0.0
        %1471 = vmatprep.subr.mxu0 0.0
        %1472 = vmatpush1.msra.mxu0 0.0
        %1473 = vmatprep.subr.mxu0 0.0
        %1474 = vmatpush1.msra.mxu0 0.0
        %1475 = vmatprep.subr.mxu0 0.0
        %1476 = vmatpush1.msra.mxu0 0.0
        %1477 = vmatprep.subr.mxu0 0.0
        %1478 = vmatpush1.msra.mxu0 0.0
        %1479 = vmatprep.subr.mxu0 0.0
        %1480 = vmatpush1.msra.mxu0 0.0
        %1481 = vmatprep.subr.mxu0 0.0
        %1482 = vmatpush1.msra.mxu0 0.0
        %1483 = vmatprep.subr.mxu0 0.0
        %1484 = vmatpush1.msra.mxu0 0.0
        %1485 = vmatprep.subr.mxu0 0.0
        %1486 = vmatpush1.msra.mxu0 0.0
        %1487 = vmatprep.subr.mxu0 0.0
        %1488 = vmatpush1.msra.mxu0 0.0
        %1489 = vmatprep.subr.mxu0 0.0
        %1490 = vmatpush1.msra.mxu0 0.0
        %1491 = vmatprep.subr.mxu0 0.0
        %1492 = vmatpush1.msra.mxu0 0.0
        %1493 = vmatprep.subr.mxu0 0.0
        %1494 = vmatpush1.msra.mxu0 0.0
        %1495 = vmatprep.subr.mxu0 0.0
        %1496 = vmatpush1.msra.mxu0 0.0
        %1497 = vmatprep.subr.mxu0 0.0
        %1498 = vmatpush1.msra.mxu0 0.0
        %1499 = vmatprep.subr.mxu0 0.0
        %1500 = vmatpush1.msra.mxu0 0.0
        %1501 = vmatprep.subr.mxu0 0.0
        %1502 = vmatpush1.msra.mxu0 0.0
        %1503 = vmatprep.subr.mxu0 0.0
        %1504 = vmatpush1.msra.mxu0 0.0
        %1505 = vmatprep.mubr.f32.mxu0 0.0
        %1506 = vmatmul.mubr.f32.gmra.mrb[0].mxu0 %v1436
        %v1507 = vpop.f32.mrb[0].mxu0
        %v1508 = vadd.f32 0.0, %v1507
        %v1509 = vpop.f32.mrb[0].mxu0
        %v1510 = vadd.f32 0.0, %v1509
        %1511 = vmatprep.mubr.f32.mxu0 0.0
        %1512 = vmatmul.mubr.f32.gmra.mrb[0].mxu0 %v1439
        %v1513 = vpop.f32.mrb[0].mxu0
        %v1514 = vadd.f32 0.0, %v1513
        %v1515 = vpop.f32.mrb[0].mxu0
        %v1516 = vadd.f32 0.0, %v1515
        %1517 = vdwg.mxu0
        %v1518 = vadd.f32 %v1401, %v1508
        %v1519 = vadd.f32 %v1402, %v1510
        %v1520 = vadd.f32 %v1403, %v1514
        %v1521 = vadd.f32 %v1404, %v1516
        %v1522 = vmax.f32 %v1518, 0.0
        %v1523 = vmax.f32 %v1519, 0.0
        %v1524 = vmax.f32 %v1520, 0.0
        %v1525 = vmax.f32 %v1521, 0.0
        %v1526 = vld [vmem:[#allocation2] sm:$0xff]
        %v1527 = vld [vmem:[#allocation2 + $0x8] sm:$0xff]
        %v1528 = vld [vmem:[#allocation2 + $0x10] sm:$0xff]
        %v1529 = vld [vmem:[#allocation2 + $0x18] sm:$0xff]
        %v1530 = vld [vmem:[#allocation2 + $0x20] sm:$0xff]
        %v1531 = vld [vmem:[#allocation2 + $0x28] sm:$0xff]
        %v1532 = vld [vmem:[#allocation2 + $0x30] sm:$0xff]
        %v1533 = vld [vmem:[#allocation2 + $0x38] sm:$0xff]
        %v1534 = vld [vmem:[#allocation2 + $0x40] sm:$0xff]
        %v1535 = vld [vmem:[#allocation2 + $0x48] sm:$0xff]
        %v1536 = vld [vmem:[#allocation2 + $0x50] sm:$0xff]
        %v1537 = vld [vmem:[#allocation2 + $0x58] sm:$0xff]
        %v1538 = vld [vmem:[#allocation2 + $0x60] sm:$0xff]
        %v1539 = vld [vmem:[#allocation2 + $0x68] sm:$0xff]
        %v1540 = vld [vmem:[#allocation2 + $0x70] sm:$0xff]
        %v1541 = vld [vmem:[#allocation2 + $0x78] sm:$0xff]
        %v1542 = vld [vmem:[#allocation2 + $0x80] sm:$0xff]
        %v1543 = vld [vmem:[#allocation2 + $0x88] sm:$0xff]
        %v1544 = vld [vmem:[#allocation2 + $0x90] sm:$0xff]
        %v1545 = vld [vmem:[#allocation2 + $0x98] sm:$0xff]
        %v1546 = vld [vmem:[#allocation2 + $0xa0] sm:$0xff]
        %v1547 = vld [vmem:[#allocation2 + $0xa8] sm:$0xff]
        %v1548 = vld [vmem:[#allocation2 + $0xb0] sm:$0xff]
        %v1549 = vld [vmem:[#allocation2 + $0xb8] sm:$0xff]
        %v1550 = vld [vmem:[#allocation2 + $0xc0] sm:$0xff]
        %v1551 = vld [vmem:[#allocation2 + $0xc8] sm:$0xff]
        %v1552 = vld [vmem:[#allocation2 + $0xd0] sm:$0xff]
        %v1553 = vld [vmem:[#allocation2 + $0xd8] sm:$0xff]
        %v1554 = vld [vmem:[#allocation2 + $0xe0] sm:$0xff]
        %v1555 = vld [vmem:[#allocation2 + $0xe8] sm:$0xff]
        %v1556 = vld [vmem:[#allocation2 + $0xf0] sm:$0xff]
        %v1557 = vld [vmem:[#allocation2 + $0xf8] sm:$0xff]
        %v1558 = vld [vmem:[#allocation2 + $0x100] sm:$0xff]
        %v1559 = vld [vmem:[#allocation2 + $0x108] sm:$0xff]
        %v1560 = vld [vmem:[#allocation2 + $0x110] sm:$0xff]
        %v1561 = vld [vmem:[#allocation2 + $0x118] sm:$0xff]
        %v1562 = vld [vmem:[#allocation2 + $0x120] sm:$0xff]
        %v1563 = vld [vmem:[#allocation2 + $0x128] sm:$0xff]
        %v1564 = vld [vmem:[#allocation2 + $0x130] sm:$0xff]
        %v1565 = vld [vmem:[#allocation2 + $0x138] sm:$0xff]
        %v1566 = vld [vmem:[#allocation2 + $0x140] sm:$0xff]
        %v1567 = vld [vmem:[#allocation2 + $0x148] sm:$0xff]
        %v1568 = vld [vmem:[#allocation2 + $0x150] sm:$0xff]
        %v1569 = vld [vmem:[#allocation2 + $0x158] sm:$0xff]
        %v1570 = vld [vmem:[#allocation2 + $0x160] sm:$0xff]
        %v1571 = vld [vmem:[#allocation2 + $0x168] sm:$0xff]
        %v1572 = vld [vmem:[#allocation2 + $0x170] sm:$0xff]
        %v1573 = vld [vmem:[#allocation2 + $0x178] sm:$0xff]
        %v1574 = vld [vmem:[#allocation2 + $0x180] sm:$0xff]
        %v1575 = vld [vmem:[#allocation2 + $0x188] sm:$0xff]
        %v1576 = vld [vmem:[#allocation2 + $0x190] sm:$0xff]
        %v1577 = vld [vmem:[#allocation2 + $0x198] sm:$0xff]
        %v1578 = vld [vmem:[#allocation2 + $0x1a0] sm:$0xff]
        %v1579 = vld [vmem:[#allocation2 + $0x1a8] sm:$0xff]
        %v1580 = vld [vmem:[#allocation2 + $0x1b0] sm:$0xff]
        %v1581 = vld [vmem:[#allocation2 + $0x1b8] sm:$0xff]
        %v1582 = vld [vmem:[#allocation2 + $0x1c0] sm:$0xff]
        %v1583 = vld [vmem:[#allocation2 + $0x1c8] sm:$0xff]
        %v1584 = vld [vmem:[#allocation2 + $0x1d0] sm:$0xff]
        %v1585 = vld [vmem:[#allocation2 + $0x1d8] sm:$0xff]
        %v1586 = vld [vmem:[#allocation2 + $0x1e0] sm:$0xff]
        %v1587 = vld [vmem:[#allocation2 + $0x1e8] sm:$0xff]
        %v1588 = vld [vmem:[#allocation2 + $0x1f0] sm:$0xff]
        %v1589 = vld [vmem:[#allocation2 + $0x1f8] sm:$0xff]
        %v1590 = vld [vmem:[#allocation2 + $0x200] sm:$0xff]
        %v1591 = vld [vmem:[#allocation2 + $0x208] sm:$0xff]
        %v1592 = vld [vmem:[#allocation2 + $0x210] sm:$0xff]
        %v1593 = vld [vmem:[#allocation2 + $0x218] sm:$0xff]
        %v1594 = vld [vmem:[#allocation2 + $0x220] sm:$0xff]
        %v1595 = vld [vmem:[#allocation2 + $0x228] sm:$0xff]
        %v1596 = vld [vmem:[#allocation2 + $0x230] sm:$0xff]
        %v1597 = vld [vmem:[#allocation2 + $0x238] sm:$0xff]
        %v1598 = vld [vmem:[#allocation2 + $0x240] sm:$0xff]
        %v1599 = vld [vmem:[#allocation2 + $0x248] sm:$0xff]
        %v1600 = vld [vmem:[#allocation2 + $0x250] sm:$0xff]
        %v1601 = vld [vmem:[#allocation2 + $0x258] sm:$0xff]
        %v1602 = vld [vmem:[#allocation2 + $0x260] sm:$0xff]
        %v1603 = vld [vmem:[#allocation2 + $0x268] sm:$0xff]
        %v1604 = vld [vmem:[#allocation2 + $0x270] sm:$0xff]
        %v1605 = vld [vmem:[#allocation2 + $0x278] sm:$0xff]
        %v1606 = vld [vmem:[#allocation2 + $0x280] sm:$0xff]
        %v1607 = vld [vmem:[#allocation2 + $0x288] sm:$0xff]
        %v1608 = vld [vmem:[#allocation2 + $0x290] sm:$0xff]
        %v1609 = vld [vmem:[#allocation2 + $0x298] sm:$0xff]
        %v1610 = vld [vmem:[#allocation2 + $0x2a0] sm:$0xff]
        %v1611 = vld [vmem:[#allocation2 + $0x2a8] sm:$0xff]
        %v1612 = vld [vmem:[#allocation2 + $0x2b0] sm:$0xff]
        %v1613 = vld [vmem:[#allocation2 + $0x2b8] sm:$0xff]
        %v1614 = vld [vmem:[#allocation2 + $0x2c0] sm:$0xff]
        %v1615 = vld [vmem:[#allocation2 + $0x2c8] sm:$0xff]
        %v1616 = vld [vmem:[#allocation2 + $0x2d0] sm:$0xff]
        %v1617 = vld [vmem:[#allocation2 + $0x2d8] sm:$0xff]
        %v1618 = vld [vmem:[#allocation2 + $0x2e0] sm:$0xff]
        %v1619 = vld [vmem:[#allocation2 + $0x2e8] sm:$0xff]
        %v1620 = vld [vmem:[#allocation2 + $0x2f0] sm:$0xff]
        %v1621 = vld [vmem:[#allocation2 + $0x2f8] sm:$0xff]
        %v1622 = vld [vmem:[#allocation2 + $0x300] sm:$0xff]
        %v1623 = vld [vmem:[#allocation2 + $0x308] sm:$0xff]
        %v1624 = vld [vmem:[#allocation2 + $0x310] sm:$0xff]
        %v1625 = vld [vmem:[#allocation2 + $0x318] sm:$0xff]
        %v1626 = vld [vmem:[#allocation2 + $0x320] sm:$0xff]
        %v1627 = vld [vmem:[#allocation2 + $0x328] sm:$0xff]
        %v1628 = vld [vmem:[#allocation2 + $0x330] sm:$0xff]
        %v1629 = vld [vmem:[#allocation2 + $0x338] sm:$0xff]
        %v1630 = vld [vmem:[#allocation2 + $0x340] sm:$0xff]
        %v1631 = vld [vmem:[#allocation2 + $0x348] sm:$0xff]
        %v1632 = vld [vmem:[#allocation2 + $0x350] sm:$0xff]
        %v1633 = vld [vmem:[#allocation2 + $0x358] sm:$0xff]
        %v1634 = vld [vmem:[#allocation2 + $0x360] sm:$0xff]
        %v1635 = vld [vmem:[#allocation2 + $0x368] sm:$0xff]
        %v1636 = vld [vmem:[#allocation2 + $0x370] sm:$0xff]
        %v1637 = vld [vmem:[#allocation2 + $0x378] sm:$0xff]
        %v1638 = vld [vmem:[#allocation2 + $0x380] sm:$0xff]
        %v1639 = vld [vmem:[#allocation2 + $0x388] sm:$0xff]
        %v1640 = vld [vmem:[#allocation2 + $0x390] sm:$0xff]
        %v1641 = vld [vmem:[#allocation2 + $0x398] sm:$0xff]
        %v1642 = vld [vmem:[#allocation2 + $0x3a0] sm:$0xff]
        %v1643 = vld [vmem:[#allocation2 + $0x3a8] sm:$0xff]
        %v1644 = vld [vmem:[#allocation2 + $0x3b0] sm:$0xff]
        %v1645 = vld [vmem:[#allocation2 + $0x3b8] sm:$0xff]
        %v1646 = vld [vmem:[#allocation2 + $0x3c0] sm:$0xff]
        %v1647 = vld [vmem:[#allocation2 + $0x3c8] sm:$0xff]
        %v1648 = vld [vmem:[#allocation2 + $0x3d0] sm:$0xff]
        %v1649 = vld [vmem:[#allocation2 + $0x3d8] sm:$0xff]
        %v1650 = vld [vmem:[#allocation2 + $0x3e0] sm:$0xff]
        %v1651 = vld [vmem:[#allocation2 + $0x3e8] sm:$0xff]
        %v1652 = vld [vmem:[#allocation2 + $0x3f0] sm:$0xff]
        %v1653 = vld [vmem:[#allocation2 + $0x3f8] sm:$0xff]
        %1654 = vmatprep.subr.mxu0 %v1527
        %1655 = vmatpush1.msra.mxu0 %v1526
        %1656 = vmatprep.subr.mxu0 %v1531
        %1657 = vmatpush1.msra.mxu0 %v1530
        %1658 = vmatprep.subr.mxu0 %v1535
        %1659 = vmatpush1.msra.mxu0 %v1534
        %1660 = vmatprep.subr.mxu0 %v1539
        %1661 = vmatpush1.msra.mxu0 %v1538
        %1662 = vmatprep.subr.mxu0 %v1543
        %1663 = vmatpush1.msra.mxu0 %v1542
        %1664 = vmatprep.subr.mxu0 %v1547
        %1665 = vmatpush1.msra.mxu0 %v1546
        %1666 = vmatprep.subr.mxu0 %v1551
        %1667 = vmatpush1.msra.mxu0 %v1550
        %1668 = vmatprep.subr.mxu0 %v1555
        %1669 = vmatpush1.msra.mxu0 %v1554
        %1670 = vmatprep.subr.mxu0 %v1559
        %1671 = vmatpush1.msra.mxu0 %v1558
        %1672 = vmatprep.subr.mxu0 %v1563
        %1673 = vmatpush1.msra.mxu0 %v1562
        %1674 = vmatprep.subr.mxu0 %v1567
        %1675 = vmatpush1.msra.mxu0 %v1566
        %1676 = vmatprep.subr.mxu0 %v1571
        %1677 = vmatpush1.msra.mxu0 %v1570
        %1678 = vmatprep.subr.mxu0 %v1575
        %1679 = vmatpush1.msra.mxu0 %v1574
        %1680 = vmatprep.subr.mxu0 %v1579
        %1681 = vmatpush1.msra.mxu0 %v1578
        %1682 = vmatprep.subr.mxu0 %v1583
        %1683 = vmatpush1.msra.mxu0 %v1582
        %1684 = vmatprep.subr.mxu0 %v1587
        %1685 = vmatpush1.msra.mxu0 %v1586
        %1686 = vmatprep.subr.mxu0 %v1591
        %1687 = vmatpush1.msra.mxu0 %v1590
        %1688 = vmatprep.subr.mxu0 %v1595
        %1689 = vmatpush1.msra.mxu0 %v1594
        %1690 = vmatprep.subr.mxu0 %v1599
        %1691 = vmatpush1.msra.mxu0 %v1598
        %1692 = vmatprep.subr.mxu0 %v1603
        %1693 = vmatpush1.msra.mxu0 %v1602
        %1694 = vmatprep.subr.mxu0 %v1607
        %1695 = vmatpush1.msra.mxu0 %v1606
        %1696 = vmatprep.subr.mxu0 %v1611
        %1697 = vmatpush1.msra.mxu0 %v1610
        %1698 = vmatprep.subr.mxu0 %v1615
        %1699 = vmatpush1.msra.mxu0 %v1614
        %1700 = vmatprep.subr.mxu0 %v1619
        %1701 = vmatpush1.msra.mxu0 %v1618
        %1702 = vmatprep.subr.mxu0 %v1623
        %1703 = vmatpush1.msra.mxu0 %v1622
        %1704 = vmatprep.subr.mxu0 %v1627
        %1705 = vmatpush1.msra.mxu0 %v1626
        %1706 = vmatprep.subr.mxu0 %v1631
        %1707 = vmatpush1.msra.mxu0 %v1630
        %1708 = vmatprep.subr.mxu0 %v1635
        %1709 = vmatpush1.msra.mxu0 %v1634
        %1710 = vmatprep.subr.mxu0 %v1639
        %1711 = vmatpush1.msra.mxu0 %v1638
        %1712 = vmatprep.subr.mxu0 %v1643
        %1713 = vmatpush1.msra.mxu0 %v1642
        %1714 = vmatprep.subr.mxu0 %v1647
        %1715 = vmatpush1.msra.mxu0 %v1646
        %1716 = vmatprep.subr.mxu0 %v1651
        %1717 = vmatpush1.msra.mxu0 %v1650
        %1718 = vmatprep.mubr.f32.mxu0 %v1188
        %1719 = vmatmul.mubr.f32.gmra.mrb[0].mxu0 %v1187
        %v1720 = vpop.f32.mrb[0].mxu0
        %v1721 = vadd.f32 0.0, %v1720
        %v1722 = vpop.f32.mrb[0].mxu0
        %v1723 = vadd.f32 0.0, %v1722
        %1724 = vmatprep.mubr.f32.mxu0 %v1190
        %1725 = vmatmul.mubr.f32.gmra.mrb[0].mxu0 %v1189
        %v1726 = vpop.f32.mrb[0].mxu0
        %v1727 = vadd.f32 0.0, %v1726
        %v1728 = vpop.f32.mrb[0].mxu0
        %v1729 = vadd.f32 0.0, %v1728
        %1730 = vmatprep.mubr.f32.mxu0 %v1523
        %1731 = vmatmul.mubr.f32.gmra.mrb[0].mxu0 %v1522
        %v1732 = vpop.f32.mrb[0].mxu0
        %v1733 = vadd.f32 0.0, %v1732
        %v1734 = vpop.f32.mrb[0].mxu0
        %v1735 = vadd.f32 0.0, %v1734
        %1736 = vmatprep.mubr.f32.mxu0 %v1525
        %1737 = vmatmul.mubr.f32.gmra.mrb[0].mxu0 %v1524
        %v1738 = vpop.f32.mrb[0].mxu0
        %v1739 = vadd.f32 0.0, %v1738
        %v1740 = vpop.f32.mrb[0].mxu0
        %v1741 = vadd.f32 0.0, %v1740
        %1742 = vdwg.mxu0
        %1743 = vmatprep.subr.mxu0 %v1529
        %1744 = vmatpush1.msra.mxu0 %v1528
        %1745 = vmatprep.subr.mxu0 %v1533
        %1746 = vmatpush1.msra.mxu0 %v1532
        %1747 = vmatprep.subr.mxu0 %v1537
        %1748 = vmatpush1.msra.mxu0 %v1536
        %1749 = vmatprep.subr.mxu0 %v1541
        %1750 = vmatpush1.msra.mxu0 %v1540
        %1751 = vmatprep.subr.mxu0 %v1545
        %1752 = vmatpush1.msra.mxu0 %v1544
        %1753 = vmatprep.subr.mxu0 %v1549
        %1754 = vmatpush1.msra.mxu0 %v1548
        %1755 = vmatprep.subr.mxu0 %v1553
        %1756 = vmatpush1.msra.mxu0 %v1552
        %1757 = vmatprep.subr.mxu0 %v1557
        %1758 = vmatpush1.msra.mxu0 %v1556
        %1759 = vmatprep.subr.mxu0 %v1561
        %1760 = vmatpush1.msra.mxu0 %v1560
        %1761 = vmatprep.subr.mxu0 %v1565
        %1762 = vmatpush1.msra.mxu0 %v1564
        %1763 = vmatprep.subr.mxu0 %v1569
        %1764 = vmatpush1.msra.mxu0 %v1568
        %1765 = vmatprep.subr.mxu0 %v1573
        %1766 = vmatpush1.msra.mxu0 %v1572
        %1767 = vmatprep.subr.mxu0 %v1577
        %1768 = vmatpush1.msra.mxu0 %v1576
        %1769 = vmatprep.subr.mxu0 %v1581
        %1770 = vmatpush1.msra.mxu0 %v1580
        %1771 = vmatprep.subr.mxu0 %v1585
        %1772 = vmatpush1.msra.mxu0 %v1584
        %1773 = vmatprep.subr.mxu0 %v1589
        %1774 = vmatpush1.msra.mxu0 %v1588
        %1775 = vmatprep.subr.mxu0 %v1593
        %1776 = vmatpush1.msra.mxu0 %v1592
        %1777 = vmatprep.subr.mxu0 %v1597
        %1778 = vmatpush1.msra.mxu0 %v1596
        %1779 = vmatprep.subr.mxu0 %v1601
        %1780 = vmatpush1.msra.mxu0 %v1600
        %1781 = vmatprep.subr.mxu0 %v1605
        %1782 = vmatpush1.msra.mxu0 %v1604
        %1783 = vmatprep.subr.mxu0 %v1609
        %1784 = vmatpush1.msra.mxu0 %v1608
        %1785 = vmatprep.subr.mxu0 %v1613
        %1786 = vmatpush1.msra.mxu0 %v1612
        %1787 = vmatprep.subr.mxu0 %v1617
        %1788 = vmatpush1.msra.mxu0 %v1616
        %1789 = vmatprep.subr.mxu0 %v1621
        %1790 = vmatpush1.msra.mxu0 %v1620
        %1791 = vmatprep.subr.mxu0 %v1625
        %1792 = vmatpush1.msra.mxu0 %v1624
        %1793 = vmatprep.subr.mxu0 %v1629
        %1794 = vmatpush1.msra.mxu0 %v1628
        %1795 = vmatprep.subr.mxu0 %v1633
        %1796 = vmatpush1.msra.mxu0 %v1632
        %1797 = vmatprep.subr.mxu0 %v1637
        %1798 = vmatpush1.msra.mxu0 %v1636
        %1799 = vmatprep.subr.mxu0 %v1641
        %1800 = vmatpush1.msra.mxu0 %v1640
        %1801 = vmatprep.subr.mxu0 %v1645
        %1802 = vmatpush1.msra.mxu0 %v1644
        %1803 = vmatprep.subr.mxu0 %v1649
        %1804 = vmatpush1.msra.mxu0 %v1648
        %1805 = vmatprep.subr.mxu0 %v1653
        %1806 = vmatpush1.msra.mxu0 %v1652
        %1807 = vmatprep.mubr.f32.mxu0 %v1188
        %1808 = vmatmul.mubr.f32.gmra.mrb[0].mxu0 %v1187
        %v1809 = vpop.f32.mrb[0].mxu0
        %v1810 = vadd.f32 0.0, %v1809
        %v1811 = vpop.f32.mrb[0].mxu0
        %v1812 = vadd.f32 0.0, %v1811
        %1813 = vmatprep.mubr.f32.mxu0 %v1190
        %1814 = vmatmul.mubr.f32.gmra.mrb[0].mxu0 %v1189
        %v1815 = vpop.f32.mrb[0].mxu0
        %v1816 = vadd.f32 0.0, %v1815
        %v1817 = vpop.f32.mrb[0].mxu0
        %v1818 = vadd.f32 0.0, %v1817
        %1819 = vmatprep.mubr.f32.mxu0 %v1523
        %1820 = vmatmul.mubr.f32.gmra.mrb[0].mxu0 %v1522
        %v1821 = vpop.f32.mrb[0].mxu0
        %v1822 = vadd.f32 0.0, %v1821
        %v1823 = vpop.f32.mrb[0].mxu0
        %v1824 = vadd.f32 0.0, %v1823
        %1825 = vmatprep.mubr.f32.mxu0 %v1525
        %1826 = vmatmul.mubr.f32.gmra.mrb[0].mxu0 %v1524
        %v1827 = vpop.f32.mrb[0].mxu0
        %v1828 = vadd.f32 0.0, %v1827
        %v1829 = vpop.f32.mrb[0].mxu0
        %v1830 = vadd.f32 0.0, %v1829
        %1831 = vdwg.mxu0
        %v1832 = vmul.f32 %v1721, %v1721
        %v1833 = vmul.f32 %v1727, %v1727
        %v1834 = vmul.f32 %v1733, %v1733
        %v1835 = vmul.f32 %v1739, %v1739
        %v1836 = vmul.f32 %v1723, %v1723
        %v1837 = vmul.f32 %v1729, %v1729
        %v1838 = vmul.f32 %v1735, %v1735
        %v1839 = vmul.f32 %v1741, %v1741
        %v1840 = vadd.f32 %v1832, %v1836
        %v1841 = vadd.f32 %v1833, %v1837
        %v1842 = vadd.f32 %v1834, %v1838
        %v1843 = vadd.f32 %v1835, %v1839
        %v1844 = vrsqrt.pop %v1840
        %v1845 = vmul.f32 %v1840, %v1844
        %vm1846 = vcmp.eq.f32.partialorder %v1840, inf
        %v1847 = vsel %vm1846, %v1840, %v1845
        %vm1848 = vcmp.eq.f32.partialorder %v1840, 0.0
        %v1849 = vand.u32 %v1840, 2147483648
        %v1850 = vsel %vm1848, %v1849, %v1847
        %v1851 = vrsqrt.pop %v1841
        %v1852 = vmul.f32 %v1841, %v1851
        %vm1853 = vcmp.eq.f32.partialorder %v1841, inf
        %v1854 = vsel %vm1853, %v1841, %v1852
        %vm1855 = vcmp.eq.f32.partialorder %v1841, 0.0
        %v1856 = vand.u32 %v1841, 2147483648
        %v1857 = vsel %vm1855, %v1856, %v1854
        %v1858 = vrsqrt.pop %v1842
        %v1859 = vmul.f32 %v1842, %v1858
        %vm1860 = vcmp.eq.f32.partialorder %v1842, inf
        %v1861 = vsel %vm1860, %v1842, %v1859
        %vm1862 = vcmp.eq.f32.partialorder %v1842, 0.0
        %v1863 = vand.u32 %v1842, 2147483648
        %v1864 = vsel %vm1862, %v1863, %v1861
        %v1865 = vrsqrt.pop %v1843
        %v1866 = vmul.f32 %v1843, %v1865
        %vm1867 = vcmp.eq.f32.partialorder %v1843, inf
        %v1868 = vsel %vm1867, %v1843, %v1866
        %vm1869 = vcmp.eq.f32.partialorder %v1843, 0.0
        %v1870 = vand.u32 %v1843, 2147483648
        %v1871 = vsel %vm1869, %v1870, %v1868
        %s1872 = scalar_lea.vmem %s6, 16
        %v1873 = vld [vmem:[%s1872] sm:$0xff]
        %v1874 = vld [vmem:[%s1872 + $0x8] sm:$0xff]
        %v1875 = vld [vmem:[%s7] sm:$0xff]
        %v1876 = vld [vmem:[%s7 + $0x8] sm:$0xff]
        %1878 = vset.pattern.permute.xlu0 0
        %1879 = vperm.xlu0 %1878, %v1875
        %v1880 = vpop.permute.xlu0 %1879
        %1883 = vset.pattern.permute.xlu0 0
        %1884 = vperm.xlu0 %1883, %v1876
        %v1885 = vpop.permute.xlu0 %1884
        %vm1887 = vcmask 785408
        %v1889 = vsel %vm1887, %v1873, 0
        %v1892 = vsel %vm1887, %v1874, 0
        %1894 = vmatprep.subr.mxu0 0.0
        %1895 = vmatpush1.msra.mxu0 %v1810
        %1896 = vmatprep.subr.mxu0 0.0
        %1897 = vmatpush1.msra.mxu0 %v1816
        %1898 = vmatprep.subr.mxu0 0.0
        %1899 = vmatpush1.msra.mxu0 %v1822
        %1900 = vmatprep.subr.mxu0 0.0
        %1901 = vmatpush1.msra.mxu0 %v1828
        %1902 = vmatprep.subr.mxu0 0.0
        %1903 = vmatpush1.msra.mxu0 %v1812
        %1904 = vmatprep.subr.mxu0 0.0
        %1905 = vmatpush1.msra.mxu0 %v1818
        %1906 = vmatprep.subr.mxu0 0.0
        %1907 = vmatpush1.msra.mxu0 %v1824
        %1908 = vmatprep.subr.mxu0 0.0
        %1909 = vmatpush1.msra.mxu0 %v1830
        %1910 = vmatprep.subr.mxu0 0.0
        %1911 = vmatpush1.msra.mxu0 %v1850
        %1912 = vmatprep.subr.mxu0 0.0
        %1913 = vmatpush1.msra.mxu0 %v1857
        %1914 = vmatprep.subr.mxu0 0.0
        %1915 = vmatpush1.msra.mxu0 %v1864
        %1916 = vmatprep.subr.mxu0 0.0
        %1917 = vmatpush1.msra.mxu0 %v1871
        %1918 = vmatprep.subr.mxu0 0.0
        %1919 = vmatpush1.msra.mxu0 0.0
        %1920 = vmatprep.subr.mxu0 0.0
        %1921 = vmatpush1.msra.mxu0 0.0
        %1922 = vmatprep.subr.mxu0 0.0
        %1923 = vmatpush1.msra.mxu0 0.0
        %1924 = vmatprep.subr.mxu0 0.0
        %1925 = vmatpush1.msra.mxu0 0.0
        %1926 = vmatprep.subr.mxu0 0.0
        %1927 = vmatpush1.msra.mxu0 0.0
        %1928 = vmatprep.subr.mxu0 0.0
        %1929 = vmatpush1.msra.mxu0 0.0
        %1930 = vmatprep.subr.mxu0 0.0
        %1931 = vmatpush1.msra.mxu0 0.0
        %1932 = vmatprep.subr.mxu0 0.0
        %1933 = vmatpush1.msra.mxu0 0.0
        %1934 = vmatprep.subr.mxu0 0.0
        %1935 = vmatpush1.msra.mxu0 0.0
        %1936 = vmatprep.subr.mxu0 0.0
        %1937 = vmatpush1.msra.mxu0 0.0
        %1938 = vmatprep.subr.mxu0 0.0
        %1939 = vmatpush1.msra.mxu0 0.0
        %1940 = vmatprep.subr.mxu0 0.0
        %1941 = vmatpush1.msra.mxu0 0.0
        %1942 = vmatprep.subr.mxu0 0.0
        %1943 = vmatpush1.msra.mxu0 0.0
        %1944 = vmatprep.subr.mxu0 0.0
        %1945 = vmatpush1.msra.mxu0 0.0
        %1946 = vmatprep.subr.mxu0 0.0
        %1947 = vmatpush1.msra.mxu0 0.0
        %1948 = vmatprep.subr.mxu0 0.0
        %1949 = vmatpush1.msra.mxu0 0.0
        %1950 = vmatprep.subr.mxu0 0.0
        %1951 = vmatpush1.msra.mxu0 0.0
        %1952 = vmatprep.subr.mxu0 0.0
        %1953 = vmatpush1.msra.mxu0 0.0
        %1954 = vmatprep.subr.mxu0 0.0
        %1955 = vmatpush1.msra.mxu0 0.0
        %1956 = vmatprep.subr.mxu0 0.0
        %1957 = vmatpush1.msra.mxu0 0.0
        %1958 = vmatprep.mubr.f32.mxu0 0.0
        %1959 = vmatmul.mubr.f32.gmra.mrb[0].mxu0 %v1889
        %v1960 = vpop.f32.mrb[0].mxu0
        %v1961 = vadd.f32 %v1880, %v1960
        %v1962 = vpop.f32.mrb[0].mxu0
        %1963 = vmatprep.mubr.f32.mxu0 0.0
        %1964 = vmatmul.mubr.f32.gmra.mrb[0].mxu0 %v1892
        %v1965 = vpop.f32.mrb[0].mxu0
        %v1966 = vadd.f32 %v1885, %v1965
        %v1967 = vpop.f32.mrb[0].mxu0
        %1968 = vdwg.mxu0
        %1969 = vrot.lane.b32.xlu0 %v1810, 1
        %v1970 = vpop.permute.xlu0 %1969
        %1971 = vrot.lane.b32.xlu0 %v1816, 1
        %v1972 = vpop.permute.xlu0 %1971
        %1973 = vrot.lane.b32.xlu0 %v1822, 1
        %v1974 = vpop.permute.xlu0 %1973
        %1975 = vrot.lane.b32.xlu0 %v1828, 1
        %v1976 = vpop.permute.xlu0 %1975
        %1977 = vrot.lane.b32.xlu0 %v1812, 1
        %v1978 = vpop.permute.xlu0 %1977
        %1979 = vrot.lane.b32.xlu0 %v1818, 1
        %v1980 = vpop.permute.xlu0 %1979
        %1981 = vrot.lane.b32.xlu0 %v1824, 1
        %v1982 = vpop.permute.xlu0 %1981
        %1983 = vrot.lane.b32.xlu0 %v1830, 1
        %v1984 = vpop.permute.xlu0 %1983
        %1985 = vrot.lane.b32.xlu0 %v1850, 1
        %v1986 = vpop.permute.xlu0 %1985
        %1987 = vrot.lane.b32.xlu0 %v1857, 1
        %v1988 = vpop.permute.xlu0 %1987
        %1989 = vrot.lane.b32.xlu0 %v1864, 1
        %v1990 = vpop.permute.xlu0 %1989
        %1991 = vrot.lane.b32.xlu0 %v1871, 1
        %v1992 = vpop.permute.xlu0 %1991
        %v1993 = vlaneseq
        %v1994 = vshrl.u32 %v1993, 7
        %v1995 = vsub.s32 0, %v1994
        %v1996 = vrot.slane %v851, %v1995
        %v1997 = vmul.f32 %v1970, %v1996
        %v1998 = vmul.f32 %v1972, %v1996
        %v1999 = vmul.f32 %v1974, %v1996
        %v2000 = vmul.f32 %v1976, %v1996
        %v2001 = vmul.f32 %v1978, %v1996
        %v2002 = vmul.f32 %v1980, %v1996
        %v2003 = vmul.f32 %v1982, %v1996
        %v2004 = vmul.f32 %v1984, %v1996
        %v2005 = vmul.f32 %v1986, %v1996
        %v2006 = vmul.f32 %v1988, %v1996
        %v2007 = vmul.f32 %v1990, %v1996
        %v2008 = vmul.f32 %v1992, %v1996
        %v2009 = vld [vmem:[%s6] sm:$0xff]
        %v2010 = vld [vmem:[%s6 + $0x8] sm:$0xff]
        %v2012 = vsel %vm1887, %v2009, 0
        %v2015 = vsel %vm1887, %v2010, 0
        %2017 = vmatprep.subr.mxu0 0.0
        %2018 = vmatpush1.msra.mxu0 %v1997
        %2019 = vmatprep.subr.mxu0 0.0
        %2020 = vmatpush1.msra.mxu0 %v1998
        %2021 = vmatprep.subr.mxu0 0.0
        %2022 = vmatpush1.msra.mxu0 %v1999
        %2023 = vmatprep.subr.mxu0 0.0
        %2024 = vmatpush1.msra.mxu0 %v2000
        %2025 = vmatprep.subr.mxu0 0.0
        %2026 = vmatpush1.msra.mxu0 %v2001
        %2027 = vmatprep.subr.mxu0 0.0
        %2028 = vmatpush1.msra.mxu0 %v2002
        %2029 = vmatprep.subr.mxu0 0.0
        %2030 = vmatpush1.msra.mxu0 %v2003
        %2031 = vmatprep.subr.mxu0 0.0
        %2032 = vmatpush1.msra.mxu0 %v2004
        %2033 = vmatprep.subr.mxu0 0.0
        %2034 = vmatpush1.msra.mxu0 %v2005
        %2035 = vmatprep.subr.mxu0 0.0
        %2036 = vmatpush1.msra.mxu0 %v2006
        %2037 = vmatprep.subr.mxu0 0.0
        %2038 = vmatpush1.msra.mxu0 %v2007
        %2039 = vmatprep.subr.mxu0 0.0
        %2040 = vmatpush1.msra.mxu0 %v2008
        %2041 = vmatprep.subr.mxu0 0.0
        %2042 = vmatpush1.msra.mxu0 0.0
        %2043 = vmatprep.subr.mxu0 0.0
        %2044 = vmatpush1.msra.mxu0 0.0
        %2045 = vmatprep.subr.mxu0 0.0
        %2046 = vmatpush1.msra.mxu0 0.0
        %2047 = vmatprep.subr.mxu0 0.0
        %2048 = vmatpush1.msra.mxu0 0.0
        %2049 = vmatprep.subr.mxu0 0.0
        %2050 = vmatpush1.msra.mxu0 0.0
        %2051 = vmatprep.subr.mxu0 0.0
        %2052 = vmatpush1.msra.mxu0 0.0
        %2053 = vmatprep.subr.mxu0 0.0
        %2054 = vmatpush1.msra.mxu0 0.0
        %2055 = vmatprep.subr.mxu0 0.0
        %2056 = vmatpush1.msra.mxu0 0.0
        %2057 = vmatprep.subr.mxu0 0.0
        %2058 = vmatpush1.msra.mxu0 0.0
        %2059 = vmatprep.subr.mxu0 0.0
        %2060 = vmatpush1.msra.mxu0 0.0
        %2061 = vmatprep.subr.mxu0 0.0
        %2062 = vmatpush1.msra.mxu0 0.0
        %2063 = vmatprep.subr.mxu0 0.0
        %2064 = vmatpush1.msra.mxu0 0.0
        %2065 = vmatprep.subr.mxu0 0.0
        %2066 = vmatpush1.msra.mxu0 0.0
        %2067 = vmatprep.subr.mxu0 0.0
        %2068 = vmatpush1.msra.mxu0 0.0
        %2069 = vmatprep.subr.mxu0 0.0
        %2070 = vmatpush1.msra.mxu0 0.0
        %2071 = vmatprep.subr.mxu0 0.0
        %2072 = vmatpush1.msra.mxu0 0.0
        %2073 = vmatprep.subr.mxu0 0.0
        %2074 = vmatpush1.msra.mxu0 0.0
        %2075 = vmatprep.subr.mxu0 0.0
        %2076 = vmatpush1.msra.mxu0 0.0
        %2077 = vmatprep.subr.mxu0 0.0
        %2078 = vmatpush1.msra.mxu0 0.0
        %2079 = vmatprep.subr.mxu0 0.0
        %2080 = vmatpush1.msra.mxu0 0.0
        %2081 = vmatprep.mubr.f32.mxu0 0.0
        %2082 = vmatmul.mubr.f32.gmra.mrb[0].mxu0 %v2012
        %v2083 = vpop.f32.mrb[0].mxu0
        %v2084 = vadd.f32 0.0, %v2083
        %v2085 = vpop.f32.mrb[0].mxu0
        %2086 = vmatprep.mubr.f32.mxu0 0.0
        %2087 = vmatmul.mubr.f32.gmra.mrb[0].mxu0 %v2015
        %v2088 = vpop.f32.mrb[0].mxu0
        %v2089 = vadd.f32 0.0, %v2088
        %v2090 = vpop.f32.mrb[0].mxu0
        %2091 = vdwg.mxu0
        %v2092 = vadd.f32 %v1961, %v2084
        %v2093 = vadd.f32 %v1966, %v2089
        %2094 = vrot.lane.b32.xlu0 %v1810, 127
        %v2095 = vpop.permute.xlu0 %2094
        %2096 = vrot.lane.b32.xlu0 %v1816, 127
        %v2097 = vpop.permute.xlu0 %2096
        %2098 = vrot.lane.b32.xlu0 %v1822, 127
        %v2099 = vpop.permute.xlu0 %2098
        %2100 = vrot.lane.b32.xlu0 %v1828, 127
        %v2101 = vpop.permute.xlu0 %2100
        %2102 = vrot.lane.b32.xlu0 %v1812, 127
        %v2103 = vpop.permute.xlu0 %2102
        %2104 = vrot.lane.b32.xlu0 %v1818, 127
        %v2105 = vpop.permute.xlu0 %2104
        %2106 = vrot.lane.b32.xlu0 %v1824, 127
        %v2107 = vpop.permute.xlu0 %2106
        %2108 = vrot.lane.b32.xlu0 %v1830, 127
        %v2109 = vpop.permute.xlu0 %2108
        %2110 = vrot.lane.b32.xlu0 %v1850, 127
        %v2111 = vpop.permute.xlu0 %2110
        %2112 = vrot.lane.b32.xlu0 %v1857, 127
        %v2113 = vpop.permute.xlu0 %2112
        %2114 = vrot.lane.b32.xlu0 %v1864, 127
        %v2115 = vpop.permute.xlu0 %2114
        %2116 = vrot.lane.b32.xlu0 %v1871, 127
        %v2117 = vpop.permute.xlu0 %2116
        %v2118 = vlaneseq
        %v2119 = vshrl.u32 %v2118, 7
        %v2120 = vsub.s32 1, %v2119
        %v2121 = vrot.slane %v851, %v2120
        %v2122 = vmul.f32 %v2095, %v2121
        %v2123 = vmul.f32 %v2097, %v2121
        %v2124 = vmul.f32 %v2099, %v2121
        %v2125 = vmul.f32 %v2101, %v2121
        %v2126 = vmul.f32 %v2103, %v2121
        %v2127 = vmul.f32 %v2105, %v2121
        %v2128 = vmul.f32 %v2107, %v2121
        %v2129 = vmul.f32 %v2109, %v2121
        %v2130 = vmul.f32 %v2111, %v2121
        %v2131 = vmul.f32 %v2113, %v2121
        %v2132 = vmul.f32 %v2115, %v2121
        %v2133 = vmul.f32 %v2117, %v2121
        %s2134 = scalar_lea.vmem %s6, 32
        %v2135 = vld [vmem:[%s2134] sm:$0xff]
        %v2136 = vld [vmem:[%s2134 + $0x8] sm:$0xff]
        %v2138 = vsel %vm1887, %v2135, 0
        %v2141 = vsel %vm1887, %v2136, 0
        %2143 = vmatprep.subr.mxu0 0.0
        %2144 = vmatpush1.msra.mxu0 %v2122
        %2145 = vmatprep.subr.mxu0 0.0
        %2146 = vmatpush1.msra.mxu0 %v2123
        %2147 = vmatprep.subr.mxu0 0.0
        %2148 = vmatpush1.msra.mxu0 %v2124
        %2149 = vmatprep.subr.mxu0 0.0
        %2150 = vmatpush1.msra.mxu0 %v2125
        %2151 = vmatprep.subr.mxu0 0.0
        %2152 = vmatpush1.msra.mxu0 %v2126
        %2153 = vmatprep.subr.mxu0 0.0
        %2154 = vmatpush1.msra.mxu0 %v2127
        %2155 = vmatprep.subr.mxu0 0.0
        %2156 = vmatpush1.msra.mxu0 %v2128
        %2157 = vmatprep.subr.mxu0 0.0
        %2158 = vmatpush1.msra.mxu0 %v2129
        %2159 = vmatprep.subr.mxu0 0.0
        %2160 = vmatpush1.msra.mxu0 %v2130
        %2161 = vmatprep.subr.mxu0 0.0
        %2162 = vmatpush1.msra.mxu0 %v2131
        %2163 = vmatprep.subr.mxu0 0.0
        %2164 = vmatpush1.msra.mxu0 %v2132
        %2165 = vmatprep.subr.mxu0 0.0
        %2166 = vmatpush1.msra.mxu0 %v2133
        %2167 = vmatprep.subr.mxu0 0.0
        %2168 = vmatpush1.msra.mxu0 0.0
        %2169 = vmatprep.subr.mxu0 0.0
        %2170 = vmatpush1.msra.mxu0 0.0
        %2171 = vmatprep.subr.mxu0 0.0
        %2172 = vmatpush1.msra.mxu0 0.0
        %2173 = vmatprep.subr.mxu0 0.0
        %2174 = vmatpush1.msra.mxu0 0.0
        %2175 = vmatprep.subr.mxu0 0.0
        %2176 = vmatpush1.msra.mxu0 0.0
        %2177 = vmatprep.subr.mxu0 0.0
        %2178 = vmatpush1.msra.mxu0 0.0
        %2179 = vmatprep.subr.mxu0 0.0
        %2180 = vmatpush1.msra.mxu0 0.0
        %2181 = vmatprep.subr.mxu0 0.0
        %2182 = vmatpush1.msra.mxu0 0.0
        %2183 = vmatprep.subr.mxu0 0.0
        %2184 = vmatpush1.msra.mxu0 0.0
        %2185 = vmatprep.subr.mxu0 0.0
        %2186 = vmatpush1.msra.mxu0 0.0
        %2187 = vmatprep.subr.mxu0 0.0
        %2188 = vmatpush1.msra.mxu0 0.0
        %2189 = vmatprep.subr.mxu0 0.0
        %2190 = vmatpush1.msra.mxu0 0.0
        %2191 = vmatprep.subr.mxu0 0.0
        %2192 = vmatpush1.msra.mxu0 0.0
        %2193 = vmatprep.subr.mxu0 0.0
        %2194 = vmatpush1.msra.mxu0 0.0
        %2195 = vmatprep.subr.mxu0 0.0
        %2196 = vmatpush1.msra.mxu0 0.0
        %2197 = vmatprep.subr.mxu0 0.0
        %2198 = vmatpush1.msra.mxu0 0.0
        %2199 = vmatprep.subr.mxu0 0.0
        %2200 = vmatpush1.msra.mxu0 0.0
        %2201 = vmatprep.subr.mxu0 0.0
        %2202 = vmatpush1.msra.mxu0 0.0
        %2203 = vmatprep.subr.mxu0 0.0
        %2204 = vmatpush1.msra.mxu0 0.0
        %2205 = vmatprep.subr.mxu0 0.0
        %2206 = vmatpush1.msra.mxu0 0.0
        %2207 = vmatprep.mubr.f32.mxu0 0.0
        %2208 = vmatmul.mubr.f32.gmra.mrb[0].mxu0 %v2138
        %v2209 = vpop.f32.mrb[0].mxu0
        %v2210 = vadd.f32 0.0, %v2209
        %v2211 = vpop.f32.mrb[0].mxu0
        %2212 = vmatprep.mubr.f32.mxu0 0.0
        %2213 = vmatmul.mubr.f32.gmra.mrb[0].mxu0 %v2141
        %v2214 = vpop.f32.mrb[0].mxu0
        %v2215 = vadd.f32 0.0, %v2214
        %v2216 = vpop.f32.mrb[0].mxu0
        %2217 = vdwg.mxu0
        %v2218 = vadd.f32 %v2092, %v2210
        %v2219 = vadd.f32 %v2093, %v2215
        %v2220 = vmax.f32 %v2218, 0.0
        %v2221 = vmax.f32 %v2219, 0.0
        %v2222 = vld [vmem:[%s8] sm:$0xff]
        %v2223 = vld [vmem:[%s8 + $0x8] sm:$0xff]
        %2225 = vset.pattern.permute.xlu0 0
        %2226 = vperm.xlu0 %2225, %v2222
        %v2227 = vpop.permute.xlu0 %2226
        %2230 = vset.pattern.permute.xlu0 0
        %2231 = vperm.xlu0 %2230, %v2223
        %v2232 = vpop.permute.xlu0 %2231
        %v2234 = vmul.f32 %v2220, %v2227
        %v2235 = vmul.f32 %v2221, %v2232
        %v2236 = vld [vmem:[%s9] sm:$0xff]
        %v2237 = vld [vmem:[%s9 + $0x8] sm:$0xff]
        %2239 = vset.pattern.permute.xlu0 0
        %2240 = vperm.xlu0 %2239, %v2236
        %v2241 = vpop.permute.xlu0 %2240
        %2244 = vset.pattern.permute.xlu0 0
        %2245 = vperm.xlu0 %2244, %v2237
        %v2246 = vpop.permute.xlu0 %2245
        %v2248 = vadd.f32 %v2234, %v2241
        %v2249 = vadd.f32 %v2235, %v2246
        %s2250 = scalar_lea.vmem %s10, 8
        %v2251 = vld [vmem:[%s2250] sm:$0xff]
        %v2252 = vld [vmem:[%s11] sm:$0xff]
        %2254 = vset.pattern.permute.xlu0 0
        %2255 = vperm.xlu0 %2254, %v2252
        %v2256 = vpop.permute.xlu0 %2255
        %vm2258 = vcmask 130048
        %v2260 = vsel %vm2258, %v2251, 0
        %2262 = vmatprep.subr.mxu0 0.0
        %2263 = vmatpush1.msra.mxu0 %v2248
        %2264 = vmatprep.subr.mxu0 0.0
        %2265 = vmatpush1.msra.mxu0 %v2249
        %2266 = vmatprep.subr.mxu0 0.0
        %2267 = vmatpush1.msra.mxu0 0.0
        %2268 = vmatprep.subr.mxu0 0.0
        %2269 = vmatpush1.msra.mxu0 0.0
        %2270 = vmatprep.subr.mxu0 0.0
        %2271 = vmatpush1.msra.mxu0 0.0
        %2272 = vmatprep.subr.mxu0 0.0
        %2273 = vmatpush1.msra.mxu0 0.0
        %2274 = vmatprep.subr.mxu0 0.0
        %2275 = vmatpush1.msra.mxu0 0.0
        %2276 = vmatprep.subr.mxu0 0.0
        %2277 = vmatpush1.msra.mxu0 0.0
        %2278 = vmatprep.subr.mxu0 0.0
        %2279 = vmatpush1.msra.mxu0 0.0
        %2280 = vmatprep.subr.mxu0 0.0
        %2281 = vmatpush1.msra.mxu0 0.0
        %2282 = vmatprep.subr.mxu0 0.0
        %2283 = vmatpush1.msra.mxu0 0.0
        %2284 = vmatprep.subr.mxu0 0.0
        %2285 = vmatpush1.msra.mxu0 0.0
        %2286 = vmatprep.subr.mxu0 0.0
        %2287 = vmatpush1.msra.mxu0 0.0
        %2288 = vmatprep.subr.mxu0 0.0
        %2289 = vmatpush1.msra.mxu0 0.0
        %2290 = vmatprep.subr.mxu0 0.0
        %2291 = vmatpush1.msra.mxu0 0.0
        %2292 = vmatprep.subr.mxu0 0.0
        %2293 = vmatpush1.msra.mxu0 0.0
        %2294 = vmatprep.subr.mxu0 0.0
        %2295 = vmatpush1.msra.mxu0 0.0
        %2296 = vmatprep.subr.mxu0 0.0
        %2297 = vmatpush1.msra.mxu0 0.0
        %2298 = vmatprep.subr.mxu0 0.0
        %2299 = vmatpush1.msra.mxu0 0.0
        %2300 = vmatprep.subr.mxu0 0.0
        %2301 = vmatpush1.msra.mxu0 0.0
        %2302 = vmatprep.subr.mxu0 0.0
        %2303 = vmatpush1.msra.mxu0 0.0
        %2304 = vmatprep.subr.mxu0 0.0
        %2305 = vmatpush1.msra.mxu0 0.0
        %2306 = vmatprep.subr.mxu0 0.0
        %2307 = vmatpush1.msra.mxu0 0.0
        %2308 = vmatprep.subr.mxu0 0.0
        %2309 = vmatpush1.msra.mxu0 0.0
        %2310 = vmatprep.subr.mxu0 0.0
        %2311 = vmatpush1.msra.mxu0 0.0
        %2312 = vmatprep.subr.mxu0 0.0
        %2313 = vmatpush1.msra.mxu0 0.0
        %2314 = vmatprep.subr.mxu0 0.0
        %2315 = vmatpush1.msra.mxu0 0.0
        %2316 = vmatprep.subr.mxu0 0.0
        %2317 = vmatpush1.msra.mxu0 0.0
        %2318 = vmatprep.subr.mxu0 0.0
        %2319 = vmatpush1.msra.mxu0 0.0
        %2320 = vmatprep.subr.mxu0 0.0
        %2321 = vmatpush1.msra.mxu0 0.0
        %2322 = vmatprep.subr.mxu0 0.0
        %2323 = vmatpush1.msra.mxu0 0.0
        %2324 = vmatprep.subr.mxu0 0.0
        %2325 = vmatpush1.msra.mxu0 0.0
        %2326 = vmatprep.mubr.f32.mxu0 0.0
        %2327 = vmatmul.mubr.f32.gmra.mrb[0].mxu0 %v2260
        %v2328 = vpop.f32.mrb[0].mxu0
        %v2329 = vadd.f32 %v2256, %v2328
        %v2330 = vpop.f32.mrb[0].mxu0
        %2331 = vdwg.mxu0
        %2332 = vrot.lane.b32.xlu0 %v2248, 1
        %v2333 = vpop.permute.xlu0 %2332
        %2334 = vrot.lane.b32.xlu0 %v2249, 1
        %v2335 = vpop.permute.xlu0 %2334
        %v2336 = vmul.f32 %v2333, %v1996
        %v2337 = vmul.f32 %v2335, %v1996
        %v2338 = vld [vmem:[%s10] sm:$0xff]
        %v2340 = vsel %vm2258, %v2338, 0
        %2342 = vmatprep.subr.mxu0 0.0
        %2343 = vmatpush1.msra.mxu0 %v2336
        %2344 = vmatprep.subr.mxu0 0.0
        %2345 = vmatpush1.msra.mxu0 %v2337
        %2346 = vmatprep.subr.mxu0 0.0
        %2347 = vmatpush1.msra.mxu0 0.0
        %2348 = vmatprep.subr.mxu0 0.0
        %2349 = vmatpush1.msra.mxu0 0.0
        %2350 = vmatprep.subr.mxu0 0.0
        %2351 = vmatpush1.msra.mxu0 0.0
        %2352 = vmatprep.subr.mxu0 0.0
        %2353 = vmatpush1.msra.mxu0 0.0
        %2354 = vmatprep.subr.mxu0 0.0
        %2355 = vmatpush1.msra.mxu0 0.0
        %2356 = vmatprep.subr.mxu0 0.0
        %2357 = vmatpush1.msra.mxu0 0.0
        %2358 = vmatprep.subr.mxu0 0.0
        %2359 = vmatpush1.msra.mxu0 0.0
        %2360 = vmatprep.subr.mxu0 0.0
        %2361 = vmatpush1.msra.mxu0 0.0
        %2362 = vmatprep.subr.mxu0 0.0
        %2363 = vmatpush1.msra.mxu0 0.0
        %2364 = vmatprep.subr.mxu0 0.0
        %2365 = vmatpush1.msra.mxu0 0.0
        %2366 = vmatprep.subr.mxu0 0.0
        %2367 = vmatpush1.msra.mxu0 0.0
        %2368 = vmatprep.subr.mxu0 0.0
        %2369 = vmatpush1.msra.mxu0 0.0
        %2370 = vmatprep.subr.mxu0 0.0
        %2371 = vmatpush1.msra.mxu0 0.0
        %2372 = vmatprep.subr.mxu0 0.0
        %2373 = vmatpush1.msra.mxu0 0.0
        %2374 = vmatprep.subr.mxu0 0.0
        %2375 = vmatpush1.msra.mxu0 0.0
        %2376 = vmatprep.subr.mxu0 0.0
        %2377 = vmatpush1.msra.mxu0 0.0
        %2378 = vmatprep.subr.mxu0 0.0
        %2379 = vmatpush1.msra.mxu0 0.0
        %2380 = vmatprep.subr.mxu0 0.0
        %2381 = vmatpush1.msra.mxu0 0.0
        %2382 = vmatprep.subr.mxu0 0.0
        %2383 = vmatpush1.msra.mxu0 0.0
        %2384 = vmatprep.subr.mxu0 0.0
        %2385 = vmatpush1.msra.mxu0 0.0
        %2386 = vmatprep.subr.mxu0 0.0
        %2387 = vmatpush1.msra.mxu0 0.0
        %2388 = vmatprep.subr.mxu0 0.0
        %2389 = vmatpush1.msra.mxu0 0.0
        %2390 = vmatprep.subr.mxu0 0.0
        %2391 = vmatpush1.msra.mxu0 0.0
        %2392 = vmatprep.subr.mxu0 0.0
        %2393 = vmatpush1.msra.mxu0 0.0
        %2394 = vmatprep.subr.mxu0 0.0
        %2395 = vmatpush1.msra.mxu0 0.0
        %2396 = vmatprep.subr.mxu0 0.0
        %2397 = vmatpush1.msra.mxu0 0.0
        %2398 = vmatprep.subr.mxu0 0.0
        %2399 = vmatpush1.msra.mxu0 0.0
        %2400 = vmatprep.subr.mxu0 0.0
        %2401 = vmatpush1.msra.mxu0 0.0
        %2402 = vmatprep.subr.mxu0 0.0
        %2403 = vmatpush1.msra.mxu0 0.0
        %2404 = vmatprep.subr.mxu0 0.0
        %2405 = vmatpush1.msra.mxu0 0.0
        %2406 = vmatprep.mubr.f32.mxu0 0.0
        %2407 = vmatmul.mubr.f32.gmra.mrb[0].mxu0 %v2340
        %v2408 = vpop.f32.mrb[0].mxu0
        %v2409 = vadd.f32 0.0, %v2408
        %v2410 = vpop.f32.mrb[0].mxu0
        %2411 = vdwg.mxu0
        %v2412 = vadd.f32 %v2329, %v2409
        %2413 = vrot.lane.b32.xlu0 %v2248, 127
        %v2414 = vpop.permute.xlu0 %2413
        %2415 = vrot.lane.b32.xlu0 %v2249, 127
        %v2416 = vpop.permute.xlu0 %2415
        %v2417 = vmul.f32 %v2414, %v2121
        %v2418 = vmul.f32 %v2416, %v2121
        %s2419 = scalar_lea.vmem %s10, 16
        %v2420 = vld [vmem:[%s2419] sm:$0xff]
        %v2422 = vsel %vm2258, %v2420, 0
        %2424 = vmatprep.subr.mxu0 0.0
        %2425 = vmatpush1.msra.mxu0 %v2417
        %2426 = vmatprep.subr.mxu0 0.0
        %2427 = vmatpush1.msra.mxu0 %v2418
        %2428 = vmatprep.subr.mxu0 0.0
        %2429 = vmatpush1.msra.mxu0 0.0
        %2430 = vmatprep.subr.mxu0 0.0
        %2431 = vmatpush1.msra.mxu0 0.0
        %2432 = vmatprep.subr.mxu0 0.0
        %2433 = vmatpush1.msra.mxu0 0.0
        %2434 = vmatprep.subr.mxu0 0.0
        %2435 = vmatpush1.msra.mxu0 0.0
        %2436 = vmatprep.subr.mxu0 0.0
        %2437 = vmatpush1.msra.mxu0 0.0
        %2438 = vmatprep.subr.mxu0 0.0
        %2439 = vmatpush1.msra.mxu0 0.0
        %2440 = vmatprep.subr.mxu0 0.0
        %2441 = vmatpush1.msra.mxu0 0.0
        %2442 = vmatprep.subr.mxu0 0.0
        %2443 = vmatpush1.msra.mxu0 0.0
        %2444 = vmatprep.subr.mxu0 0.0
        %2445 = vmatpush1.msra.mxu0 0.0
        %2446 = vmatprep.subr.mxu0 0.0
        %2447 = vmatpush1.msra.mxu0 0.0
        %2448 = vmatprep.subr.mxu0 0.0
        %2449 = vmatpush1.msra.mxu0 0.0
        %2450 = vmatprep.subr.mxu0 0.0
        %2451 = vmatpush1.msra.mxu0 0.0
        %2452 = vmatprep.subr.mxu0 0.0
        %2453 = vmatpush1.msra.mxu0 0.0
        %2454 = vmatprep.subr.mxu0 0.0
        %2455 = vmatpush1.msra.mxu0 0.0
        %2456 = vmatprep.subr.mxu0 0.0
        %2457 = vmatpush1.msra.mxu0 0.0
        %2458 = vmatprep.subr.mxu0 0.0
        %2459 = vmatpush1.msra.mxu0 0.0
        %2460 = vmatprep.subr.mxu0 0.0
        %2461 = vmatpush1.msra.mxu0 0.0
        %2462 = vmatprep.subr.mxu0 0.0
        %2463 = vmatpush1.msra.mxu0 0.0
        %2464 = vmatprep.subr.mxu0 0.0
        %2465 = vmatpush1.msra.mxu0 0.0
        %2466 = vmatprep.subr.mxu0 0.0
        %2467 = vmatpush1.msra.mxu0 0.0
        %2468 = vmatprep.subr.mxu0 0.0
        %2469 = vmatpush1.msra.mxu0 0.0
        %2470 = vmatprep.subr.mxu0 0.0
        %2471 = vmatpush1.msra.mxu0 0.0
        %2472 = vmatprep.subr.mxu0 0.0
        %2473 = vmatpush1.msra.mxu0 0.0
        %2474 = vmatprep.subr.mxu0 0.0
        %2475 = vmatpush1.msra.mxu0 0.0
        %2476 = vmatprep.subr.mxu0 0.0
        %2477 = vmatpush1.msra.mxu0 0.0
        %2478 = vmatprep.subr.mxu0 0.0
        %2479 = vmatpush1.msra.mxu0 0.0
        %2480 = vmatprep.subr.mxu0 0.0
        %2481 = vmatpush1.msra.mxu0 0.0
        %2482 = vmatprep.subr.mxu0 0.0
        %2483 = vmatpush1.msra.mxu0 0.0
        %2484 = vmatprep.subr.mxu0 0.0
        %2485 = vmatpush1.msra.mxu0 0.0
        %2486 = vmatprep.subr.mxu0 0.0
        %2487 = vmatpush1.msra.mxu0 0.0
        %2488 = vmatprep.mubr.f32.mxu0 0.0
        %2489 = vmatmul.mubr.f32.gmra.mrb[0].mxu0 %v2422
        %v2490 = vpop.f32.mrb[0].mxu0
        %v2491 = vadd.f32 0.0, %v2490
        %v2492 = vpop.f32.mrb[0].mxu0
        %2493 = vdwg.mxu0
        %v2494 = vadd.f32 %v2412, %v2491
        %v2495 = vmax.f32 %v2494, 0.0
        %s2496 = scalar_lea.vmem %s12, 8
        %v2497 = vld [vmem:[%s2496] sm:$0xff]
        %v2498 = vld [vmem:[%s13] sm:$0xff]
        %2500 = vset.pattern.permute.xlu0 0
        %2501 = vperm.xlu0 %2500, %v2498
        %v2502 = vpop.permute.xlu0 %2501
        %v2505 = vsel %vm867, %v2497, 0
        %2507 = vmatprep.subr.mxu0 0.0
        %2508 = vmatpush1.msra.mxu0 %v2495
        %2509 = vmatprep.subr.mxu0 0.0
        %2510 = vmatpush1.msra.mxu0 0.0
        %2511 = vmatprep.subr.mxu0 0.0
        %2512 = vmatpush1.msra.mxu0 0.0
        %2513 = vmatprep.subr.mxu0 0.0
        %2514 = vmatpush1.msra.mxu0 0.0
        %2515 = vmatprep.subr.mxu0 0.0
        %2516 = vmatpush1.msra.mxu0 0.0
        %2517 = vmatprep.subr.mxu0 0.0
        %2518 = vmatpush1.msra.mxu0 0.0
        %2519 = vmatprep.subr.mxu0 0.0
        %2520 = vmatpush1.msra.mxu0 0.0
        %2521 = vmatprep.subr.mxu0 0.0
        %2522 = vmatpush1.msra.mxu0 0.0
        %2523 = vmatprep.subr.mxu0 0.0
        %2524 = vmatpush1.msra.mxu0 0.0
        %2525 = vmatprep.subr.mxu0 0.0
        %2526 = vmatpush1.msra.mxu0 0.0
        %2527 = vmatprep.subr.mxu0 0.0
        %2528 = vmatpush1.msra.mxu0 0.0
        %2529 = vmatprep.subr.mxu0 0.0
        %2530 = vmatpush1.msra.mxu0 0.0
        %2531 = vmatprep.subr.mxu0 0.0
        %2532 = vmatpush1.msra.mxu0 0.0
        %2533 = vmatprep.subr.mxu0 0.0
        %2534 = vmatpush1.msra.mxu0 0.0
        %2535 = vmatprep.subr.mxu0 0.0
        %2536 = vmatpush1.msra.mxu0 0.0
        %2537 = vmatprep.subr.mxu0 0.0
        %2538 = vmatpush1.msra.mxu0 0.0
        %2539 = vmatprep.subr.mxu0 0.0
        %2540 = vmatpush1.msra.mxu0 0.0
        %2541 = vmatprep.subr.mxu0 0.0
        %2542 = vmatpush1.msra.mxu0 0.0
        %2543 = vmatprep.subr.mxu0 0.0
        %2544 = vmatpush1.msra.mxu0 0.0
        %2545 = vmatprep.subr.mxu0 0.0
        %2546 = vmatpush1.msra.mxu0 0.0
        %2547 = vmatprep.subr.mxu0 0.0
        %2548 = vmatpush1.msra.mxu0 0.0
        %2549 = vmatprep.subr.mxu0 0.0
        %2550 = vmatpush1.msra.mxu0 0.0
        %2551 = vmatprep.subr.mxu0 0.0
        %2552 = vmatpush1.msra.mxu0 0.0
        %2553 = vmatprep.subr.mxu0 0.0
        %2554 = vmatpush1.msra.mxu0 0.0
        %2555 = vmatprep.subr.mxu0 0.0
        %2556 = vmatpush1.msra.mxu0 0.0
        %2557 = vmatprep.subr.mxu0 0.0
        %2558 = vmatpush1.msra.mxu0 0.0
        %2559 = vmatprep.subr.mxu0 0.0
        %2560 = vmatpush1.msra.mxu0 0.0
        %2561 = vmatprep.subr.mxu0 0.0
        %2562 = vmatpush1.msra.mxu0 0.0
        %2563 = vmatprep.subr.mxu0 0.0
        %2564 = vmatpush1.msra.mxu0 0.0
        %2565 = vmatprep.subr.mxu0 0.0
        %2566 = vmatpush1.msra.mxu0 0.0
        %2567 = vmatprep.subr.mxu0 0.0
        %2568 = vmatpush1.msra.mxu0 0.0
        %2569 = vmatprep.subr.mxu0 0.0
        %2570 = vmatpush1.msra.mxu0 0.0
        %2571 = vmatprep.mubr.f32.mxu0 0.0
        %2572 = vmatmul.mubr.f32.gmra.mrb[0].mxu0 %v2505
        %v2573 = vpop.f32.mrb[0].mxu0
        %v2574 = vadd.f32 %v2502, %v2573
        %v2575 = vpop.f32.mrb[0].mxu0
        %2576 = vdwg.mxu0
        %2577 = vrot.lane.b32.xlu0 %v2495, 1
        %v2578 = vpop.permute.xlu0 %2577
        %v2579 = vmul.f32 %v2578, %v1996
        %v2580 = vld [vmem:[%s12] sm:$0xff]
        %v2582 = vsel %vm867, %v2580, 0
        %2584 = vmatprep.subr.mxu0 0.0
        %2585 = vmatpush1.msra.mxu0 %v2579
        %2586 = vmatprep.subr.mxu0 0.0
        %2587 = vmatpush1.msra.mxu0 0.0
        %2588 = vmatprep.subr.mxu0 0.0
        %2589 = vmatpush1.msra.mxu0 0.0
        %2590 = vmatprep.subr.mxu0 0.0
        %2591 = vmatpush1.msra.mxu0 0.0
        %2592 = vmatprep.subr.mxu0 0.0
        %2593 = vmatpush1.msra.mxu0 0.0
        %2594 = vmatprep.subr.mxu0 0.0
        %2595 = vmatpush1.msra.mxu0 0.0
        %2596 = vmatprep.subr.mxu0 0.0
        %2597 = vmatpush1.msra.mxu0 0.0
        %2598 = vmatprep.subr.mxu0 0.0
        %2599 = vmatpush1.msra.mxu0 0.0
        %2600 = vmatprep.subr.mxu0 0.0
        %2601 = vmatpush1.msra.mxu0 0.0
        %2602 = vmatprep.subr.mxu0 0.0
        %2603 = vmatpush1.msra.mxu0 0.0
        %2604 = vmatprep.subr.mxu0 0.0
        %2605 = vmatpush1.msra.mxu0 0.0
        %2606 = vmatprep.subr.mxu0 0.0
        %2607 = vmatpush1.msra.mxu0 0.0
        %2608 = vmatprep.subr.mxu0 0.0
        %2609 = vmatpush1.msra.mxu0 0.0
        %2610 = vmatprep.subr.mxu0 0.0
        %2611 = vmatpush1.msra.mxu0 0.0
        %2612 = vmatprep.subr.mxu0 0.0
        %2613 = vmatpush1.msra.mxu0 0.0
        %2614 = vmatprep.subr.mxu0 0.0
        %2615 = vmatpush1.msra.mxu0 0.0
        %2616 = vmatprep.subr.mxu0 0.0
        %2617 = vmatpush1.msra.mxu0 0.0
        %2618 = vmatprep.subr.mxu0 0.0
        %2619 = vmatpush1.msra.mxu0 0.0
        %2620 = vmatprep.subr.mxu0 0.0
        %2621 = vmatpush1.msra.mxu0 0.0
        %2622 = vmatprep.subr.mxu0 0.0
        %2623 = vmatpush1.msra.mxu0 0.0
        %2624 = vmatprep.subr.mxu0 0.0
        %2625 = vmatpush1.msra.mxu0 0.0
        %2626 = vmatprep.subr.mxu0 0.0
        %2627 = vmatpush1.msra.mxu0 0.0
        %2628 = vmatprep.subr.mxu0 0.0
        %2629 = vmatpush1.msra.mxu0 0.0
        %2630 = vmatprep.subr.mxu0 0.0
        %2631 = vmatpush1.msra.mxu0 0.0
        %2632 = vmatprep.subr.mxu0 0.0
        %2633 = vmatpush1.msra.mxu0 0.0
        %2634 = vmatprep.subr.mxu0 0.0
        %2635 = vmatpush1.msra.mxu0 0.0
        %2636 = vmatprep.subr.mxu0 0.0
        %2637 = vmatpush1.msra.mxu0 0.0
        %2638 = vmatprep.subr.mxu0 0.0
        %2639 = vmatpush1.msra.mxu0 0.0
        %2640 = vmatprep.subr.mxu0 0.0
        %2641 = vmatpush1.msra.mxu0 0.0
        %2642 = vmatprep.subr.mxu0 0.0
        %2643 = vmatpush1.msra.mxu0 0.0
        %2644 = vmatprep.subr.mxu0 0.0
        %2645 = vmatpush1.msra.mxu0 0.0
        %2646 = vmatprep.subr.mxu0 0.0
        %2647 = vmatpush1.msra.mxu0 0.0
        %2648 = vmatprep.mubr.f32.mxu0 0.0
        %2649 = vmatmul.mubr.f32.gmra.mrb[0].mxu0 %v2582
        %v2650 = vpop.f32.mrb[0].mxu0
        %v2651 = vadd.f32 0.0, %v2650
        %v2652 = vpop.f32.mrb[0].mxu0
        %2653 = vdwg.mxu0
        %v2654 = vadd.f32 %v2574, %v2651
        %2655 = vrot.lane.b32.xlu0 %v2495, 127
        %v2656 = vpop.permute.xlu0 %2655
        %v2657 = vmul.f32 %v2656, %v2121
        %s2658 = scalar_lea.vmem %s12, 16
        %v2659 = vld [vmem:[%s2658] sm:$0xff]
        %v2661 = vsel %vm867, %v2659, 0
        %2663 = vmatprep.subr.mxu0 0.0
        %2664 = vmatpush1.msra.mxu0 %v2657
        %2665 = vmatprep.subr.mxu0 0.0
        %2666 = vmatpush1.msra.mxu0 0.0
        %2667 = vmatprep.subr.mxu0 0.0
        %2668 = vmatpush1.msra.mxu0 0.0
        %2669 = vmatprep.subr.mxu0 0.0
        %2670 = vmatpush1.msra.mxu0 0.0
        %2671 = vmatprep.subr.mxu0 0.0
        %2672 = vmatpush1.msra.mxu0 0.0
        %2673 = vmatprep.subr.mxu0 0.0
        %2674 = vmatpush1.msra.mxu0 0.0
        %2675 = vmatprep.subr.mxu0 0.0
        %2676 = vmatpush1.msra.mxu0 0.0
        %2677 = vmatprep.subr.mxu0 0.0
        %2678 = vmatpush1.msra.mxu0 0.0
        %2679 = vmatprep.subr.mxu0 0.0
        %2680 = vmatpush1.msra.mxu0 0.0
        %2681 = vmatprep.subr.mxu0 0.0
        %2682 = vmatpush1.msra.mxu0 0.0
        %2683 = vmatprep.subr.mxu0 0.0
        %2684 = vmatpush1.msra.mxu0 0.0
        %2685 = vmatprep.subr.mxu0 0.0
        %2686 = vmatpush1.msra.mxu0 0.0
        %2687 = vmatprep.subr.mxu0 0.0
        %2688 = vmatpush1.msra.mxu0 0.0
        %2689 = vmatprep.subr.mxu0 0.0
        %2690 = vmatpush1.msra.mxu0 0.0
        %2691 = vmatprep.subr.mxu0 0.0
        %2692 = vmatpush1.msra.mxu0 0.0
        %2693 = vmatprep.subr.mxu0 0.0
        %2694 = vmatpush1.msra.mxu0 0.0
        %2695 = vmatprep.subr.mxu0 0.0
        %2696 = vmatpush1.msra.mxu0 0.0
        %2697 = vmatprep.subr.mxu0 0.0
        %2698 = vmatpush1.msra.mxu0 0.0
        %2699 = vmatprep.subr.mxu0 0.0
        %2700 = vmatpush1.msra.mxu0 0.0
        %2701 = vmatprep.subr.mxu0 0.0
        %2702 = vmatpush1.msra.mxu0 0.0
        %2703 = vmatprep.subr.mxu0 0.0
        %2704 = vmatpush1.msra.mxu0 0.0
        %2705 = vmatprep.subr.mxu0 0.0
        %2706 = vmatpush1.msra.mxu0 0.0
        %2707 = vmatprep.subr.mxu0 0.0
        %2708 = vmatpush1.msra.mxu0 0.0
        %2709 = vmatprep.subr.mxu0 0.0
        %2710 = vmatpush1.msra.mxu0 0.0
        %2711 = vmatprep.subr.mxu0 0.0
        %2712 = vmatpush1.msra.mxu0 0.0
        %2713 = vmatprep.subr.mxu0 0.0
        %2714 = vmatpush1.msra.mxu0 0.0
        %2715 = vmatprep.subr.mxu0 0.0
        %2716 = vmatpush1.msra.mxu0 0.0
        %2717 = vmatprep.subr.mxu0 0.0
        %2718 = vmatpush1.msra.mxu0 0.0
        %2719 = vmatprep.subr.mxu0 0.0
        %2720 = vmatpush1.msra.mxu0 0.0
        %2721 = vmatprep.subr.mxu0 0.0
        %2722 = vmatpush1.msra.mxu0 0.0
        %2723 = vmatprep.subr.mxu0 0.0
        %2724 = vmatpush1.msra.mxu0 0.0
        %2725 = vmatprep.subr.mxu0 0.0
        %2726 = vmatpush1.msra.mxu0 0.0
        %2727 = vmatprep.mubr.f32.mxu0 0.0
        %2728 = vmatmul.mubr.f32.gmra.mrb[0].mxu0 %v2661
        %v2729 = vpop.f32.mrb[0].mxu0
        %v2730 = vadd.f32 0.0, %v2729
        %v2731 = vpop.f32.mrb[0].mxu0
        %2732 = vdwg.mxu0
        %v2733 = vadd.f32 %v2654, %v2730
        %v2734 = vmax.f32 %v2733, 0.0
        %v2735 = vld [vmem:[%s14] sm:$0xff]
        %v2736 = vld [vmem:[%s14 + $0x8] sm:$0xff]
        %v2737 = vld [vmem:[%s15] sm:$0xff]
        %v2738 = vld [vmem:[%s15 + $0x8] sm:$0xff]
        %2740 = vset.pattern.permute.xlu0 0
        %2741 = vperm.xlu0 %2740, %v2737
        %v2742 = vpop.permute.xlu0 %2741
        %2745 = vset.pattern.permute.xlu0 0
        %2746 = vperm.xlu0 %2745, %v2738
        %v2747 = vpop.permute.xlu0 %2746
        %v2750 = vsel %vm867, %v2735, 0
        %v2753 = vsel %vm867, %v2736, 0
        %2755 = vmatprep.subr.mxu0 0.0
        %2756 = vmatpush1.msra.mxu0 %v2734
        %2757 = vmatprep.subr.mxu0 0.0
        %2758 = vmatpush1.msra.mxu0 0.0
        %2759 = vmatprep.subr.mxu0 0.0
        %2760 = vmatpush1.msra.mxu0 0.0
        %2761 = vmatprep.subr.mxu0 0.0
        %2762 = vmatpush1.msra.mxu0 0.0
        %2763 = vmatprep.subr.mxu0 0.0
        %2764 = vmatpush1.msra.mxu0 0.0
        %2765 = vmatprep.subr.mxu0 0.0
        %2766 = vmatpush1.msra.mxu0 0.0
        %2767 = vmatprep.subr.mxu0 0.0
        %2768 = vmatpush1.msra.mxu0 0.0
        %2769 = vmatprep.subr.mxu0 0.0
        %2770 = vmatpush1.msra.mxu0 0.0
        %2771 = vmatprep.subr.mxu0 0.0
        %2772 = vmatpush1.msra.mxu0 0.0
        %2773 = vmatprep.subr.mxu0 0.0
        %2774 = vmatpush1.msra.mxu0 0.0
        %2775 = vmatprep.subr.mxu0 0.0
        %2776 = vmatpush1.msra.mxu0 0.0
        %2777 = vmatprep.subr.mxu0 0.0
        %2778 = vmatpush1.msra.mxu0 0.0
        %2779 = vmatprep.subr.mxu0 0.0
        %2780 = vmatpush1.msra.mxu0 0.0
        %2781 = vmatprep.subr.mxu0 0.0
        %2782 = vmatpush1.msra.mxu0 0.0
        %2783 = vmatprep.subr.mxu0 0.0
        %2784 = vmatpush1.msra.mxu0 0.0
        %2785 = vmatprep.subr.mxu0 0.0
        %2786 = vmatpush1.msra.mxu0 0.0
        %2787 = vmatprep.subr.mxu0 0.0
        %2788 = vmatpush1.msra.mxu0 0.0
        %2789 = vmatprep.subr.mxu0 0.0
        %2790 = vmatpush1.msra.mxu0 0.0
        %2791 = vmatprep.subr.mxu0 0.0
        %2792 = vmatpush1.msra.mxu0 0.0
        %2793 = vmatprep.subr.mxu0 0.0
        %2794 = vmatpush1.msra.mxu0 0.0
        %2795 = vmatprep.subr.mxu0 0.0
        %2796 = vmatpush1.msra.mxu0 0.0
        %2797 = vmatprep.subr.mxu0 0.0
        %2798 = vmatpush1.msra.mxu0 0.0
        %2799 = vmatprep.subr.mxu0 0.0
        %2800 = vmatpush1.msra.mxu0 0.0
        %2801 = vmatprep.subr.mxu0 0.0
        %2802 = vmatpush1.msra.mxu0 0.0
        %2803 = vmatprep.subr.mxu0 0.0
        %2804 = vmatpush1.msra.mxu0 0.0
        %2805 = vmatprep.subr.mxu0 0.0
        %2806 = vmatpush1.msra.mxu0 0.0
        %2807 = vmatprep.subr.mxu0 0.0
        %2808 = vmatpush1.msra.mxu0 0.0
        %2809 = vmatprep.subr.mxu0 0.0
        %2810 = vmatpush1.msra.mxu0 0.0
        %2811 = vmatprep.subr.mxu0 0.0
        %2812 = vmatpush1.msra.mxu0 0.0
        %2813 = vmatprep.subr.mxu0 0.0
        %2814 = vmatpush1.msra.mxu0 0.0
        %2815 = vmatprep.subr.mxu0 0.0
        %2816 = vmatpush1.msra.mxu0 0.0
        %2817 = vmatprep.subr.mxu0 0.0
        %2818 = vmatpush1.msra.mxu0 0.0
        %2819 = vmatprep.mubr.f32.mxu0 0.0
        %2820 = vmatmul.mubr.f32.gmra.mrb[0].mxu0 %v2750
        %v2821 = vpop.f32.mrb[0].mxu0
        %v2822 = vadd.f32 %v2742, %v2821
        %v2823 = vpop.f32.mrb[0].mxu0
        %2824 = vmatprep.mubr.f32.mxu0 0.0
        %2825 = vmatmul.mubr.f32.gmra.mrb[0].mxu0 %v2753
        %v2826 = vpop.f32.mrb[0].mxu0
        %v2827 = vadd.f32 %v2747, %v2826
        %v2828 = vpop.f32.mrb[0].mxu0
        %2829 = vdwg.mxu0
        %v2830 = vld [vmem:[%s16] sm:$0x3]
        %v2831 = vld [vmem:[%s17] sm:$0x3]
        %2833 = vset.pattern.permute.xlu0 0
        %2834 = vperm.xlu0 %2833, %v2831
        %v2835 = vpop.permute.xlu0 %2834
        %v2838 = vsel %vm2258, %v2830, 0
        %2840 = vmatprep.subr.mxu0 0.0
        %2841 = vmatpush1.msra.mxu0 %v2822
        %2842 = vmatprep.subr.mxu0 0.0
        %2843 = vmatpush1.msra.mxu0 %v2827
        %2844 = vmatprep.subr.mxu0 0.0
        %2845 = vmatpush1.msra.mxu0 0.0
        %2846 = vmatprep.subr.mxu0 0.0
        %2847 = vmatpush1.msra.mxu0 0.0
        %2848 = vmatprep.subr.mxu0 0.0
        %2849 = vmatpush1.msra.mxu0 0.0
        %2850 = vmatprep.subr.mxu0 0.0
        %2851 = vmatpush1.msra.mxu0 0.0
        %2852 = vmatprep.subr.mxu0 0.0
        %2853 = vmatpush1.msra.mxu0 0.0
        %2854 = vmatprep.subr.mxu0 0.0
        %2855 = vmatpush1.msra.mxu0 0.0
        %2856 = vmatprep.subr.mxu0 0.0
        %2857 = vmatpush1.msra.mxu0 0.0
        %2858 = vmatprep.subr.mxu0 0.0
        %2859 = vmatpush1.msra.mxu0 0.0
        %2860 = vmatprep.subr.mxu0 0.0
        %2861 = vmatpush1.msra.mxu0 0.0
        %2862 = vmatprep.subr.mxu0 0.0
        %2863 = vmatpush1.msra.mxu0 0.0
        %2864 = vmatprep.subr.mxu0 0.0
        %2865 = vmatpush1.msra.mxu0 0.0
        %2866 = vmatprep.subr.mxu0 0.0
        %2867 = vmatpush1.msra.mxu0 0.0
        %2868 = vmatprep.subr.mxu0 0.0
        %2869 = vmatpush1.msra.mxu0 0.0
        %2870 = vmatprep.subr.mxu0 0.0
        %2871 = vmatpush1.msra.mxu0 0.0
        %2872 = vmatprep.subr.mxu0 0.0
        %2873 = vmatpush1.msra.mxu0 0.0
        %2874 = vmatprep.subr.mxu0 0.0
        %2875 = vmatpush1.msra.mxu0 0.0
        %2876 = vmatprep.subr.mxu0 0.0
        %2877 = vmatpush1.msra.mxu0 0.0
        %2878 = vmatprep.subr.mxu0 0.0
        %2879 = vmatpush1.msra.mxu0 0.0
        %2880 = vmatprep.subr.mxu0 0.0
        %2881 = vmatpush1.msra.mxu0 0.0
        %2882 = vmatprep.subr.mxu0 0.0
        %2883 = vmatpush1.msra.mxu0 0.0
        %2884 = vmatprep.subr.mxu0 0.0
        %2885 = vmatpush1.msra.mxu0 0.0
        %2886 = vmatprep.subr.mxu0 0.0
        %2887 = vmatpush1.msra.mxu0 0.0
        %2888 = vmatprep.subr.mxu0 0.0
        %2889 = vmatpush1.msra.mxu0 0.0
        %2890 = vmatprep.subr.mxu0 0.0
        %2891 = vmatpush1.msra.mxu0 0.0
        %2892 = vmatprep.subr.mxu0 0.0
        %2893 = vmatpush1.msra.mxu0 0.0
        %2894 = vmatprep.subr.mxu0 0.0
        %2895 = vmatpush1.msra.mxu0 0.0
        %2896 = vmatprep.subr.mxu0 0.0
        %2897 = vmatpush1.msra.mxu0 0.0
        %2898 = vmatprep.subr.mxu0 0.0
        %2899 = vmatpush1.msra.mxu0 0.0
        %2900 = vmatprep.subr.mxu0 0.0
        %2901 = vmatpush1.msra.mxu0 0.0
        %2902 = vmatprep.subr.mxu0 0.0
        %2903 = vmatpush1.msra.mxu0 0.0
        %2904 = vmatprep.mubr.f32.mxu0 0.0
        %2905 = vmatmul.mubr.f32.gmra.mrb[0].mxu0 %v2838
        %v2906 = vpop.f32.mrb[0].mxu0
        %v2907 = vadd.f32 %v2835, %v2906
        %v2908 = vpop.f32.mrb[0].mxu0
        %2909 = vdwg.mxu0
        %v2910 = vmax.f32 %v2907, 0.0
        %v2911 = vld [vmem:[%s18] sm:$0xff]
        %v2912 = vld [vmem:[%s18 + $0x8] sm:$0xff]
        %v2913 = vld [vmem:[%s19] sm:$0xff]
        %v2914 = vld [vmem:[%s19 + $0x8] sm:$0xff]
        %2916 = vset.pattern.permute.xlu0 0
        %2917 = vperm.xlu0 %2916, %v2913
        %v2918 = vpop.permute.xlu0 %2917
        %2921 = vset.pattern.permute.xlu0 0
        %2922 = vperm.xlu0 %2921, %v2914
        %v2923 = vpop.permute.xlu0 %2922
        %vm2925 = vcmask 15360
        %v2927 = vsel %vm2925, %v2911, 0
        %v2930 = vsel %vm2925, %v2912, 0
        %vm2932 = vcmask 1041408
        %v2934 = vsel %vm2932, %v2910, 0
        %2936 = vmatprep.subr.mxu0 0.0
        %2937 = vmatpush1.msra.mxu0 %v2934
        %2938 = vmatprep.subr.mxu0 0.0
        %2939 = vmatpush1.msra.mxu0 0.0
        %2940 = vmatprep.subr.mxu0 0.0
        %2941 = vmatpush1.msra.mxu0 0.0
        %2942 = vmatprep.subr.mxu0 0.0
        %2943 = vmatpush1.msra.mxu0 0.0
        %2944 = vmatprep.subr.mxu0 0.0
        %2945 = vmatpush1.msra.mxu0 0.0
        %2946 = vmatprep.subr.mxu0 0.0
        %2947 = vmatpush1.msra.mxu0 0.0
        %2948 = vmatprep.subr.mxu0 0.0
        %2949 = vmatpush1.msra.mxu0 0.0
        %2950 = vmatprep.subr.mxu0 0.0
        %2951 = vmatpush1.msra.mxu0 0.0
        %2952 = vmatprep.subr.mxu0 0.0
        %2953 = vmatpush1.msra.mxu0 0.0
        %2954 = vmatprep.subr.mxu0 0.0
        %2955 = vmatpush1.msra.mxu0 0.0
        %2956 = vmatprep.subr.mxu0 0.0
        %2957 = vmatpush1.msra.mxu0 0.0
        %2958 = vmatprep.subr.mxu0 0.0
        %2959 = vmatpush1.msra.mxu0 0.0
        %2960 = vmatprep.subr.mxu0 0.0
        %2961 = vmatpush1.msra.mxu0 0.0
        %2962 = vmatprep.subr.mxu0 0.0
        %2963 = vmatpush1.msra.mxu0 0.0
        %2964 = vmatprep.subr.mxu0 0.0
        %2965 = vmatpush1.msra.mxu0 0.0
        %2966 = vmatprep.subr.mxu0 0.0
        %2967 = vmatpush1.msra.mxu0 0.0
        %2968 = vmatprep.subr.mxu0 0.0
        %2969 = vmatpush1.msra.mxu0 0.0
        %2970 = vmatprep.subr.mxu0 0.0
        %2971 = vmatpush1.msra.mxu0 0.0
        %2972 = vmatprep.subr.mxu0 0.0
        %2973 = vmatpush1.msra.mxu0 0.0
        %2974 = vmatprep.subr.mxu0 0.0
        %2975 = vmatpush1.msra.mxu0 0.0
        %2976 = vmatprep.subr.mxu0 0.0
        %2977 = vmatpush1.msra.mxu0 0.0
        %2978 = vmatprep.subr.mxu0 0.0
        %2979 = vmatpush1.msra.mxu0 0.0
        %2980 = vmatprep.subr.mxu0 0.0
        %2981 = vmatpush1.msra.mxu0 0.0
        %2982 = vmatprep.subr.mxu0 0.0
        %2983 = vmatpush1.msra.mxu0 0.0
        %2984 = vmatprep.subr.mxu0 0.0
        %2985 = vmatpush1.msra.mxu0 0.0
        %2986 = vmatprep.subr.mxu0 0.0
        %2987 = vmatpush1.msra.mxu0 0.0
        %2988 = vmatprep.subr.mxu0 0.0
        %2989 = vmatpush1.msra.mxu0 0.0
        %2990 = vmatprep.subr.mxu0 0.0
        %2991 = vmatpush1.msra.mxu0 0.0
        %2992 = vmatprep.subr.mxu0 0.0
        %2993 = vmatpush1.msra.mxu0 0.0
        %2994 = vmatprep.subr.mxu0 0.0
        %2995 = vmatpush1.msra.mxu0 0.0
        %2996 = vmatprep.subr.mxu0 0.0
        %2997 = vmatpush1.msra.mxu0 0.0
        %2998 = vmatprep.subr.mxu0 0.0
        %2999 = vmatpush1.msra.mxu0 0.0
        %3000 = vmatprep.mubr.f32.mxu0 0.0
        %3001 = vmatmul.mubr.f32.gmra.mrb[0].mxu0 %v2927
        %v3002 = vpop.f32.mrb[0].mxu0
        %v3003 = vadd.f32 %v2918, %v3002
        %v3004 = vpop.f32.mrb[0].mxu0
        %3005 = vmatprep.mubr.f32.mxu0 0.0
        %3006 = vmatmul.mubr.f32.gmra.mrb[0].mxu0 %v2930
        %v3007 = vpop.f32.mrb[0].mxu0
        %v3008 = vadd.f32 %v2923, %v3007
        %v3009 = vpop.f32.mrb[0].mxu0
        %3010 = vdwg.mxu0
        %v3011 = vsub.f32 0.0, %v3003
        %v3012 = vsub.f32 0.0, %v3008
        %v3013 = vmul.f32 %v3011, 1.442695
        %v3014 = vpow.pop %v3013
        %v3015 = vmul.f32 %v3012, 1.442695
        %v3016 = vpow.pop %v3015
        %v3017 = vadd.f32 %v3014, 1.0
        %v3018 = vadd.f32 %v3016, 1.0
        %v3019 = vrcp.pop %v3017
        %v3020 = vrcp.pop %v3018
        %v3021 = vmul.f32 %v2822, %v3019
        %v3022 = vmul.f32 %v2827, %v3020
        %s3023 = scalar_lea.vmem %s20, 16
        %v3024 = vld [vmem:[%s3023] sm:$0xff]
        %v3025 = vld [vmem:[%s3023 + $0x8] sm:$0xff]
        %v3026 = vld [vmem:[%s21] sm:$0xff]
        %v3027 = vld [vmem:[%s21 + $0x8] sm:$0xff]
        %3029 = vset.pattern.permute.xlu0 0
        %3030 = vperm.xlu0 %3029, %v3026
        %v3031 = vpop.permute.xlu0 %3030
        %3034 = vset.pattern.permute.xlu0 0
        %3035 = vperm.xlu0 %3034, %v3027
        %v3036 = vpop.permute.xlu0 %3035
        %v3039 = vsel %vm2258, %v3024, 0
        %v3042 = vsel %vm2258, %v3025, 0
        %3044 = vmatprep.subr.mxu0 0.0
        %3045 = vmatpush1.msra.mxu0 %v3021
        %3046 = vmatprep.subr.mxu0 0.0
        %3047 = vmatpush1.msra.mxu0 %v3022
        %3048 = vmatprep.subr.mxu0 0.0
        %3049 = vmatpush1.msra.mxu0 0.0
        %3050 = vmatprep.subr.mxu0 0.0
        %3051 = vmatpush1.msra.mxu0 0.0
        %3052 = vmatprep.subr.mxu0 0.0
        %3053 = vmatpush1.msra.mxu0 0.0
        %3054 = vmatprep.subr.mxu0 0.0
        %3055 = vmatpush1.msra.mxu0 0.0
        %3056 = vmatprep.subr.mxu0 0.0
        %3057 = vmatpush1.msra.mxu0 0.0
        %3058 = vmatprep.subr.mxu0 0.0
        %3059 = vmatpush1.msra.mxu0 0.0
        %3060 = vmatprep.subr.mxu0 0.0
        %3061 = vmatpush1.msra.mxu0 0.0
        %3062 = vmatprep.subr.mxu0 0.0
        %3063 = vmatpush1.msra.mxu0 0.0
        %3064 = vmatprep.subr.mxu0 0.0
        %3065 = vmatpush1.msra.mxu0 0.0
        %3066 = vmatprep.subr.mxu0 0.0
        %3067 = vmatpush1.msra.mxu0 0.0
        %3068 = vmatprep.subr.mxu0 0.0
        %3069 = vmatpush1.msra.mxu0 0.0
        %3070 = vmatprep.subr.mxu0 0.0
        %3071 = vmatpush1.msra.mxu0 0.0
        %3072 = vmatprep.subr.mxu0 0.0
        %3073 = vmatpush1.msra.mxu0 0.0
        %3074 = vmatprep.subr.mxu0 0.0
        %3075 = vmatpush1.msra.mxu0 0.0
        %3076 = vmatprep.subr.mxu0 0.0
        %3077 = vmatpush1.msra.mxu0 0.0
        %3078 = vmatprep.subr.mxu0 0.0
        %3079 = vmatpush1.msra.mxu0 0.0
        %3080 = vmatprep.subr.mxu0 0.0
        %3081 = vmatpush1.msra.mxu0 0.0
        %3082 = vmatprep.subr.mxu0 0.0
        %3083 = vmatpush1.msra.mxu0 0.0
        %3084 = vmatprep.subr.mxu0 0.0
        %3085 = vmatpush1.msra.mxu0 0.0
        %3086 = vmatprep.subr.mxu0 0.0
        %3087 = vmatpush1.msra.mxu0 0.0
        %3088 = vmatprep.subr.mxu0 0.0
        %3089 = vmatpush1.msra.mxu0 0.0
        %3090 = vmatprep.subr.mxu0 0.0
        %3091 = vmatpush1.msra.mxu0 0.0
        %3092 = vmatprep.subr.mxu0 0.0
        %3093 = vmatpush1.msra.mxu0 0.0
        %3094 = vmatprep.subr.mxu0 0.0
        %3095 = vmatpush1.msra.mxu0 0.0
        %3096 = vmatprep.subr.mxu0 0.0
        %3097 = vmatpush1.msra.mxu0 0.0
        %3098 = vmatprep.subr.mxu0 0.0
        %3099 = vmatpush1.msra.mxu0 0.0
        %3100 = vmatprep.subr.mxu0 0.0
        %3101 = vmatpush1.msra.mxu0 0.0
        %3102 = vmatprep.subr.mxu0 0.0
        %3103 = vmatpush1.msra.mxu0 0.0
        %3104 = vmatprep.subr.mxu0 0.0
        %3105 = vmatpush1.msra.mxu0 0.0
        %3106 = vmatprep.subr.mxu0 0.0
        %3107 = vmatpush1.msra.mxu0 0.0
        %3108 = vmatprep.mubr.f32.mxu0 0.0
        %3109 = vmatmul.mubr.f32.gmra.mrb[0].mxu0 %v3039
        %v3110 = vpop.f32.mrb[0].mxu0
        %v3111 = vadd.f32 %v3031, %v3110
        %v3112 = vpop.f32.mrb[0].mxu0
        %3113 = vmatprep.mubr.f32.mxu0 0.0
        %3114 = vmatmul.mubr.f32.gmra.mrb[0].mxu0 %v3042
        %v3115 = vpop.f32.mrb[0].mxu0
        %v3116 = vadd.f32 %v3036, %v3115
        %v3117 = vpop.f32.mrb[0].mxu0
        %3118 = vdwg.mxu0
        %3119 = vrot.lane.b32.xlu0 %v3021, 1
        %v3120 = vpop.permute.xlu0 %3119
        %3121 = vrot.lane.b32.xlu0 %v3022, 1
        %v3122 = vpop.permute.xlu0 %3121
        %v3123 = vmul.f32 %v3120, %v1996
        %v3124 = vmul.f32 %v3122, %v1996
        %v3125 = vld [vmem:[%s20] sm:$0xff]
        %v3126 = vld [vmem:[%s20 + $0x8] sm:$0xff]
        %v3128 = vsel %vm2258, %v3125, 0
        %v3131 = vsel %vm2258, %v3126, 0
        %3133 = vmatprep.subr.mxu0 0.0
        %3134 = vmatpush1.msra.mxu0 %v3123
        %3135 = vmatprep.subr.mxu0 0.0
        %3136 = vmatpush1.msra.mxu0 %v3124
        %3137 = vmatprep.subr.mxu0 0.0
        %3138 = vmatpush1.msra.mxu0 0.0
        %3139 = vmatprep.subr.mxu0 0.0
        %3140 = vmatpush1.msra.mxu0 0.0
        %3141 = vmatprep.subr.mxu0 0.0
        %3142 = vmatpush1.msra.mxu0 0.0
        %3143 = vmatprep.subr.mxu0 0.0
        %3144 = vmatpush1.msra.mxu0 0.0
        %3145 = vmatprep.subr.mxu0 0.0
        %3146 = vmatpush1.msra.mxu0 0.0
        %3147 = vmatprep.subr.mxu0 0.0
        %3148 = vmatpush1.msra.mxu0 0.0
        %3149 = vmatprep.subr.mxu0 0.0
        %3150 = vmatpush1.msra.mxu0 0.0
        %3151 = vmatprep.subr.mxu0 0.0
        %3152 = vmatpush1.msra.mxu0 0.0
        %3153 = vmatprep.subr.mxu0 0.0
        %3154 = vmatpush1.msra.mxu0 0.0
        %3155 = vmatprep.subr.mxu0 0.0
        %3156 = vmatpush1.msra.mxu0 0.0
        %3157 = vmatprep.subr.mxu0 0.0
        %3158 = vmatpush1.msra.mxu0 0.0
        %3159 = vmatprep.subr.mxu0 0.0
        %3160 = vmatpush1.msra.mxu0 0.0
        %3161 = vmatprep.subr.mxu0 0.0
        %3162 = vmatpush1.msra.mxu0 0.0
        %3163 = vmatprep.subr.mxu0 0.0
        %3164 = vmatpush1.msra.mxu0 0.0
        %3165 = vmatprep.subr.mxu0 0.0
        %3166 = vmatpush1.msra.mxu0 0.0
        %3167 = vmatprep.subr.mxu0 0.0
        %3168 = vmatpush1.msra.mxu0 0.0
        %3169 = vmatprep.subr.mxu0 0.0
        %3170 = vmatpush1.msra.mxu0 0.0
        %3171 = vmatprep.subr.mxu0 0.0
        %3172 = vmatpush1.msra.mxu0 0.0
        %3173 = vmatprep.subr.mxu0 0.0
        %3174 = vmatpush1.msra.mxu0 0.0
        %3175 = vmatprep.subr.mxu0 0.0
        %3176 = vmatpush1.msra.mxu0 0.0
        %3177 = vmatprep.subr.mxu0 0.0
        %3178 = vmatpush1.msra.mxu0 0.0
        %3179 = vmatprep.subr.mxu0 0.0
        %3180 = vmatpush1.msra.mxu0 0.0
        %3181 = vmatprep.subr.mxu0 0.0
        %3182 = vmatpush1.msra.mxu0 0.0
        %3183 = vmatprep.subr.mxu0 0.0
        %3184 = vmatpush1.msra.mxu0 0.0
        %3185 = vmatprep.subr.mxu0 0.0
        %3186 = vmatpush1.msra.mxu0 0.0
        %3187 = vmatprep.subr.mxu0 0.0
        %3188 = vmatpush1.msra.mxu0 0.0
        %3189 = vmatprep.subr.mxu0 0.0
        %3190 = vmatpush1.msra.mxu0 0.0
        %3191 = vmatprep.subr.mxu0 0.0
        %3192 = vmatpush1.msra.mxu0 0.0
        %3193 = vmatprep.subr.mxu0 0.0
        %3194 = vmatpush1.msra.mxu0 0.0
        %3195 = vmatprep.subr.mxu0 0.0
        %3196 = vmatpush1.msra.mxu0 0.0
        %3197 = vmatprep.mubr.f32.mxu0 0.0
        %3198 = vmatmul.mubr.f32.gmra.mrb[0].mxu0 %v3128
        %v3199 = vpop.f32.mrb[0].mxu0
        %v3200 = vadd.f32 0.0, %v3199
        %v3201 = vpop.f32.mrb[0].mxu0
        %3202 = vmatprep.mubr.f32.mxu0 0.0
        %3203 = vmatmul.mubr.f32.gmra.mrb[0].mxu0 %v3131
        %v3204 = vpop.f32.mrb[0].mxu0
        %v3205 = vadd.f32 0.0, %v3204
        %v3206 = vpop.f32.mrb[0].mxu0
        %3207 = vdwg.mxu0
        %v3208 = vadd.f32 %v3111, %v3200
        %v3209 = vadd.f32 %v3116, %v3205
        %3210 = vrot.lane.b32.xlu0 %v3021, 127
        %v3211 = vpop.permute.xlu0 %3210
        %3212 = vrot.lane.b32.xlu0 %v3022, 127
        %v3213 = vpop.permute.xlu0 %3212
        %v3214 = vmul.f32 %v3211, %v2121
        %v3215 = vmul.f32 %v3213, %v2121
        %s3216 = scalar_lea.vmem %s20, 32
        %v3217 = vld [vmem:[%s3216] sm:$0xff]
        %v3218 = vld [vmem:[%s3216 + $0x8] sm:$0xff]
        %v3220 = vsel %vm2258, %v3217, 0
        %v3223 = vsel %vm2258, %v3218, 0
        %3225 = vmatprep.subr.mxu0 0.0
        %3226 = vmatpush1.msra.mxu0 %v3214
        %3227 = vmatprep.subr.mxu0 0.0
        %3228 = vmatpush1.msra.mxu0 %v3215
        %3229 = vmatprep.subr.mxu0 0.0
        %3230 = vmatpush1.msra.mxu0 0.0
        %3231 = vmatprep.subr.mxu0 0.0
        %3232 = vmatpush1.msra.mxu0 0.0
        %3233 = vmatprep.subr.mxu0 0.0
        %3234 = vmatpush1.msra.mxu0 0.0
        %3235 = vmatprep.subr.mxu0 0.0
        %3236 = vmatpush1.msra.mxu0 0.0
        %3237 = vmatprep.subr.mxu0 0.0
        %3238 = vmatpush1.msra.mxu0 0.0
        %3239 = vmatprep.subr.mxu0 0.0
        %3240 = vmatpush1.msra.mxu0 0.0
        %3241 = vmatprep.subr.mxu0 0.0
        %3242 = vmatpush1.msra.mxu0 0.0
        %3243 = vmatprep.subr.mxu0 0.0
        %3244 = vmatpush1.msra.mxu0 0.0
        %3245 = vmatprep.subr.mxu0 0.0
        %3246 = vmatpush1.msra.mxu0 0.0
        %3247 = vmatprep.subr.mxu0 0.0
        %3248 = vmatpush1.msra.mxu0 0.0
        %3249 = vmatprep.subr.mxu0 0.0
        %3250 = vmatpush1.msra.mxu0 0.0
        %3251 = vmatprep.subr.mxu0 0.0
        %3252 = vmatpush1.msra.mxu0 0.0
        %3253 = vmatprep.subr.mxu0 0.0
        %3254 = vmatpush1.msra.mxu0 0.0
        %3255 = vmatprep.subr.mxu0 0.0
        %3256 = vmatpush1.msra.mxu0 0.0
        %3257 = vmatprep.subr.mxu0 0.0
        %3258 = vmatpush1.msra.mxu0 0.0
        %3259 = vmatprep.subr.mxu0 0.0
        %3260 = vmatpush1.msra.mxu0 0.0
        %3261 = vmatprep.subr.mxu0 0.0
        %3262 = vmatpush1.msra.mxu0 0.0
        %3263 = vmatprep.subr.mxu0 0.0
        %3264 = vmatpush1.msra.mxu0 0.0
        %3265 = vmatprep.subr.mxu0 0.0
        %3266 = vmatpush1.msra.mxu0 0.0
        %3267 = vmatprep.subr.mxu0 0.0
        %3268 = vmatpush1.msra.mxu0 0.0
        %3269 = vmatprep.subr.mxu0 0.0
        %3270 = vmatpush1.msra.mxu0 0.0
        %3271 = vmatprep.subr.mxu0 0.0
        %3272 = vmatpush1.msra.mxu0 0.0
        %3273 = vmatprep.subr.mxu0 0.0
        %3274 = vmatpush1.msra.mxu0 0.0
        %3275 = vmatprep.subr.mxu0 0.0
        %3276 = vmatpush1.msra.mxu0 0.0
        %3277 = vmatprep.subr.mxu0 0.0
        %3278 = vmatpush1.msra.mxu0 0.0
        %3279 = vmatprep.subr.mxu0 0.0
        %3280 = vmatpush1.msra.mxu0 0.0
        %3281 = vmatprep.subr.mxu0 0.0
        %3282 = vmatpush1.msra.mxu0 0.0
        %3283 = vmatprep.subr.mxu0 0.0
        %3284 = vmatpush1.msra.mxu0 0.0
        %3285 = vmatprep.subr.mxu0 0.0
        %3286 = vmatpush1.msra.mxu0 0.0
        %3287 = vmatprep.subr.mxu0 0.0
        %3288 = vmatpush1.msra.mxu0 0.0
        %3289 = vmatprep.mubr.f32.mxu0 0.0
        %3290 = vmatmul.mubr.f32.gmra.mrb[0].mxu0 %v3220
        %v3291 = vpop.f32.mrb[0].mxu0
        %v3292 = vadd.f32 0.0, %v3291
        %v3293 = vpop.f32.mrb[0].mxu0
        %3294 = vmatprep.mubr.f32.mxu0 0.0
        %3295 = vmatmul.mubr.f32.gmra.mrb[0].mxu0 %v3223
        %v3296 = vpop.f32.mrb[0].mxu0
        %v3297 = vadd.f32 0.0, %v3296
        %v3298 = vpop.f32.mrb[0].mxu0
        %3299 = vdwg.mxu0
        %v3300 = vadd.f32 %v3208, %v3292
        %v3301 = vadd.f32 %v3209, %v3297
        %v3302 = vadd.f32 %v3300, %v3021
        %v3303 = vadd.f32 %v3301, %v3022
        %v3304 = vld [vmem:[%s22] sm:$0xff]
        %v3305 = vld [vmem:[%s23] sm:$0xff]
        %3307 = vset.pattern.permute.xlu0 0
        %3308 = vperm.xlu0 %3307, %v3305
        %v3309 = vpop.permute.xlu0 %3308
        %v3312 = vsel %vm2258, %v3304, 0
        %3314 = vmatprep.subr.mxu0 0.0
        %3315 = vmatpush1.msra.mxu0 %v3302
        %3316 = vmatprep.subr.mxu0 0.0
        %3317 = vmatpush1.msra.mxu0 %v3303
        %3318 = vmatprep.subr.mxu0 0.0
        %3319 = vmatpush1.msra.mxu0 0.0
        %3320 = vmatprep.subr.mxu0 0.0
        %3321 = vmatpush1.msra.mxu0 0.0
        %3322 = vmatprep.subr.mxu0 0.0
        %3323 = vmatpush1.msra.mxu0 0.0
        %3324 = vmatprep.subr.mxu0 0.0
        %3325 = vmatpush1.msra.mxu0 0.0
        %3326 = vmatprep.subr.mxu0 0.0
        %3327 = vmatpush1.msra.mxu0 0.0
        %3328 = vmatprep.subr.mxu0 0.0
        %3329 = vmatpush1.msra.mxu0 0.0
        %3330 = vmatprep.subr.mxu0 0.0
        %3331 = vmatpush1.msra.mxu0 0.0
        %3332 = vmatprep.subr.mxu0 0.0
        %3333 = vmatpush1.msra.mxu0 0.0
        %3334 = vmatprep.subr.mxu0 0.0
        %3335 = vmatpush1.msra.mxu0 0.0
        %3336 = vmatprep.subr.mxu0 0.0
        %3337 = vmatpush1.msra.mxu0 0.0
        %3338 = vmatprep.subr.mxu0 0.0
        %3339 = vmatpush1.msra.mxu0 0.0
        %3340 = vmatprep.subr.mxu0 0.0
        %3341 = vmatpush1.msra.mxu0 0.0
        %3342 = vmatprep.subr.mxu0 0.0
        %3343 = vmatpush1.msra.mxu0 0.0
        %3344 = vmatprep.subr.mxu0 0.0
        %3345 = vmatpush1.msra.mxu0 0.0
        %3346 = vmatprep.subr.mxu0 0.0
        %3347 = vmatpush1.msra.mxu0 0.0
        %3348 = vmatprep.subr.mxu0 0.0
        %3349 = vmatpush1.msra.mxu0 0.0
        %3350 = vmatprep.subr.mxu0 0.0
        %3351 = vmatpush1.msra.mxu0 0.0
        %3352 = vmatprep.subr.mxu0 0.0
        %3353 = vmatpush1.msra.mxu0 0.0
        %3354 = vmatprep.subr.mxu0 0.0
        %3355 = vmatpush1.msra.mxu0 0.0
        %3356 = vmatprep.subr.mxu0 0.0
        %3357 = vmatpush1.msra.mxu0 0.0
        %3358 = vmatprep.subr.mxu0 0.0
        %3359 = vmatpush1.msra.mxu0 0.0
        %3360 = vmatprep.subr.mxu0 0.0
        %3361 = vmatpush1.msra.mxu0 0.0
        %3362 = vmatprep.subr.mxu0 0.0
        %3363 = vmatpush1.msra.mxu0 0.0
        %3364 = vmatprep.subr.mxu0 0.0
        %3365 = vmatpush1.msra.mxu0 0.0
        %3366 = vmatprep.subr.mxu0 0.0
        %3367 = vmatpush1.msra.mxu0 0.0
        %3368 = vmatprep.subr.mxu0 0.0
        %3369 = vmatpush1.msra.mxu0 0.0
        %3370 = vmatprep.subr.mxu0 0.0
        %3371 = vmatpush1.msra.mxu0 0.0
        %3372 = vmatprep.subr.mxu0 0.0
        %3373 = vmatpush1.msra.mxu0 0.0
        %3374 = vmatprep.subr.mxu0 0.0
        %3375 = vmatpush1.msra.mxu0 0.0
        %3376 = vmatprep.subr.mxu0 0.0
        %3377 = vmatpush1.msra.mxu0 0.0
        %3378 = vmatprep.mubr.f32.mxu0 0.0
        %3379 = vmatmul.mubr.f32.gmra.mrb[0].mxu0 %v3312
        %v3380 = vpop.f32.mrb[0].mxu0
        %v3381 = vadd.f32 %v3309, %v3380
        %v3382 = vpop.f32.mrb[0].mxu0
        %3383 = vdwg.mxu0
        %v3384 = vld [vmem:[%s24] sm:$0xff]
        %v3385 = vld [vmem:[%s24 + $0x8] sm:$0xff]
        %v3386 = vld [vmem:[%s24 + $0x10] sm:$0xff]
        %v3387 = vld [vmem:[%s24 + $0x18] sm:$0xff]
        %v3388 = vld [vmem:[%s24 + $0x20] sm:$0xff]
        %v3389 = vld [vmem:[%s24 + $0x28] sm:$0xff]
        %v3390 = vld [vmem:[%s24 + $0x30] sm:$0xff]
        %v3391 = vld [vmem:[%s24 + $0x38] sm:$0xff]
        %v3392 = vld [vmem:[%s24 + $0x40] sm:$0xff]
        %v3393 = vld [vmem:[%s24 + $0x48] sm:$0xff]
        %v3394 = vld [vmem:[%s24 + $0x50] sm:$0xff]
        %v3395 = vld [vmem:[%s24 + $0x58] sm:$0xff]
        %v3396 = vld [vmem:[%s24 + $0x60] sm:$0xff]
        %v3397 = vld [vmem:[%s24 + $0x68] sm:$0xff]
        %v3398 = vld [vmem:[%s24 + $0x70] sm:$0xff]
        %v3399 = vld [vmem:[%s24 + $0x78] sm:$0xff]
        %v3400 = vld [vmem:[%s24 + $0x80] sm:$0xff]
        %v3401 = vld [vmem:[%s24 + $0x88] sm:$0xff]
        %v3402 = vld [vmem:[%s24 + $0x90] sm:$0xff]
        %v3403 = vld [vmem:[%s24 + $0x98] sm:$0xff]
        %v3404 = vld [vmem:[%s24 + $0xa0] sm:$0xff]
        %v3405 = vld [vmem:[%s24 + $0xa8] sm:$0xff]
        %v3406 = vld [vmem:[%s24 + $0xb0] sm:$0xff]
        %v3407 = vld [vmem:[%s24 + $0xb8] sm:$0xff]
        %v3408 = vld [vmem:[%s24 + $0xc0] sm:$0xff]
        %v3409 = vld [vmem:[%s24 + $0xc8] sm:$0xff]
        %v3410 = vld [vmem:[%s24 + $0xd0] sm:$0xff]
        %v3411 = vld [vmem:[%s24 + $0xd8] sm:$0xff]
        %v3412 = vld [vmem:[%s24 + $0xe0] sm:$0xff]
        %v3413 = vld [vmem:[%s24 + $0xe8] sm:$0xff]
        %v3414 = vld [vmem:[%s24 + $0xf0] sm:$0xff]
        %v3415 = vld [vmem:[%s24 + $0xf8] sm:$0xff]
        %3416 = vmatprep.subr.mxu0 %v3385
        %3417 = vmatpush1.msra.mxu0 %v3384
        %3418 = vmatprep.subr.mxu0 %v3387
        %3419 = vmatpush1.msra.mxu0 %v3386
        %3420 = vmatprep.subr.mxu0 %v3389
        %3421 = vmatpush1.msra.mxu0 %v3388
        %3422 = vmatprep.subr.mxu0 %v3391
        %3423 = vmatpush1.msra.mxu0 %v3390
        %3424 = vmatprep.subr.mxu0 %v3393
        %3425 = vmatpush1.msra.mxu0 %v3392
        %3426 = vmatprep.subr.mxu0 %v3395
        %3427 = vmatpush1.msra.mxu0 %v3394
        %3428 = vmatprep.subr.mxu0 %v3397
        %3429 = vmatpush1.msra.mxu0 %v3396
        %3430 = vmatprep.subr.mxu0 %v3399
        %3431 = vmatpush1.msra.mxu0 %v3398
        %3432 = vmatprep.subr.mxu0 %v3401
        %3433 = vmatpush1.msra.mxu0 %v3400
        %3434 = vmatprep.subr.mxu0 %v3403
        %3435 = vmatpush1.msra.mxu0 %v3402
        %3436 = vmatprep.subr.mxu0 %v3405
        %3437 = vmatpush1.msra.mxu0 %v3404
        %3438 = vmatprep.subr.mxu0 %v3407
        %3439 = vmatpush1.msra.mxu0 %v3406
        %3440 = vmatprep.subr.mxu0 %v3409
        %3441 = vmatpush1.msra.mxu0 %v3408
        %3442 = vmatprep.subr.mxu0 %v3411
        %3443 = vmatpush1.msra.mxu0 %v3410
        %3444 = vmatprep.subr.mxu0 %v3413
        %3445 = vmatpush1.msra.mxu0 %v3412
        %3446 = vmatprep.subr.mxu0 %v3415
        %3447 = vmatpush1.msra.mxu0 %v3414
        %3448 = vmatprep.subr.mxu0 0.0
        %3449 = vmatpush1.msra.mxu0 0.0
        %3450 = vmatprep.subr.mxu0 0.0
        %3451 = vmatpush1.msra.mxu0 0.0
        %3452 = vmatprep.subr.mxu0 0.0
        %3453 = vmatpush1.msra.mxu0 0.0
        %3454 = vmatprep.subr.mxu0 0.0
        %3455 = vmatpush1.msra.mxu0 0.0
        %3456 = vmatprep.subr.mxu0 0.0
        %3457 = vmatpush1.msra.mxu0 0.0
        %3458 = vmatprep.subr.mxu0 0.0
        %3459 = vmatpush1.msra.mxu0 0.0
        %3460 = vmatprep.subr.mxu0 0.0
        %3461 = vmatpush1.msra.mxu0 0.0
        %3462 = vmatprep.subr.mxu0 0.0
        %3463 = vmatpush1.msra.mxu0 0.0
        %3464 = vmatprep.subr.mxu0 0.0
        %3465 = vmatpush1.msra.mxu0 0.0
        %3466 = vmatprep.subr.mxu0 0.0
        %3467 = vmatpush1.msra.mxu0 0.0
        %3468 = vmatprep.subr.mxu0 0.0
        %3469 = vmatpush1.msra.mxu0 0.0
        %3470 = vmatprep.subr.mxu0 0.0
        %3471 = vmatpush1.msra.mxu0 0.0
        %3472 = vmatprep.subr.mxu0 0.0
        %3473 = vmatpush1.msra.mxu0 0.0
        %3474 = vmatprep.subr.mxu0 0.0
        %3475 = vmatpush1.msra.mxu0 0.0
        %3476 = vmatprep.subr.mxu0 0.0
        %3477 = vmatpush1.msra.mxu0 0.0
        %3478 = vmatprep.subr.mxu0 0.0
        %3479 = vmatpush1.msra.mxu0 0.0
        %3480 = vmatprep.mubr.f32.mxu0 0.0
        %3481 = vmatmul.mubr.f32.gmra.mrb[0].mxu0 %v3381
        %v3482 = vpop.f32.mrb[0].mxu0
        %v3483 = vadd.f32 0.0, %v3482
        %v3484 = vpop.f32.mrb[0].mxu0
        %v3485 = vadd.f32 0.0, %v3484
        %3486 = vdwg.mxu0
        %3487 = vst [vmem:[%s840] sm:$0xff] %v3483
        %3488 = vst [vmem:[%s840 + $0x8] sm:$0xff] %v3485
        %s3489 = sand.u32 %s623, 1
        %s3490 = scalar_lea.sflag [#allocation4], %s3489
        %s3491 = sand.u32 %s623, 1
        %s3492 = smul.addr %s3491, 16
        %s3493 = scalar_lea.vmem [#allocation7], %s3492
        // Predicated region
        $region137: #{tpu_custom_call.1} parent=127 // pred_check
          %p3494 = pneg %p633
        $region138: #{tpu_custom_call.1} parent=127 // pred_check_branch
          %3496 = sbr.rel (%p3494) target = $region140
        $region139: #{tpu_custom_call.1} parent=127 // pred_region
          %s3497 = smul.u32 2, %s43
          %s3499 = ssub.s32 256, 256
          %3500 = vsyncadd %s3490, %s3499
          %s3501 = smul.addr %s3497, 128
          %s3502 = scalar_lea.hbm %s27, %s3501
          %s3504 = sshll.u32 %s3493, 4
          %s3505 = int_to_ptr.vmem [resolvable:$true] %s3504
          %3507 = dma.vmem_to_hbm [thread:$0]  %s3505, 256, %s3502, %s3490
        $region140: #{tpu_custom_call.1} parent=127 // pred_fallthru
          _
      $region128: #{tpu_custom_call.1} parent=5 // pred_fallthru
        _
      %p3508 = scmp.le.s32.totalorder 2, %s38
      // Predicated region
      $region141: #{tpu_custom_call.1} parent=5 // pred_check
        %p3509 = pneg %p3508
      $region142: #{tpu_custom_call.1} parent=5 // pred_check_branch
        %3511 = sbr.rel (%p3509) target = $region144
      $region143: #{tpu_custom_call.1} parent=5 // pred_region
        %s3512 = ssub.s32 %s38, 2
        // Predicated region
        $region145: #{tpu_custom_call.1} parent=143 // pred_check
          %p3513 = pneg %p639
        $region146: #{tpu_custom_call.1} parent=143 // pred_check_branch
          %3515 = sbr.rel (%p3513) target = $region148
        $region147: #{tpu_custom_call.1} parent=143 // pred_region
          %s3516 = sand.u32 %s624, 1
          %s3517 = scalar_lea.sflag [#allocation4], %s3516
          %s3518 = sand.u32 %s624, 1
          %s3519 = smul.addr %s3518, 16
          %s3520 = scalar_lea.vmem [#allocation7], %s3519
          %3521 = dma.done %s3517, 256
        $region148: #{tpu_custom_call.1} parent=143 // pred_fallthru
          _
      $region144: #{tpu_custom_call.1} parent=5 // pred_fallthru
        _
    $region6: #{tpu_custom_call.1} parent=1 // loop_footer
      %s42 = sadd.s32 1, %s38
    $region7: #{tpu_custom_call.1} parent=1 // loop_footer_branch
      %37 = sbr.rel target = $region3
    $region8: #{tpu_custom_call.1} parent=1 // loop_exit
      _
    %3522 = vsyncpa [#allocation3], 1
    %s3523 = scalar_lea.sflag [#allocation3], 1
    %3524 = vsyncpa %s3523, 1
    %3525 = vsyncpa [#allocation6], 1
    %3526 = vsyncpa [#allocation4], 1
    %s3527 = scalar_lea.sflag [#allocation4], 1
    %3528 = vsyncpa %s3527, 1

</llo_original>
